<compile_context>
chip_gen: v7x
topology: tpu7x:2x2x1
jax: 0.10.0
libtpu: 0.0.40
codegen_flags: <defaults>
</compile_context>

<pallas_src>
import functools
import math

import jax
import jax.numpy as jnp
from jax.experimental import pallas as pl
from jax.experimental.pallas import tpu as pltpu


def transformer_block_kernel(x_ref, ln1g_ref, ln1b_ref,
                             wqkv_ref, bqkv_ref, wo_ref, bo_ref,
                             ln2g_ref, ln2b_ref,
                             w1_ref, b1_ref, w2_ref, b2_ref,
                             o_ref, acc_ref,
                             *, num_heads, head_dim, embed_dim, mxu_dtype):
    eps = 1e-5
    bt, n, d = x_ref.shape
    m = bt * n

    x2 = x_ref[...].astype(jnp.float32).reshape(m, d)   # fold batch into matmul M dim

    def layernorm(v, g, b):
        mu = jnp.mean(v, axis=-1, keepdims=True)
        var = jnp.mean((v - mu) ** 2, axis=-1, keepdims=True)
        return (v - mu) * jax.lax.rsqrt(var + eps) * g + b

    def mm(a, w):                                        # MXU matmul, f32 accumulation
        return jnp.dot(a.astype(mxu_dtype), w, preferred_element_type=jnp.float32)

    # ---- LN1 + fused QKV projection (attention scale pre-folded into the Q weights) ----
    h1 = layernorm(x2, ln1g_ref[...], ln1b_ref[...])
    qkv = mm(h1, wqkv_ref[...]) + bqkv_ref[...]          # (M, 3D); weights already (D, 3D)

    # ---- per-head self-attention; out-proj accumulated head-by-head into VMEM scratch ----
    acc_ref[...] = jnp.zeros_like(acc_ref)
    for hd in range(num_heads):
        lo = hd * head_dim
        qh = qkv[:, lo:lo + head_dim].reshape(bt, n, head_dim)
        kh = qkv[:, embed_dim + lo:embed_dim + lo + head_dim].reshape(bt, n, head_dim)
        vh = qkv[:, 2 * embed_dim + lo:2 * embed_dim + lo + head_dim].reshape(bt, n, head_dim)
        s = jnp.einsum('bqd,bkd->bqk', qh.astype(mxu_dtype), kh.astype(mxu_dtype),
                       preferred_element_type=jnp.float32)              # (Bt, N, N)
        s = s - jnp.max(s, axis=-1, keepdims=True)
        p = jnp.exp(s)
        p = p * pl.reciprocal(jnp.sum(p, axis=-1, keepdims=True), approx=True)
        oh = jnp.einsum('bqk,bkd->bqd', p.astype(mxu_dtype), vh.astype(mxu_dtype),
                        preferred_element_type=jnp.float32)              # (Bt, N, dh)
        acc_ref[...] += mm(oh.reshape(m, head_dim), wo_ref[hd])          # wo_ref[hd]: (dh, D)

    res2 = x2 + acc_ref[...] + bo_ref[...]               # Drop1 is identity at inference

    # ---- LN2 + FFN ----
    h2 = layernorm(res2, ln2g_ref[...], ln2b_ref[...])
    f = jnp.maximum(mm(h2, w1_ref[...]) + b1_ref[...], 0.0)   # ReLU; Drop2 identity
    f = mm(f, w2_ref[...]) + b2_ref[...]                       # Drop3 identity
    o_ref[...] = (res2 + f).reshape(bt, n, d).astype(o_ref.dtype)


def prepare_params(params, num_heads, *, mxu_dtype=jnp.bfloat16):
    """One-time weight transforms (call at model init; reuse across forward calls)."""
    D = params["wqkv"].shape[1]
    head_dim = D // num_heads
    scale = head_dim ** (-0.5)

    wqkv = params["wqkv"].astype(jnp.float32)
    bqkv = params["bqkv"].astype(jnp.float32)
    # Fold the attention scaling into the Q rows of the QKV projection (free at init time).
    wqkv = wqkv.at[:D, :].multiply(scale)
    bqkv = bqkv.at[:, :D].multiply(scale)

    return {
        "num_heads": num_heads,
        "ln1_g": params["ln1_g"].astype(jnp.float32),
        "ln1_b": params["ln1_b"].astype(jnp.float32),
        "wqkv_t": wqkv.T.astype(mxu_dtype),                                        # (D, 3D)
        "bqkv": bqkv,                                                              # (1, 3D)
        "wo_t": params["wo"].T.reshape(num_heads, head_dim, D).astype(mxu_dtype),  # (H, dh, D)
        "bo": params["bo"].astype(jnp.float32),
        "ln2_g": params["ln2_g"].astype(jnp.float32),
        "ln2_b": params["ln2_b"].astype(jnp.float32),
        "w1_t": params["w1"].T.astype(mxu_dtype),                                  # (D, F)
        "b1": params["b1"].astype(jnp.float32),
        "w2_t": params["w2"].T.astype(mxu_dtype),                                  # (F, D)
        "b2": params["b2"].astype(jnp.float32),
    }


def _vmem_limit_bytes():
    try:
        cap = int(pltpu.get_tpu_info().vmem_capacity_bytes)
    except Exception:
        cap = 64 * 1024 * 1024        # unknown generation -> conservative (safe on v7x)
    # ~80% of per-core VMEM: ~51 MiB on v7x (64 MiB/TC), ~102 MiB on v5e/v6e (128 MiB).
    return max(32 * 1024 * 1024, int(cap * 0.8))


def _pick_block_b(batch, n, d, f, num_heads, vmem_limit, target_rows=2048):
    """Largest batch tile whose per-step activation working set fits comfortably in VMEM,
    capped so the parallel grid axis has >=2 steps (keeps v7x's 2nd TensorCore busy)."""
    def fits(bb):
        m = bb * n
        if m > target_rows:
            return False
        # rough f32 activation working set (elements): qkv + one head's scores/probs +
        # residual/accumulator/LN temporaries + FFN hidden
        work = m * (3 * d) + 2 * (bb * n * n) + 4 * m * d + m * f
        return work * 4 <= vmem_limit // 3
    best = 1
    for cand in range(1, batch + 1):
        if fits(cand):
            best = cand
    if batch >= 2:
        best = min(best, max(1, batch // 2))
    return best


def transformer_block(x, prepped, *, block_b=None):
    B, N, D = x.shape
    num_heads = prepped["num_heads"]
    assert D % num_heads == 0
    head_dim = D // num_heads
    F_dim = prepped["w1_t"].shape[1]
    mxu_dtype = prepped["wqkv_t"].dtype

    vmem_limit = _vmem_limit_bytes()
    if block_b is None:
        block_b = _pick_block_b(B, N, D, F_dim, num_heads, vmem_limit)
    block_b = max(1, min(int(block_b), B))

    # Pad ragged batch sizes up to a multiple of block_b (zero rows are numerically benign:
    # LayerNorm of zeros -> zeros, softmax of zero scores -> uniform; padded rows dropped).
    grid_steps = pl.cdiv(B, block_b)
    Bp = grid_steps * block_b
    xp = x if Bp == B else jnp.pad(x, ((0, Bp - B), (0, 0), (0, 0)))

    kernel = functools.partial(transformer_block_kernel, num_heads=num_heads,
                               head_dim=head_dim, embed_dim=D, mxu_dtype=mxu_dtype)

    operands = (xp, prepped["ln1_g"], prepped["ln1_b"],
                prepped["wqkv_t"], prepped["bqkv"], prepped["wo_t"], prepped["bo"],
                prepped["ln2_g"], prepped["ln2_b"],
                prepped["w1_t"], prepped["b1"], prepped["w2_t"], prepped["b2"])

    # Advisory cost estimate so XLA schedules surrounding ops around the custom call.
    matmul_flops = 2 * Bp * N * D * (3 * D + D + 2 * F_dim)
    attn_flops = 4 * Bp * num_heads * N * N * head_dim
    param_bytes = sum(int(a.size) * a.dtype.itemsize for a in operands[1:])
    cost = pl.CostEstimate(
        flops=int(matmul_flops + attn_flops),
        transcendentals=int(Bp * num_heads * N * N + 3 * Bp * N),
        bytes_accessed=int(2 * xp.size * xp.dtype.itemsize + param_bytes))

    def run(single_buffer_weights):
        def rep(shape):
            kw = {}
            if single_buffer_weights:
                # Constant-index operands never change across grid steps -> one buffer.
                kw["pipeline_mode"] = pl.Buffered(1)
            return pl.BlockSpec(shape, lambda i, _n=len(shape): (0,) * _n, **kw)

        in_specs = [
            pl.BlockSpec((block_b, N, D), lambda i: (i, 0, 0)),   # x: block_b batches / step
            rep((1, D)), rep((1, D)),                             # ln1 gamma / beta
            rep((D, 3 * D)), rep((1, 3 * D)),                     # qkv_proj W^T / b
            rep((num_heads, head_dim, D)), rep((1, D)),           # out_proj W^T (head-major) / b
            rep((1, D)), rep((1, D)),                             # ln2 gamma / beta
            rep((D, F_dim)), rep((1, F_dim)),                     # linear1 W^T / b
            rep((F_dim, D)), rep((1, D)),                         # linear2 W^T / b
        ]
        return pl.pallas_call(
            kernel,
            out_shape=jax.ShapeDtypeStruct((Bp, N, D), x.dtype),
            grid=(grid_steps,),
            in_specs=in_specs,
            out_specs=pl.BlockSpec((block_b, N, D), lambda i: (i, 0, 0)),
            scratch_shapes=[pltpu.VMEM((block_b * N, D), jnp.float32)],
            compiler_params=pltpu.CompilerParams(
                dimension_semantics=("parallel",),
                vmem_limit_bytes=vmem_limit),
            cost_estimate=cost,
        )(*operands)

    try:
        out = run(True)
    except Exception:
        # Fallback for jax versions that reject single-buffered (Buffered(1)) operands.
        out = run(False)

    return out if Bp == B else out[:B]


# ---------------- reference (pure JAX, mirrors the PyTorch forward) ----------------
def reference_block(x, params, num_heads):
    B, N, D = x.shape
    dh = D // num_heads
    eps = 1e-5

    def ln(v, g, b):
        mu = jnp.mean(v, axis=-1, keepdims=True)
        var = jnp.mean((v - mu) ** 2, axis=-1, keepdims=True)
        return (v - mu) / jnp.sqrt(var + eps) * g[0] + b[0]

    h = ln(x, params["ln1_g"], params["ln1_b"])
    qkv = h @ params["wqkv"].T + params["bqkv"][0]
    qkv = qkv.reshape(B, N, 3, num_heads, dh).transpose(0, 3, 2, 1, 4)  # (B,H,3,N,dh)
    q, k, v = qkv[:, :, 0], qkv[:, :, 1], qkv[:, :, 2]
    q = q * dh ** (-0.5)
    attn = jax.nn.softmax(q @ jnp.swapaxes(k, -1, -2), axis=-1)
    out = (attn @ v).transpose(0, 2, 1, 3).reshape(B, N, D)
    out = out @ params["wo"].T + params["bo"][0]
    res2 = x + out
    h2 = ln(res2, params["ln2_g"], params["ln2_b"])
    f = jnp.maximum(h2 @ params["w1"].T + params["b1"][0], 0.0)
    f = f @ params["w2"].T + params["b2"][0]
    return res2 + f


def xavier_uniform(key, out_f, in_f):
    limit = math.sqrt(6.0 / (in_f + out_f))
    return jax.random.uniform(key, (out_f, in_f), jnp.float32, -limit, limit)


if __name__ == "__main__":
    B, N, D = 2, 8, 32          # batch, n_patches, embed_dim
    num_heads = 4
    ffn_dim = 64

    key = jax.random.PRNGKey(0)
    keys = jax.random.split(key, 8)

    params = {
        "ln1_g": jnp.ones((1, D), jnp.float32),
        "ln1_b": jnp.zeros((1, D), jnp.float32),
        "wqkv": xavier_uniform(keys[0], 3 * D, D),
        "bqkv": jnp.zeros((1, 3 * D), jnp.float32),     # constant_(bias, 0) per module init
        "wo": xavier_uniform(keys[1], D, D),
        "bo": jnp.zeros((1, D), jnp.float32),
        "ln2_g": jnp.ones((1, D), jnp.float32),
        "ln2_b": jnp.zeros((1, D), jnp.float32),
        "w1": xavier_uniform(keys[2], ffn_dim, D),
        "b1": jnp.zeros((1, ffn_dim), jnp.float32),
        "w2": xavier_uniform(keys[3], D, ffn_dim),
        "b2": jnp.zeros((1, D), jnp.float32),
    }

    x = jax.random.normal(keys[4], (B, N, D), jnp.float32)
    ref = reference_block(x, params, num_heads)

    # Default path: bf16 MXU operands, f32 accumulation / LN / softmax / residuals.
    prepped_bf16 = prepare_params(params, num_heads)          # mxu_dtype defaults to bf16
    out = jax.block_until_ready(transformer_block(x, prepped_bf16))
    assert out.shape == (B, N, D)
    assert jnp.allclose(out, ref, atol=1e-1, rtol=5e-2), "bf16 kernel mismatch vs reference"

    # f32 MXU operands for a tight numerical check of the kernel structure.
    prepped_f32 = prepare_params(params, num_heads, mxu_dtype=jnp.float32)
    out_f32 = jax.block_until_ready(transformer_block(x, prepped_f32))
    assert jnp.allclose(out_f32, ref, atol=1e-2, rtol=1e-2), "f32 kernel mismatch vs reference"

    # Ragged batch (B=3) with block_b=2 exercises the zero-padding path (2 grid steps).
    x3 = jax.random.normal(keys[5], (3, N, D), jnp.float32)
    ref3 = reference_block(x3, params, num_heads)
    out3 = jax.block_until_ready(transformer_block(x3, prepped_bf16, block_b=2))
    assert out3.shape == (3, N, D)
    assert jnp.allclose(out3, ref3, atol=1e-1, rtol=5e-2), "padded-batch kernel mismatch"

    print("KERNEL_OK")
</pallas_src>

<mosaic_0001>
module attributes {stable_mosaic.version = 11 : i64} {
  func.func @transformer_block_kernel(%arg0: i32, %arg1: memref<1x8x32xf32, #tpu.memory_space<vmem>>, %arg2: memref<1x32xf32, #tpu.memory_space<vmem>>, %arg3: memref<1x32xf32, #tpu.memory_space<vmem>>, %arg4: memref<32x96xbf16, #tpu.memory_space<vmem>>, %arg5: memref<1x96xf32, #tpu.memory_space<vmem>>, %arg6: memref<4x8x32xbf16, #tpu.memory_space<vmem>>, %arg7: memref<1x32xf32, #tpu.memory_space<vmem>>, %arg8: memref<1x32xf32, #tpu.memory_space<vmem>>, %arg9: memref<1x32xf32, #tpu.memory_space<vmem>>, %arg10: memref<32x64xbf16, #tpu.memory_space<vmem>>, %arg11: memref<1x64xf32, #tpu.memory_space<vmem>>, %arg12: memref<64x32xbf16, #tpu.memory_space<vmem>>, %arg13: memref<1x32xf32, #tpu.memory_space<vmem>>, %arg14: memref<1x8x32xf32, #tpu.memory_space<vmem>>, %arg15: memref<8x32xf32, #tpu.memory_space<vmem>>) attributes {dimension_semantics = [#tpu.dimension_semantics<parallel>], iteration_bounds = array<i64: 2>, scalar_prefetch = 0 : i64, scratch_operands = 1 : i64, tpu.core_type = #tpu.core_type<tc>, window_params = [{transform_indices = @transform_0, window_bounds = array<i64: 1, 8, 32>}, {pipeline_mode = #tpu.pipeline_mode<synchronous>, transform_indices = @transform_1, window_bounds = array<i64: 1, 32>}, {pipeline_mode = #tpu.pipeline_mode<synchronous>, transform_indices = @transform_2, window_bounds = array<i64: 1, 32>}, {pipeline_mode = #tpu.pipeline_mode<synchronous>, transform_indices = @transform_3, window_bounds = array<i64: 32, 96>}, {pipeline_mode = #tpu.pipeline_mode<synchronous>, transform_indices = @transform_4, window_bounds = array<i64: 1, 96>}, {pipeline_mode = #tpu.pipeline_mode<synchronous>, transform_indices = @transform_5, window_bounds = array<i64: 4, 8, 32>}, {pipeline_mode = #tpu.pipeline_mode<synchronous>, transform_indices = @transform_6, window_bounds = array<i64: 1, 32>}, {pipeline_mode = #tpu.pipeline_mode<synchronous>, transform_indices = @transform_7, window_bounds = array<i64: 1, 32>}, {pipeline_mode = #tpu.pipeline_mode<synchronous>, transform_indices = @transform_8, window_bounds = array<i64: 1, 32>}, {pipeline_mode = #tpu.pipeline_mode<synchronous>, transform_indices = @transform_9, window_bounds = array<i64: 32, 64>}, {pipeline_mode = #tpu.pipeline_mode<synchronous>, transform_indices = @transform_10, window_bounds = array<i64: 1, 64>}, {pipeline_mode = #tpu.pipeline_mode<synchronous>, transform_indices = @transform_11, window_bounds = array<i64: 64, 32>}, {pipeline_mode = #tpu.pipeline_mode<synchronous>, transform_indices = @transform_12, window_bounds = array<i64: 1, 32>}, {transform_indices = @transform_13, window_bounds = array<i64: 1, 8, 32>}]} {
    %c0 = arith.constant 0 : index
    %c0_0 = arith.constant 0 : index
    %c0_1 = arith.constant 0 : index
    %0 = vector.load %arg1[%c0, %c0_0, %c0_1] : memref<1x8x32xf32, #tpu.memory_space<vmem>>, vector<1x8x32xf32>
    %1 = vector.shape_cast %0 : vector<1x8x32xf32> to vector<8x32xf32>
    %c0_2 = arith.constant 0 : index
    %c0_3 = arith.constant 0 : index
    %2 = vector.load %arg2[%c0_2, %c0_3] : memref<1x32xf32, #tpu.memory_space<vmem>>, vector<1x32xf32>
    %c0_4 = arith.constant 0 : index
    %c0_5 = arith.constant 0 : index
    %3 = vector.load %arg3[%c0_4, %c0_5] : memref<1x32xf32, #tpu.memory_space<vmem>>, vector<1x32xf32>
    %cst = arith.constant dense<0.000000e+00> : vector<8xf32>
    %4 = vector.multi_reduction <add>, %1, %cst [1] : vector<8x32xf32> to vector<8xf32>
    %5 = vector.shape_cast %4 : vector<8xf32> to vector<8x1xf32>
    %cst_6 = arith.constant 3.200000e+01 : f32
    %6 = vector.broadcast %cst_6 : f32 to vector<8x1xf32>
    %7 = arith.divf %5, %6 : vector<8x1xf32>
    %8 = vector.broadcast %7 : vector<8x1xf32> to vector<8x32xf32>
    %9 = arith.subf %1, %8 : vector<8x32xf32>
    %10 = arith.mulf %9, %9 : vector<8x32xf32>
    %cst_7 = arith.constant dense<0.000000e+00> : vector<8xf32>
    %11 = vector.multi_reduction <add>, %10, %cst_7 [1] : vector<8x32xf32> to vector<8xf32>
    %12 = vector.shape_cast %11 : vector<8xf32> to vector<8x1xf32>
    %cst_8 = arith.constant 3.200000e+01 : f32
    %13 = vector.broadcast %cst_8 : f32 to vector<8x1xf32>
    %14 = arith.divf %12, %13 : vector<8x1xf32>
    %15 = vector.broadcast %7 : vector<8x1xf32> to vector<8x32xf32>
    %16 = arith.subf %1, %15 : vector<8x32xf32>
    %cst_9 = arith.constant 9.99999974E-6 : f32
    %17 = vector.broadcast %cst_9 : f32 to vector<8x1xf32>
    %18 = arith.addf %14, %17 : vector<8x1xf32>
    %19 = math.rsqrt %18 : vector<8x1xf32>
    %20 = vector.broadcast %19 : vector<8x1xf32> to vector<8x32xf32>
    %21 = arith.mulf %16, %20 : vector<8x32xf32>
    %22 = vector.broadcast %2 : vector<1x32xf32> to vector<8x32xf32>
    %23 = arith.mulf %21, %22 : vector<8x32xf32>
    %24 = vector.broadcast %3 : vector<1x32xf32> to vector<8x32xf32>
    %25 = arith.addf %23, %24 : vector<8x32xf32>
    %c0_10 = arith.constant 0 : index
    %c0_11 = arith.constant 0 : index
    %26 = vector.load %arg4[%c0_10, %c0_11] : memref<32x96xbf16, #tpu.memory_space<vmem>>, vector<32x96xbf16>
    %27 = arith.truncf %25 : vector<8x32xf32> to vector<8x32xbf16>
    %cst_12 = arith.constant dense<0.000000e+00> : vector<8x96xf32>
    %28 = tpu.matmul %27, %26, %cst_12 {dimension_numbers = #tpu.dot_dimension_numbers<[1], [0], [0], [1], [0, 0, 1, 1], [], []>} : vector<8x32xbf16>, vector<32x96xbf16>, vector<8x96xf32> -> vector<8x96xf32>
    %c0_13 = arith.constant 0 : index
    %c0_14 = arith.constant 0 : index
    %29 = vector.load %arg5[%c0_13, %c0_14] : memref<1x96xf32, #tpu.memory_space<vmem>>, vector<1x96xf32>
    %30 = vector.broadcast %29 : vector<1x96xf32> to vector<8x96xf32>
    %31 = arith.addf %28, %30 : vector<8x96xf32>
    %cst_15 = arith.constant 0.000000e+00 : f32
    %32 = vector.broadcast %cst_15 : f32 to vector<8x32xf32>
    %c0_16 = arith.constant 0 : index
    %c0_17 = arith.constant 0 : index
    %33 = vector.load %arg15[%c0_16, %c0_17] : memref<8x32xf32, #tpu.memory_space<vmem>>, vector<8x32xf32>
    tpu.vector_store %arg15[%c0_16, %c0_17], %32 {strides = array<i32>} : memref<8x32xf32, #tpu.memory_space<vmem>>, vector<8x32xf32>,
    %34 = vector.extract_strided_slice %31 {offsets = [0, 0], sizes = [8, 8], strides = [1, 1]} : vector<8x96xf32> to vector<8x8xf32>
    %35 = vector.shape_cast %34 : vector<8x8xf32> to vector<1x8x8xf32>
    %36 = vector.extract_strided_slice %31 {offsets = [0, 32], sizes = [8, 8], strides = [1, 1]} : vector<8x96xf32> to vector<8x8xf32>
    %37 = vector.shape_cast %36 : vector<8x8xf32> to vector<1x8x8xf32>
    %38 = vector.extract_strided_slice %31 {offsets = [0, 64], sizes = [8, 8], strides = [1, 1]} : vector<8x96xf32> to vector<8x8xf32>
    %39 = vector.shape_cast %38 : vector<8x8xf32> to vector<1x8x8xf32>
    %40 = arith.truncf %35 : vector<1x8x8xf32> to vector<1x8x8xbf16>
    %41 = arith.truncf %37 : vector<1x8x8xf32> to vector<1x8x8xbf16>
    "tpu.trace_start"() <{level = 10 : i32, message = "bqd,bkd->bqk"}> : () -> ()
    %cst_18 = arith.constant dense<0.000000e+00> : vector<1x8x8xf32>
    %42 = tpu.matmul %40, %41, %cst_18 {dimension_numbers = #tpu.dot_dimension_numbers<[2], [2], [1], [1], [0, 0, 0, 1, 1, 1], [0], [0]>} : vector<1x8x8xbf16>, vector<1x8x8xbf16>, vector<1x8x8xf32> -> vector<1x8x8xf32>
    "tpu.trace_stop"() : () -> ()
    %cst_19 = arith.constant dense<0xFF800000> : vector<1x8xf32>
    %43 = vector.multi_reduction <maximumf>, %42, %cst_19 [2] : vector<1x8x8xf32> to vector<1x8xf32>
    %44 = vector.shape_cast %43 : vector<1x8xf32> to vector<1x8x1xf32>
    %45 = vector.broadcast %44 : vector<1x8x1xf32> to vector<1x8x8xf32>
    %46 = arith.subf %42, %45 : vector<1x8x8xf32>
    %47 = math.exp %46 : vector<1x8x8xf32>
    %cst_20 = arith.constant dense<0.000000e+00> : vector<1x8xf32>
    %48 = vector.multi_reduction <add>, %47, %cst_20 [2] : vector<1x8x8xf32> to vector<1x8xf32>
    %49 = vector.shape_cast %48 : vector<1x8xf32> to vector<1x8x1xf32>
    %50 = tpu.reciprocal %49 {approx = true} : vector<1x8x1xf32> -> vector<1x8x1xf32>
    %51 = vector.broadcast %50 : vector<1x8x1xf32> to vector<1x8x8xf32>
    %52 = arith.mulf %47, %51 : vector<1x8x8xf32>
    %53 = arith.truncf %52 : vector<1x8x8xf32> to vector<1x8x8xbf16>
    %54 = arith.truncf %39 : vector<1x8x8xf32> to vector<1x8x8xbf16>
    "tpu.trace_start"() <{level = 10 : i32, message = "bqk,bkd->bqd"}> : () -> ()
    %cst_21 = arith.constant dense<0.000000e+00> : vector<1x8x8xf32>
    %55 = tpu.matmul %53, %54, %cst_21 {dimension_numbers = #tpu.dot_dimension_numbers<[2], [1], [1], [2], [0, 0, 0, 1, 1, 2], [0], [0]>} : vector<1x8x8xbf16>, vector<1x8x8xbf16>, vector<1x8x8xf32> -> vector<1x8x8xf32>
    "tpu.trace_stop"() : () -> ()
    %c0_22 = arith.constant 0 : index
    %c0_23 = arith.constant 0 : index
    %56 = vector.load %arg15[%c0_22, %c0_23] : memref<8x32xf32, #tpu.memory_space<vmem>>, vector<8x32xf32>
    %57 = vector.shape_cast %55 : vector<1x8x8xf32> to vector<8x8xf32>
    %c0_24 = arith.constant 0 : index
    %c0_25 = arith.constant 0 : index
    %c0_26 = arith.constant 0 : index
    %58 = vector.load %arg6[%c0_24, %c0_25, %c0_26] : memref<4x8x32xbf16, #tpu.memory_space<vmem>>, vector<1x8x32xbf16>
    %59 = vector.shape_cast %58 : vector<1x8x32xbf16> to vector<8x32xbf16>
    %60 = arith.truncf %57 : vector<8x8xf32> to vector<8x8xbf16>
    %cst_27 = arith.constant dense<0.000000e+00> : vector<8x32xf32>
    %61 = tpu.matmul %60, %59, %cst_27 {dimension_numbers = #tpu.dot_dimension_numbers<[1], [0], [0], [1], [0, 0, 1, 1], [], []>} : vector<8x8xbf16>, vector<8x32xbf16>, vector<8x32xf32> -> vector<8x32xf32>
    %62 = arith.addf %56, %61 : vector<8x32xf32>
    %c0_28 = arith.constant 0 : index
    %c0_29 = arith.constant 0 : index
    %63 = vector.load %arg15[%c0_28, %c0_29] : memref<8x32xf32, #tpu.memory_space<vmem>>, vector<8x32xf32>
    tpu.vector_store %arg15[%c0_28, %c0_29], %62 {strides = array<i32>} : memref<8x32xf32, #tpu.memory_space<vmem>>, vector<8x32xf32>,
    %64 = vector.extract_strided_slice %31 {offsets = [0, 8], sizes = [8, 8], strides = [1, 1]} : vector<8x96xf32> to vector<8x8xf32>
    %65 = vector.shape_cast %64 : vector<8x8xf32> to vector<1x8x8xf32>
    %66 = vector.extract_strided_slice %31 {offsets = [0, 40], sizes = [8, 8], strides = [1, 1]} : vector<8x96xf32> to vector<8x8xf32>
    %67 = vector.shape_cast %66 : vector<8x8xf32> to vector<1x8x8xf32>
    %68 = vector.extract_strided_slice %31 {offsets = [0, 72], sizes = [8, 8], strides = [1, 1]} : vector<8x96xf32> to vector<8x8xf32>
    %69 = vector.shape_cast %68 : vector<8x8xf32> to vector<1x8x8xf32>
    %70 = arith.truncf %65 : vector<1x8x8xf32> to vector<1x8x8xbf16>
    %71 = arith.truncf %67 : vector<1x8x8xf32> to vector<1x8x8xbf16>
    "tpu.trace_start"() <{level = 10 : i32, message = "bqd,bkd->bqk"}> : () -> ()
    %cst_30 = arith.constant dense<0.000000e+00> : vector<1x8x8xf32>
    %72 = tpu.matmul %70, %71, %cst_30 {dimension_numbers = #tpu.dot_dimension_numbers<[2], [2], [1], [1], [0, 0, 0, 1, 1, 1], [0], [0]>} : vector<1x8x8xbf16>, vector<1x8x8xbf16>, vector<1x8x8xf32> -> vector<1x8x8xf32>
    "tpu.trace_stop"() : () -> ()
    %cst_31 = arith.constant dense<0xFF800000> : vector<1x8xf32>
    %73 = vector.multi_reduction <maximumf>, %72, %cst_31 [2] : vector<1x8x8xf32> to vector<1x8xf32>
    %74 = vector.shape_cast %73 : vector<1x8xf32> to vector<1x8x1xf32>
    %75 = vector.broadcast %74 : vector<1x8x1xf32> to vector<1x8x8xf32>
    %76 = arith.subf %72, %75 : vector<1x8x8xf32>
    %77 = math.exp %76 : vector<1x8x8xf32>
    %cst_32 = arith.constant dense<0.000000e+00> : vector<1x8xf32>
    %78 = vector.multi_reduction <add>, %77, %cst_32 [2] : vector<1x8x8xf32> to vector<1x8xf32>
    %79 = vector.shape_cast %78 : vector<1x8xf32> to vector<1x8x1xf32>
    %80 = tpu.reciprocal %79 {approx = true} : vector<1x8x1xf32> -> vector<1x8x1xf32>
    %81 = vector.broadcast %80 : vector<1x8x1xf32> to vector<1x8x8xf32>
    %82 = arith.mulf %77, %81 : vector<1x8x8xf32>
    %83 = arith.truncf %82 : vector<1x8x8xf32> to vector<1x8x8xbf16>
    %84 = arith.truncf %69 : vector<1x8x8xf32> to vector<1x8x8xbf16>
    "tpu.trace_start"() <{level = 10 : i32, message = "bqk,bkd->bqd"}> : () -> ()
    %cst_33 = arith.constant dense<0.000000e+00> : vector<1x8x8xf32>
    %85 = tpu.matmul %83, %84, %cst_33 {dimension_numbers = #tpu.dot_dimension_numbers<[2], [1], [1], [2], [0, 0, 0, 1, 1, 2], [0], [0]>} : vector<1x8x8xbf16>, vector<1x8x8xbf16>, vector<1x8x8xf32> -> vector<1x8x8xf32>
    "tpu.trace_stop"() : () -> ()
    %c0_34 = arith.constant 0 : index
    %c0_35 = arith.constant 0 : index
    %86 = vector.load %arg15[%c0_34, %c0_35] : memref<8x32xf32, #tpu.memory_space<vmem>>, vector<8x32xf32>
    %87 = vector.shape_cast %85 : vector<1x8x8xf32> to vector<8x8xf32>
    %c1 = arith.constant 1 : index
    %c0_36 = arith.constant 0 : index
    %c0_37 = arith.constant 0 : index
    %88 = vector.load %arg6[%c1, %c0_36, %c0_37] : memref<4x8x32xbf16, #tpu.memory_space<vmem>>, vector<1x8x32xbf16>
    %89 = vector.shape_cast %88 : vector<1x8x32xbf16> to vector<8x32xbf16>
    %90 = arith.truncf %87 : vector<8x8xf32> to vector<8x8xbf16>
    %cst_38 = arith.constant dense<0.000000e+00> : vector<8x32xf32>
    %91 = tpu.matmul %90, %89, %cst_38 {dimension_numbers = #tpu.dot_dimension_numbers<[1], [0], [0], [1], [0, 0, 1, 1], [], []>} : vector<8x8xbf16>, vector<8x32xbf16>, vector<8x32xf32> -> vector<8x32xf32>
    %92 = arith.addf %86, %91 : vector<8x32xf32>
    %c0_39 = arith.constant 0 : index
    %c0_40 = arith.constant 0 : index
    %93 = vector.load %arg15[%c0_39, %c0_40] : memref<8x32xf32, #tpu.memory_space<vmem>>, vector<8x32xf32>
    tpu.vector_store %arg15[%c0_39, %c0_40], %92 {strides = array<i32>} : memref<8x32xf32, #tpu.memory_space<vmem>>, vector<8x32xf32>,
    %94 = vector.extract_strided_slice %31 {offsets = [0, 16], sizes = [8, 8], strides = [1, 1]} : vector<8x96xf32> to vector<8x8xf32>
    %95 = vector.shape_cast %94 : vector<8x8xf32> to vector<1x8x8xf32>
    %96 = vector.extract_strided_slice %31 {offsets = [0, 48], sizes = [8, 8], strides = [1, 1]} : vector<8x96xf32> to vector<8x8xf32>
    %97 = vector.shape_cast %96 : vector<8x8xf32> to vector<1x8x8xf32>
    %98 = vector.extract_strided_slice %31 {offsets = [0, 80], sizes = [8, 8], strides = [1, 1]} : vector<8x96xf32> to vector<8x8xf32>
    %99 = vector.shape_cast %98 : vector<8x8xf32> to vector<1x8x8xf32>
    %100 = arith.truncf %95 : vector<1x8x8xf32> to vector<1x8x8xbf16>
    %101 = arith.truncf %97 : vector<1x8x8xf32> to vector<1x8x8xbf16>
    "tpu.trace_start"() <{level = 10 : i32, message = "bqd,bkd->bqk"}> : () -> ()
    %cst_41 = arith.constant dense<0.000000e+00> : vector<1x8x8xf32>
    %102 = tpu.matmul %100, %101, %cst_41 {dimension_numbers = #tpu.dot_dimension_numbers<[2], [2], [1], [1], [0, 0, 0, 1, 1, 1], [0], [0]>} : vector<1x8x8xbf16>, vector<1x8x8xbf16>, vector<1x8x8xf32> -> vector<1x8x8xf32>
    "tpu.trace_stop"() : () -> ()
    %cst_42 = arith.constant dense<0xFF800000> : vector<1x8xf32>
    %103 = vector.multi_reduction <maximumf>, %102, %cst_42 [2] : vector<1x8x8xf32> to vector<1x8xf32>
    %104 = vector.shape_cast %103 : vector<1x8xf32> to vector<1x8x1xf32>
    %105 = vector.broadcast %104 : vector<1x8x1xf32> to vector<1x8x8xf32>
    %106 = arith.subf %102, %105 : vector<1x8x8xf32>
    %107 = math.exp %106 : vector<1x8x8xf32>
    %cst_43 = arith.constant dense<0.000000e+00> : vector<1x8xf32>
    %108 = vector.multi_reduction <add>, %107, %cst_43 [2] : vector<1x8x8xf32> to vector<1x8xf32>
    %109 = vector.shape_cast %108 : vector<1x8xf32> to vector<1x8x1xf32>
    %110 = tpu.reciprocal %109 {approx = true} : vector<1x8x1xf32> -> vector<1x8x1xf32>
    %111 = vector.broadcast %110 : vector<1x8x1xf32> to vector<1x8x8xf32>
    %112 = arith.mulf %107, %111 : vector<1x8x8xf32>
    %113 = arith.truncf %112 : vector<1x8x8xf32> to vector<1x8x8xbf16>
    %114 = arith.truncf %99 : vector<1x8x8xf32> to vector<1x8x8xbf16>
    "tpu.trace_start"() <{level = 10 : i32, message = "bqk,bkd->bqd"}> : () -> ()
    %cst_44 = arith.constant dense<0.000000e+00> : vector<1x8x8xf32>
    %115 = tpu.matmul %113, %114, %cst_44 {dimension_numbers = #tpu.dot_dimension_numbers<[2], [1], [1], [2], [0, 0, 0, 1, 1, 2], [0], [0]>} : vector<1x8x8xbf16>, vector<1x8x8xbf16>, vector<1x8x8xf32> -> vector<1x8x8xf32>
    "tpu.trace_stop"() : () -> ()
    %c0_45 = arith.constant 0 : index
    %c0_46 = arith.constant 0 : index
    %116 = vector.load %arg15[%c0_45, %c0_46] : memref<8x32xf32, #tpu.memory_space<vmem>>, vector<8x32xf32>
    %117 = vector.shape_cast %115 : vector<1x8x8xf32> to vector<8x8xf32>
    %c2 = arith.constant 2 : index
    %c0_47 = arith.constant 0 : index
    %c0_48 = arith.constant 0 : index
    %118 = vector.load %arg6[%c2, %c0_47, %c0_48] : memref<4x8x32xbf16, #tpu.memory_space<vmem>>, vector<1x8x32xbf16>
    %119 = vector.shape_cast %118 : vector<1x8x32xbf16> to vector<8x32xbf16>
    %120 = arith.truncf %117 : vector<8x8xf32> to vector<8x8xbf16>
    %cst_49 = arith.constant dense<0.000000e+00> : vector<8x32xf32>
    %121 = tpu.matmul %120, %119, %cst_49 {dimension_numbers = #tpu.dot_dimension_numbers<[1], [0], [0], [1], [0, 0, 1, 1], [], []>} : vector<8x8xbf16>, vector<8x32xbf16>, vector<8x32xf32> -> vector<8x32xf32>
    %122 = arith.addf %116, %121 : vector<8x32xf32>
    %c0_50 = arith.constant 0 : index
    %c0_51 = arith.constant 0 : index
    %123 = vector.load %arg15[%c0_50, %c0_51] : memref<8x32xf32, #tpu.memory_space<vmem>>, vector<8x32xf32>
    tpu.vector_store %arg15[%c0_50, %c0_51], %122 {strides = array<i32>} : memref<8x32xf32, #tpu.memory_space<vmem>>, vector<8x32xf32>,
    %124 = vector.extract_strided_slice %31 {offsets = [0, 24], sizes = [8, 8], strides = [1, 1]} : vector<8x96xf32> to vector<8x8xf32>
    %125 = vector.shape_cast %124 : vector<8x8xf32> to vector<1x8x8xf32>
    %126 = vector.extract_strided_slice %31 {offsets = [0, 56], sizes = [8, 8], strides = [1, 1]} : vector<8x96xf32> to vector<8x8xf32>
    %127 = vector.shape_cast %126 : vector<8x8xf32> to vector<1x8x8xf32>
    %128 = vector.extract_strided_slice %31 {offsets = [0, 88], sizes = [8, 8], strides = [1, 1]} : vector<8x96xf32> to vector<8x8xf32>
    %129 = vector.shape_cast %128 : vector<8x8xf32> to vector<1x8x8xf32>
    %130 = arith.truncf %125 : vector<1x8x8xf32> to vector<1x8x8xbf16>
    %131 = arith.truncf %127 : vector<1x8x8xf32> to vector<1x8x8xbf16>
    "tpu.trace_start"() <{level = 10 : i32, message = "bqd,bkd->bqk"}> : () -> ()
    %cst_52 = arith.constant dense<0.000000e+00> : vector<1x8x8xf32>
    %132 = tpu.matmul %130, %131, %cst_52 {dimension_numbers = #tpu.dot_dimension_numbers<[2], [2], [1], [1], [0, 0, 0, 1, 1, 1], [0], [0]>} : vector<1x8x8xbf16>, vector<1x8x8xbf16>, vector<1x8x8xf32> -> vector<1x8x8xf32>
    "tpu.trace_stop"() : () -> ()
    %cst_53 = arith.constant dense<0xFF800000> : vector<1x8xf32>
    %133 = vector.multi_reduction <maximumf>, %132, %cst_53 [2] : vector<1x8x8xf32> to vector<1x8xf32>
    %134 = vector.shape_cast %133 : vector<1x8xf32> to vector<1x8x1xf32>
    %135 = vector.broadcast %134 : vector<1x8x1xf32> to vector<1x8x8xf32>
    %136 = arith.subf %132, %135 : vector<1x8x8xf32>
    %137 = math.exp %136 : vector<1x8x8xf32>
    %cst_54 = arith.constant dense<0.000000e+00> : vector<1x8xf32>
    %138 = vector.multi_reduction <add>, %137, %cst_54 [2] : vector<1x8x8xf32> to vector<1x8xf32>
    %139 = vector.shape_cast %138 : vector<1x8xf32> to vector<1x8x1xf32>
    %140 = tpu.reciprocal %139 {approx = true} : vector<1x8x1xf32> -> vector<1x8x1xf32>
    %141 = vector.broadcast %140 : vector<1x8x1xf32> to vector<1x8x8xf32>
    %142 = arith.mulf %137, %141 : vector<1x8x8xf32>
    %143 = arith.truncf %142 : vector<1x8x8xf32> to vector<1x8x8xbf16>
    %144 = arith.truncf %129 : vector<1x8x8xf32> to vector<1x8x8xbf16>
    "tpu.trace_start"() <{level = 10 : i32, message = "bqk,bkd->bqd"}> : () -> ()
    %cst_55 = arith.constant dense<0.000000e+00> : vector<1x8x8xf32>
    %145 = tpu.matmul %143, %144, %cst_55 {dimension_numbers = #tpu.dot_dimension_numbers<[2], [1], [1], [2], [0, 0, 0, 1, 1, 2], [0], [0]>} : vector<1x8x8xbf16>, vector<1x8x8xbf16>, vector<1x8x8xf32> -> vector<1x8x8xf32>
    "tpu.trace_stop"() : () -> ()
    %c0_56 = arith.constant 0 : index
    %c0_57 = arith.constant 0 : index
    %146 = vector.load %arg15[%c0_56, %c0_57] : memref<8x32xf32, #tpu.memory_space<vmem>>, vector<8x32xf32>
    %147 = vector.shape_cast %145 : vector<1x8x8xf32> to vector<8x8xf32>
    %c3 = arith.constant 3 : index
    %c0_58 = arith.constant 0 : index
    %c0_59 = arith.constant 0 : index
    %148 = vector.load %arg6[%c3, %c0_58, %c0_59] : memref<4x8x32xbf16, #tpu.memory_space<vmem>>, vector<1x8x32xbf16>
    %149 = vector.shape_cast %148 : vector<1x8x32xbf16> to vector<8x32xbf16>
    %150 = arith.truncf %147 : vector<8x8xf32> to vector<8x8xbf16>
    %cst_60 = arith.constant dense<0.000000e+00> : vector<8x32xf32>
    %151 = tpu.matmul %150, %149, %cst_60 {dimension_numbers = #tpu.dot_dimension_numbers<[1], [0], [0], [1], [0, 0, 1, 1], [], []>} : vector<8x8xbf16>, vector<8x32xbf16>, vector<8x32xf32> -> vector<8x32xf32>
    %152 = arith.addf %146, %151 : vector<8x32xf32>
    %c0_61 = arith.constant 0 : index
    %c0_62 = arith.constant 0 : index
    %153 = vector.load %arg15[%c0_61, %c0_62] : memref<8x32xf32, #tpu.memory_space<vmem>>, vector<8x32xf32>
    tpu.vector_store %arg15[%c0_61, %c0_62], %152 {strides = array<i32>} : memref<8x32xf32, #tpu.memory_space<vmem>>, vector<8x32xf32>,
    %c0_63 = arith.constant 0 : index
    %c0_64 = arith.constant 0 : index
    %154 = vector.load %arg15[%c0_63, %c0_64] : memref<8x32xf32, #tpu.memory_space<vmem>>, vector<8x32xf32>
    %155 = arith.addf %1, %154 : vector<8x32xf32>
    %c0_65 = arith.constant 0 : index
    %c0_66 = arith.constant 0 : index
    %156 = vector.load %arg7[%c0_65, %c0_66] : memref<1x32xf32, #tpu.memory_space<vmem>>, vector<1x32xf32>
    %157 = vector.broadcast %156 : vector<1x32xf32> to vector<8x32xf32>
    %158 = arith.addf %155, %157 : vector<8x32xf32>
    %c0_67 = arith.constant 0 : index
    %c0_68 = arith.constant 0 : index
    %159 = vector.load %arg8[%c0_67, %c0_68] : memref<1x32xf32, #tpu.memory_space<vmem>>, vector<1x32xf32>
    %c0_69 = arith.constant 0 : index
    %c0_70 = arith.constant 0 : index
    %160 = vector.load %arg9[%c0_69, %c0_70] : memref<1x32xf32, #tpu.memory_space<vmem>>, vector<1x32xf32>
    %cst_71 = arith.constant dense<0.000000e+00> : vector<8xf32>
    %161 = vector.multi_reduction <add>, %158, %cst_71 [1] : vector<8x32xf32> to vector<8xf32>
    %162 = vector.shape_cast %161 : vector<8xf32> to vector<8x1xf32>
    %cst_72 = arith.constant 3.200000e+01 : f32
    %163 = vector.broadcast %cst_72 : f32 to vector<8x1xf32>
    %164 = arith.divf %162, %163 : vector<8x1xf32>
    %165 = vector.broadcast %164 : vector<8x1xf32> to vector<8x32xf32>
    %166 = arith.subf %158, %165 : vector<8x32xf32>
    %167 = arith.mulf %166, %166 : vector<8x32xf32>
    %cst_73 = arith.constant dense<0.000000e+00> : vector<8xf32>
    %168 = vector.multi_reduction <add>, %167, %cst_73 [1] : vector<8x32xf32> to vector<8xf32>
    %169 = vector.shape_cast %168 : vector<8xf32> to vector<8x1xf32>
    %cst_74 = arith.constant 3.200000e+01 : f32
    %170 = vector.broadcast %cst_74 : f32 to vector<8x1xf32>
    %171 = arith.divf %169, %170 : vector<8x1xf32>
    %172 = vector.broadcast %164 : vector<8x1xf32> to vector<8x32xf32>
    %173 = arith.subf %158, %172 : vector<8x32xf32>
    %cst_75 = arith.constant 9.99999974E-6 : f32
    %174 = vector.broadcast %cst_75 : f32 to vector<8x1xf32>
    %175 = arith.addf %171, %174 : vector<8x1xf32>
    %176 = math.rsqrt %175 : vector<8x1xf32>
    %177 = vector.broadcast %176 : vector<8x1xf32> to vector<8x32xf32>
    %178 = arith.mulf %173, %177 : vector<8x32xf32>
    %179 = vector.broadcast %159 : vector<1x32xf32> to vector<8x32xf32>
    %180 = arith.mulf %178, %179 : vector<8x32xf32>
    %181 = vector.broadcast %160 : vector<1x32xf32> to vector<8x32xf32>
    %182 = arith.addf %180, %181 : vector<8x32xf32>
    %c0_76 = arith.constant 0 : index
    %c0_77 = arith.constant 0 : index
    %183 = vector.load %arg10[%c0_76, %c0_77] : memref<32x64xbf16, #tpu.memory_space<vmem>>, vector<32x64xbf16>
    %184 = arith.truncf %182 : vector<8x32xf32> to vector<8x32xbf16>
    %cst_78 = arith.constant dense<0.000000e+00> : vector<8x64xf32>
    %185 = tpu.matmul %184, %183, %cst_78 {dimension_numbers = #tpu.dot_dimension_numbers<[1], [0], [0], [1], [0, 0, 1, 1], [], []>} : vector<8x32xbf16>, vector<32x64xbf16>, vector<8x64xf32> -> vector<8x64xf32>
    %c0_79 = arith.constant 0 : index
    %c0_80 = arith.constant 0 : index
    %186 = vector.load %arg11[%c0_79, %c0_80] : memref<1x64xf32, #tpu.memory_space<vmem>>, vector<1x64xf32>
    %187 = vector.broadcast %186 : vector<1x64xf32> to vector<8x64xf32>
    %188 = arith.addf %185, %187 : vector<8x64xf32>
    %cst_81 = arith.constant 0.000000e+00 : f32
    %189 = vector.broadcast %cst_81 : f32 to vector<8x64xf32>
    %190 = arith.maximumf %188, %189 : vector<8x64xf32>
    %c0_82 = arith.constant 0 : index
    %c0_83 = arith.constant 0 : index
    %191 = vector.load %arg12[%c0_82, %c0_83] : memref<64x32xbf16, #tpu.memory_space<vmem>>, vector<64x32xbf16>
    %192 = arith.truncf %190 : vector<8x64xf32> to vector<8x64xbf16>
    %cst_84 = arith.constant dense<0.000000e+00> : vector<8x32xf32>
    %193 = tpu.matmul %192, %191, %cst_84 {dimension_numbers = #tpu.dot_dimension_numbers<[1], [0], [0], [1], [0, 0, 1, 1], [], []>} : vector<8x64xbf16>, vector<64x32xbf16>, vector<8x32xf32> -> vector<8x32xf32>
    %c0_85 = arith.constant 0 : index
    %c0_86 = arith.constant 0 : index
    %194 = vector.load %arg13[%c0_85, %c0_86] : memref<1x32xf32, #tpu.memory_space<vmem>>, vector<1x32xf32>
    %195 = vector.broadcast %194 : vector<1x32xf32> to vector<8x32xf32>
    %196 = arith.addf %193, %195 : vector<8x32xf32>
    %197 = arith.addf %158, %196 : vector<8x32xf32>
    %198 = vector.shape_cast %197 : vector<8x32xf32> to vector<1x8x32xf32>
    %c0_87 = arith.constant 0 : index
    %c0_88 = arith.constant 0 : index
    %c0_89 = arith.constant 0 : index
    %199 = vector.load %arg14[%c0_87, %c0_88, %c0_89] : memref<1x8x32xf32, #tpu.memory_space<vmem>>, vector<1x8x32xf32>
    tpu.vector_store %arg14[%c0_87, %c0_88, %c0_89], %198 {strides = array<i32>} : memref<1x8x32xf32, #tpu.memory_space<vmem>>, vector<1x8x32xf32>,
    return
  }
  func.func @transform_0(%arg0: i32) -> (i32, i32, i32) {
    %c0_i32 = arith.constant 0 : i32
    %c0_i32_0 = arith.constant 0 : i32
    %c0_i32_1 = arith.constant 0 : i32
    return %arg0, %c0_i32, %c0_i32_0 : i32, i32, i32
  }
  func.func @transform_1(%arg0: i32) -> (i32, i32) {
    %c0_i32 = arith.constant 0 : i32
    %c0_i32_0 = arith.constant 0 : i32
    %c0_i32_1 = arith.constant 0 : i32
    return %c0_i32, %c0_i32_0 : i32, i32
  }
  func.func @transform_2(%arg0: i32) -> (i32, i32) {
    %c0_i32 = arith.constant 0 : i32
    %c0_i32_0 = arith.constant 0 : i32
    %c0_i32_1 = arith.constant 0 : i32
    return %c0_i32, %c0_i32_0 : i32, i32
  }
  func.func @transform_3(%arg0: i32) -> (i32, i32) {
    %c0_i32 = arith.constant 0 : i32
    %c0_i32_0 = arith.constant 0 : i32
    %c0_i32_1 = arith.constant 0 : i32
    return %c0_i32, %c0_i32_0 : i32, i32
  }
  func.func @transform_4(%arg0: i32) -> (i32, i32) {
    %c0_i32 = arith.constant 0 : i32
    %c0_i32_0 = arith.constant 0 : i32
    %c0_i32_1 = arith.constant 0 : i32
    return %c0_i32, %c0_i32_0 : i32, i32
  }
  func.func @transform_5(%arg0: i32) -> (i32, i32, i32) {
    %c0_i32 = arith.constant 0 : i32
    %c0_i32_0 = arith.constant 0 : i32
    %c0_i32_1 = arith.constant 0 : i32
    %c0_i32_2 = arith.constant 0 : i32
    return %c0_i32, %c0_i32_0, %c0_i32_1 : i32, i32, i32
  }
  func.func @transform_6(%arg0: i32) -> (i32, i32) {
    %c0_i32 = arith.constant 0 : i32
    %c0_i32_0 = arith.constant 0 : i32
    %c0_i32_1 = arith.constant 0 : i32
    return %c0_i32, %c0_i32_0 : i32, i32
  }
  func.func @transform_7(%arg0: i32) -> (i32, i32) {
    %c0_i32 = arith.constant 0 : i32
    %c0_i32_0 = arith.constant 0 : i32
    %c0_i32_1 = arith.constant 0 : i32
    return %c0_i32, %c0_i32_0 : i32, i32
  }
  func.func @transform_8(%arg0: i32) -> (i32, i32) {
    %c0_i32 = arith.constant 0 : i32
    %c0_i32_0 = arith.constant 0 : i32
    %c0_i32_1 = arith.constant 0 : i32
    return %c0_i32, %c0_i32_0 : i32, i32
  }
  func.func @transform_9(%arg0: i32) -> (i32, i32) {
    %c0_i32 = arith.constant 0 : i32
    %c0_i32_0 = arith.constant 0 : i32
    %c0_i32_1 = arith.constant 0 : i32
    return %c0_i32, %c0_i32_0 : i32, i32
  }
  func.func @transform_10(%arg0: i32) -> (i32, i32) {
    %c0_i32 = arith.constant 0 : i32
    %c0_i32_0 = arith.constant 0 : i32
    %c0_i32_1 = arith.constant 0 : i32
    return %c0_i32, %c0_i32_0 : i32, i32
  }
  func.func @transform_11(%arg0: i32) -> (i32, i32) {
    %c0_i32 = arith.constant 0 : i32
    %c0_i32_0 = arith.constant 0 : i32
    %c0_i32_1 = arith.constant 0 : i32
    return %c0_i32, %c0_i32_0 : i32, i32
  }
  func.func @transform_12(%arg0: i32) -> (i32, i32) {
    %c0_i32 = arith.constant 0 : i32
    %c0_i32_0 = arith.constant 0 : i32
    %c0_i32_1 = arith.constant 0 : i32
    return %c0_i32, %c0_i32_0 : i32, i32
  }
  func.func @transform_13(%arg0: i32) -> (i32, i32, i32) {
    %c0_i32 = arith.constant 0 : i32
    %c0_i32_0 = arith.constant 0 : i32
    %c0_i32_1 = arith.constant 0 : i32
    return %arg0, %c0_i32, %c0_i32_0 : i32, i32, i32
  }
}

module attributes {stable_mosaic.version = 11 : i64} {
  func.func @transformer_block_kernel(%arg0: i32, %arg1: memref<1x8x32xf32, #tpu.memory_space<vmem>>, %arg2: memref<1x32xf32, #tpu.memory_space<vmem>>, %arg3: memref<1x32xf32, #tpu.memory_space<vmem>>, %arg4: memref<32x96xbf16, #tpu.memory_space<vmem>>, %arg5: memref<1x96xf32, #tpu.memory_space<vmem>>, %arg6: memref<4x8x32xbf16, #tpu.memory_space<vmem>>, %arg7: memref<1x32xf32, #tpu.memory_space<vmem>>, %arg8: memref<1x32xf32, #tpu.memory_space<vmem>>, %arg9: memref<1x32xf32, #tpu.memory_space<vmem>>, %arg10: memref<32x64xbf16, #tpu.memory_space<vmem>>, %arg11: memref<1x64xf32, #tpu.memory_space<vmem>>, %arg12: memref<64x32xbf16, #tpu.memory_space<vmem>>, %arg13: memref<1x32xf32, #tpu.memory_space<vmem>>, %arg14: memref<1x8x32xf32, #tpu.memory_space<vmem>>, %arg15: memref<8x32xf32, #tpu.memory_space<vmem>>) attributes {dimension_semantics = [#tpu.dimension_semantics<parallel>], iteration_bounds = array<i64: 2>, scalar_prefetch = 0 : i64, scratch_operands = 1 : i64, tpu.core_type = #tpu.core_type<tc>, window_params = [{transform_indices = @transform_0, window_bounds = array<i64: 1, 8, 32>}, {pipeline_mode = #tpu.pipeline_mode<synchronous>, transform_indices = @transform_1, window_bounds = array<i64: 1, 32>}, {pipeline_mode = #tpu.pipeline_mode<synchronous>, transform_indices = @transform_2, window_bounds = array<i64: 1, 32>}, {pipeline_mode = #tpu.pipeline_mode<synchronous>, transform_indices = @transform_3, window_bounds = array<i64: 32, 96>}, {pipeline_mode = #tpu.pipeline_mode<synchronous>, transform_indices = @transform_4, window_bounds = array<i64: 1, 96>}, {pipeline_mode = #tpu.pipeline_mode<synchronous>, transform_indices = @transform_5, window_bounds = array<i64: 4, 8, 32>}, {pipeline_mode = #tpu.pipeline_mode<synchronous>, transform_indices = @transform_6, window_bounds = array<i64: 1, 32>}, {pipeline_mode = #tpu.pipeline_mode<synchronous>, transform_indices = @transform_7, window_bounds = array<i64: 1, 32>}, {pipeline_mode = #tpu.pipeline_mode<synchronous>, transform_indices = @transform_8, window_bounds = array<i64: 1, 32>}, {pipeline_mode = #tpu.pipeline_mode<synchronous>, transform_indices = @transform_9, window_bounds = array<i64: 32, 64>}, {pipeline_mode = #tpu.pipeline_mode<synchronous>, transform_indices = @transform_10, window_bounds = array<i64: 1, 64>}, {pipeline_mode = #tpu.pipeline_mode<synchronous>, transform_indices = @transform_11, window_bounds = array<i64: 64, 32>}, {pipeline_mode = #tpu.pipeline_mode<synchronous>, transform_indices = @transform_12, window_bounds = array<i64: 1, 32>}, {transform_indices = @transform_13, window_bounds = array<i64: 1, 8, 32>}]} {
    %c0 = arith.constant 0 : index
    %c0_0 = arith.constant 0 : index
    %c0_1 = arith.constant 0 : index
    %0 = vector.load %arg1[%c0, %c0_0, %c0_1] : memref<1x8x32xf32, #tpu.memory_space<vmem>>, vector<1x8x32xf32>
    %1 = vector.shape_cast %0 : vector<1x8x32xf32> to vector<8x32xf32>
    %c0_2 = arith.constant 0 : index
    %c0_3 = arith.constant 0 : index
    %2 = vector.load %arg2[%c0_2, %c0_3] : memref<1x32xf32, #tpu.memory_space<vmem>>, vector<1x32xf32>
    %c0_4 = arith.constant 0 : index
    %c0_5 = arith.constant 0 : index
    %3 = vector.load %arg3[%c0_4, %c0_5] : memref<1x32xf32, #tpu.memory_space<vmem>>, vector<1x32xf32>
    %cst = arith.constant dense<0.000000e+00> : vector<8xf32>
    %4 = vector.multi_reduction <add>, %1, %cst [1] : vector<8x32xf32> to vector<8xf32>
    %5 = vector.shape_cast %4 : vector<8xf32> to vector<8x1xf32>
    %cst_6 = arith.constant 3.200000e+01 : f32
    %6 = vector.broadcast %cst_6 : f32 to vector<8x1xf32>
    %7 = arith.divf %5, %6 : vector<8x1xf32>
    %8 = vector.broadcast %7 : vector<8x1xf32> to vector<8x32xf32>
    %9 = arith.subf %1, %8 : vector<8x32xf32>
    %10 = arith.mulf %9, %9 : vector<8x32xf32>
    %cst_7 = arith.constant dense<0.000000e+00> : vector<8xf32>
    %11 = vector.multi_reduction <add>, %10, %cst_7 [1] : vector<8x32xf32> to vector<8xf32>
    %12 = vector.shape_cast %11 : vector<8xf32> to vector<8x1xf32>
    %cst_8 = arith.constant 3.200000e+01 : f32
    %13 = vector.broadcast %cst_8 : f32 to vector<8x1xf32>
    %14 = arith.divf %12, %13 : vector<8x1xf32>
    %15 = vector.broadcast %7 : vector<8x1xf32> to vector<8x32xf32>
    %16 = arith.subf %1, %15 : vector<8x32xf32>
    %cst_9 = arith.constant 9.99999974E-6 : f32
    %17 = vector.broadcast %cst_9 : f32 to vector<8x1xf32>
    %18 = arith.addf %14, %17 : vector<8x1xf32>
    %19 = math.rsqrt %18 : vector<8x1xf32>
    %20 = vector.broadcast %19 : vector<8x1xf32> to vector<8x32xf32>
    %21 = arith.mulf %16, %20 : vector<8x32xf32>
    %22 = vector.broadcast %2 : vector<1x32xf32> to vector<8x32xf32>
    %23 = arith.mulf %21, %22 : vector<8x32xf32>
    %24 = vector.broadcast %3 : vector<1x32xf32> to vector<8x32xf32>
    %25 = arith.addf %23, %24 : vector<8x32xf32>
    %c0_10 = arith.constant 0 : index
    %c0_11 = arith.constant 0 : index
    %26 = vector.load %arg4[%c0_10, %c0_11] : memref<32x96xbf16, #tpu.memory_space<vmem>>, vector<32x96xbf16>
    %27 = arith.truncf %25 : vector<8x32xf32> to vector<8x32xbf16>
    %cst_12 = arith.constant dense<0.000000e+00> : vector<8x96xf32>
    %28 = tpu.matmul %27, %26, %cst_12 {dimension_numbers = #tpu.dot_dimension_numbers<[1], [0], [0], [1], [0, 0, 1, 1], [], []>} : vector<8x32xbf16>, vector<32x96xbf16>, vector<8x96xf32> -> vector<8x96xf32>
    %c0_13 = arith.constant 0 : index
    %c0_14 = arith.constant 0 : index
    %29 = vector.load %arg5[%c0_13, %c0_14] : memref<1x96xf32, #tpu.memory_space<vmem>>, vector<1x96xf32>
    %30 = vector.broadcast %29 : vector<1x96xf32> to vector<8x96xf32>
    %31 = arith.addf %28, %30 : vector<8x96xf32>
    %cst_15 = arith.constant 0.000000e+00 : f32
    %32 = vector.broadcast %cst_15 : f32 to vector<8x32xf32>
    %c0_16 = arith.constant 0 : index
    %c0_17 = arith.constant 0 : index
    %33 = vector.load %arg15[%c0_16, %c0_17] : memref<8x32xf32, #tpu.memory_space<vmem>>, vector<8x32xf32>
    tpu.vector_store %arg15[%c0_16, %c0_17], %32 {strides = array<i32>} : memref<8x32xf32, #tpu.memory_space<vmem>>, vector<8x32xf32>,
    %34 = vector.extract_strided_slice %31 {offsets = [0, 0], sizes = [8, 8], strides = [1, 1]} : vector<8x96xf32> to vector<8x8xf32>
    %35 = vector.shape_cast %34 : vector<8x8xf32> to vector<1x8x8xf32>
    %36 = vector.extract_strided_slice %31 {offsets = [0, 32], sizes = [8, 8], strides = [1, 1]} : vector<8x96xf32> to vector<8x8xf32>
    %37 = vector.shape_cast %36 : vector<8x8xf32> to vector<1x8x8xf32>
    %38 = vector.extract_strided_slice %31 {offsets = [0, 64], sizes = [8, 8], strides = [1, 1]} : vector<8x96xf32> to vector<8x8xf32>
    %39 = vector.shape_cast %38 : vector<8x8xf32> to vector<1x8x8xf32>
    %40 = arith.truncf %35 : vector<1x8x8xf32> to vector<1x8x8xbf16>
    %41 = arith.truncf %37 : vector<1x8x8xf32> to vector<1x8x8xbf16>
    "tpu.trace_start"() <{level = 10 : i32, message = "bqd,bkd->bqk"}> : () -> ()
    %cst_18 = arith.constant dense<0.000000e+00> : vector<1x8x8xf32>
    %42 = tpu.matmul %40, %41, %cst_18 {dimension_numbers = #tpu.dot_dimension_numbers<[2], [2], [1], [1], [0, 0, 0, 1, 1, 1], [0], [0]>} : vector<1x8x8xbf16>, vector<1x8x8xbf16>, vector<1x8x8xf32> -> vector<1x8x8xf32>
    "tpu.trace_stop"() : () -> ()
    %cst_19 = arith.constant dense<0xFF800000> : vector<1x8xf32>
    %43 = vector.multi_reduction <maximumf>, %42, %cst_19 [2] : vector<1x8x8xf32> to vector<1x8xf32>
    %44 = vector.shape_cast %43 : vector<1x8xf32> to vector<1x8x1xf32>
    %45 = vector.broadcast %44 : vector<1x8x1xf32> to vector<1x8x8xf32>
    %46 = arith.subf %42, %45 : vector<1x8x8xf32>
    %47 = math.exp %46 : vector<1x8x8xf32>
    %cst_20 = arith.constant dense<0.000000e+00> : vector<1x8xf32>
    %48 = vector.multi_reduction <add>, %47, %cst_20 [2] : vector<1x8x8xf32> to vector<1x8xf32>
    %49 = vector.shape_cast %48 : vector<1x8xf32> to vector<1x8x1xf32>
    %50 = tpu.reciprocal %49 {approx = true} : vector<1x8x1xf32> -> vector<1x8x1xf32>
    %51 = vector.broadcast %50 : vector<1x8x1xf32> to vector<1x8x8xf32>
    %52 = arith.mulf %47, %51 : vector<1x8x8xf32>
    %53 = arith.truncf %52 : vector<1x8x8xf32> to vector<1x8x8xbf16>
    %54 = arith.truncf %39 : vector<1x8x8xf32> to vector<1x8x8xbf16>
    "tpu.trace_start"() <{level = 10 : i32, message = "bqk,bkd->bqd"}> : () -> ()
    %cst_21 = arith.constant dense<0.000000e+00> : vector<1x8x8xf32>
    %55 = tpu.matmul %53, %54, %cst_21 {dimension_numbers = #tpu.dot_dimension_numbers<[2], [1], [1], [2], [0, 0, 0, 1, 1, 2], [0], [0]>} : vector<1x8x8xbf16>, vector<1x8x8xbf16>, vector<1x8x8xf32> -> vector<1x8x8xf32>
    "tpu.trace_stop"() : () -> ()
    %c0_22 = arith.constant 0 : index
    %c0_23 = arith.constant 0 : index
    %56 = vector.load %arg15[%c0_22, %c0_23] : memref<8x32xf32, #tpu.memory_space<vmem>>, vector<8x32xf32>
    %57 = vector.shape_cast %55 : vector<1x8x8xf32> to vector<8x8xf32>
    %c0_24 = arith.constant 0 : index
    %c0_25 = arith.constant 0 : index
    %c0_26 = arith.constant 0 : index
    %58 = vector.load %arg6[%c0_24, %c0_25, %c0_26] : memref<4x8x32xbf16, #tpu.memory_space<vmem>>, vector<1x8x32xbf16>
    %59 = vector.shape_cast %58 : vector<1x8x32xbf16> to vector<8x32xbf16>
    %60 = arith.truncf %57 : vector<8x8xf32> to vector<8x8xbf16>
    %cst_27 = arith.constant dense<0.000000e+00> : vector<8x32xf32>
    %61 = tpu.matmul %60, %59, %cst_27 {dimension_numbers = #tpu.dot_dimension_numbers<[1], [0], [0], [1], [0, 0, 1, 1], [], []>} : vector<8x8xbf16>, vector<8x32xbf16>, vector<8x32xf32> -> vector<8x32xf32>
    %62 = arith.addf %56, %61 : vector<8x32xf32>
    %c0_28 = arith.constant 0 : index
    %c0_29 = arith.constant 0 : index
    %63 = vector.load %arg15[%c0_28, %c0_29] : memref<8x32xf32, #tpu.memory_space<vmem>>, vector<8x32xf32>
    tpu.vector_store %arg15[%c0_28, %c0_29], %62 {strides = array<i32>} : memref<8x32xf32, #tpu.memory_space<vmem>>, vector<8x32xf32>,
    %64 = vector.extract_strided_slice %31 {offsets = [0, 8], sizes = [8, 8], strides = [1, 1]} : vector<8x96xf32> to vector<8x8xf32>
    %65 = vector.shape_cast %64 : vector<8x8xf32> to vector<1x8x8xf32>
    %66 = vector.extract_strided_slice %31 {offsets = [0, 40], sizes = [8, 8], strides = [1, 1]} : vector<8x96xf32> to vector<8x8xf32>
    %67 = vector.shape_cast %66 : vector<8x8xf32> to vector<1x8x8xf32>
    %68 = vector.extract_strided_slice %31 {offsets = [0, 72], sizes = [8, 8], strides = [1, 1]} : vector<8x96xf32> to vector<8x8xf32>
    %69 = vector.shape_cast %68 : vector<8x8xf32> to vector<1x8x8xf32>
    %70 = arith.truncf %65 : vector<1x8x8xf32> to vector<1x8x8xbf16>
    %71 = arith.truncf %67 : vector<1x8x8xf32> to vector<1x8x8xbf16>
    "tpu.trace_start"() <{level = 10 : i32, message = "bqd,bkd->bqk"}> : () -> ()
    %cst_30 = arith.constant dense<0.000000e+00> : vector<1x8x8xf32>
    %72 = tpu.matmul %70, %71, %cst_30 {dimension_numbers = #tpu.dot_dimension_numbers<[2], [2], [1], [1], [0, 0, 0, 1, 1, 1], [0], [0]>} : vector<1x8x8xbf16>, vector<1x8x8xbf16>, vector<1x8x8xf32> -> vector<1x8x8xf32>
    "tpu.trace_stop"() : () -> ()
    %cst_31 = arith.constant dense<0xFF800000> : vector<1x8xf32>
    %73 = vector.multi_reduction <maximumf>, %72, %cst_31 [2] : vector<1x8x8xf32> to vector<1x8xf32>
    %74 = vector.shape_cast %73 : vector<1x8xf32> to vector<1x8x1xf32>
    %75 = vector.broadcast %74 : vector<1x8x1xf32> to vector<1x8x8xf32>
    %76 = arith.subf %72, %75 : vector<1x8x8xf32>
    %77 = math.exp %76 : vector<1x8x8xf32>
    %cst_32 = arith.constant dense<0.000000e+00> : vector<1x8xf32>
    %78 = vector.multi_reduction <add>, %77, %cst_32 [2] : vector<1x8x8xf32> to vector<1x8xf32>
    %79 = vector.shape_cast %78 : vector<1x8xf32> to vector<1x8x1xf32>
    %80 = tpu.reciprocal %79 {approx = true} : vector<1x8x1xf32> -> vector<1x8x1xf32>
    %81 = vector.broadcast %80 : vector<1x8x1xf32> to vector<1x8x8xf32>
    %82 = arith.mulf %77, %81 : vector<1x8x8xf32>
    %83 = arith.truncf %82 : vector<1x8x8xf32> to vector<1x8x8xbf16>
    %84 = arith.truncf %69 : vector<1x8x8xf32> to vector<1x8x8xbf16>
    "tpu.trace_start"() <{level = 10 : i32, message = "bqk,bkd->bqd"}> : () -> ()
    %cst_33 = arith.constant dense<0.000000e+00> : vector<1x8x8xf32>
    %85 = tpu.matmul %83, %84, %cst_33 {dimension_numbers = #tpu.dot_dimension_numbers<[2], [1], [1], [2], [0, 0, 0, 1, 1, 2], [0], [0]>} : vector<1x8x8xbf16>, vector<1x8x8xbf16>, vector<1x8x8xf32> -> vector<1x8x8xf32>
    "tpu.trace_stop"() : () -> ()
    %c0_34 = arith.constant 0 : index
    %c0_35 = arith.constant 0 : index
    %86 = vector.load %arg15[%c0_34, %c0_35] : memref<8x32xf32, #tpu.memory_space<vmem>>, vector<8x32xf32>
    %87 = vector.shape_cast %85 : vector<1x8x8xf32> to vector<8x8xf32>
    %c1 = arith.constant 1 : index
    %c0_36 = arith.constant 0 : index
    %c0_37 = arith.constant 0 : index
    %88 = vector.load %arg6[%c1, %c0_36, %c0_37] : memref<4x8x32xbf16, #tpu.memory_space<vmem>>, vector<1x8x32xbf16>
    %89 = vector.shape_cast %88 : vector<1x8x32xbf16> to vector<8x32xbf16>
    %90 = arith.truncf %87 : vector<8x8xf32> to vector<8x8xbf16>
    %cst_38 = arith.constant dense<0.000000e+00> : vector<8x32xf32>
    %91 = tpu.matmul %90, %89, %cst_38 {dimension_numbers = #tpu.dot_dimension_numbers<[1], [0], [0], [1], [0, 0, 1, 1], [], []>} : vector<8x8xbf16>, vector<8x32xbf16>, vector<8x32xf32> -> vector<8x32xf32>
    %92 = arith.addf %86, %91 : vector<8x32xf32>
    %c0_39 = arith.constant 0 : index
    %c0_40 = arith.constant 0 : index
    %93 = vector.load %arg15[%c0_39, %c0_40] : memref<8x32xf32, #tpu.memory_space<vmem>>, vector<8x32xf32>
    tpu.vector_store %arg15[%c0_39, %c0_40], %92 {strides = array<i32>} : memref<8x32xf32, #tpu.memory_space<vmem>>, vector<8x32xf32>,
    %94 = vector.extract_strided_slice %31 {offsets = [0, 16], sizes = [8, 8], strides = [1, 1]} : vector<8x96xf32> to vector<8x8xf32>
    %95 = vector.shape_cast %94 : vector<8x8xf32> to vector<1x8x8xf32>
    %96 = vector.extract_strided_slice %31 {offsets = [0, 48], sizes = [8, 8], strides = [1, 1]} : vector<8x96xf32> to vector<8x8xf32>
    %97 = vector.shape_cast %96 : vector<8x8xf32> to vector<1x8x8xf32>
    %98 = vector.extract_strided_slice %31 {offsets = [0, 80], sizes = [8, 8], strides = [1, 1]} : vector<8x96xf32> to vector<8x8xf32>
    %99 = vector.shape_cast %98 : vector<8x8xf32> to vector<1x8x8xf32>
    %100 = arith.truncf %95 : vector<1x8x8xf32> to vector<1x8x8xbf16>
    %101 = arith.truncf %97 : vector<1x8x8xf32> to vector<1x8x8xbf16>
    "tpu.trace_start"() <{level = 10 : i32, message = "bqd,bkd->bqk"}> : () -> ()
    %cst_41 = arith.constant dense<0.000000e+00> : vector<1x8x8xf32>
    %102 = tpu.matmul %100, %101, %cst_41 {dimension_numbers = #tpu.dot_dimension_numbers<[2], [2], [1], [1], [0, 0, 0, 1, 1, 1], [0], [0]>} : vector<1x8x8xbf16>, vector<1x8x8xbf16>, vector<1x8x8xf32> -> vector<1x8x8xf32>
    "tpu.trace_stop"() : () -> ()
    %cst_42 = arith.constant dense<0xFF800000> : vector<1x8xf32>
    %103 = vector.multi_reduction <maximumf>, %102, %cst_42 [2] : vector<1x8x8xf32> to vector<1x8xf32>
    %104 = vector.shape_cast %103 : vector<1x8xf32> to vector<1x8x1xf32>
    %105 = vector.broadcast %104 : vector<1x8x1xf32> to vector<1x8x8xf32>
    %106 = arith.subf %102, %105 : vector<1x8x8xf32>
    %107 = math.exp %106 : vector<1x8x8xf32>
    %cst_43 = arith.constant dense<0.000000e+00> : vector<1x8xf32>
    %108 = vector.multi_reduction <add>, %107, %cst_43 [2] : vector<1x8x8xf32> to vector<1x8xf32>
    %109 = vector.shape_cast %108 : vector<1x8xf32> to vector<1x8x1xf32>
    %110 = tpu.reciprocal %109 {approx = true} : vector<1x8x1xf32> -> vector<1x8x1xf32>
    %111 = vector.broadcast %110 : vector<1x8x1xf32> to vector<1x8x8xf32>
    %112 = arith.mulf %107, %111 : vector<1x8x8xf32>
    %113 = arith.truncf %112 : vector<1x8x8xf32> to vector<1x8x8xbf16>
    %114 = arith.truncf %99 : vector<1x8x8xf32> to vector<1x8x8xbf16>
    "tpu.trace_start"() <{level = 10 : i32, message = "bqk,bkd->bqd"}> : () -> ()
    %cst_44 = arith.constant dense<0.000000e+00> : vector<1x8x8xf32>
    %115 = tpu.matmul %113, %114, %cst_44 {dimension_numbers = #tpu.dot_dimension_numbers<[2], [1], [1], [2], [0, 0, 0, 1, 1, 2], [0], [0]>} : vector<1x8x8xbf16>, vector<1x8x8xbf16>, vector<1x8x8xf32> -> vector<1x8x8xf32>
    "tpu.trace_stop"() : () -> ()
    %c0_45 = arith.constant 0 : index
    %c0_46 = arith.constant 0 : index
    %116 = vector.load %arg15[%c0_45, %c0_46] : memref<8x32xf32, #tpu.memory_space<vmem>>, vector<8x32xf32>
    %117 = vector.shape_cast %115 : vector<1x8x8xf32> to vector<8x8xf32>
    %c2 = arith.constant 2 : index
    %c0_47 = arith.constant 0 : index
    %c0_48 = arith.constant 0 : index
    %118 = vector.load %arg6[%c2, %c0_47, %c0_48] : memref<4x8x32xbf16, #tpu.memory_space<vmem>>, vector<1x8x32xbf16>
    %119 = vector.shape_cast %118 : vector<1x8x32xbf16> to vector<8x32xbf16>
    %120 = arith.truncf %117 : vector<8x8xf32> to vector<8x8xbf16>
    %cst_49 = arith.constant dense<0.000000e+00> : vector<8x32xf32>
    %121 = tpu.matmul %120, %119, %cst_49 {dimension_numbers = #tpu.dot_dimension_numbers<[1], [0], [0], [1], [0, 0, 1, 1], [], []>} : vector<8x8xbf16>, vector<8x32xbf16>, vector<8x32xf32> -> vector<8x32xf32>
    %122 = arith.addf %116, %121 : vector<8x32xf32>
    %c0_50 = arith.constant 0 : index
    %c0_51 = arith.constant 0 : index
    %123 = vector.load %arg15[%c0_50, %c0_51] : memref<8x32xf32, #tpu.memory_space<vmem>>, vector<8x32xf32>
    tpu.vector_store %arg15[%c0_50, %c0_51], %122 {strides = array<i32>} : memref<8x32xf32, #tpu.memory_space<vmem>>, vector<8x32xf32>,
    %124 = vector.extract_strided_slice %31 {offsets = [0, 24], sizes = [8, 8], strides = [1, 1]} : vector<8x96xf32> to vector<8x8xf32>
    %125 = vector.shape_cast %124 : vector<8x8xf32> to vector<1x8x8xf32>
    %126 = vector.extract_strided_slice %31 {offsets = [0, 56], sizes = [8, 8], strides = [1, 1]} : vector<8x96xf32> to vector<8x8xf32>
    %127 = vector.shape_cast %126 : vector<8x8xf32> to vector<1x8x8xf32>
    %128 = vector.extract_strided_slice %31 {offsets = [0, 88], sizes = [8, 8], strides = [1, 1]} : vector<8x96xf32> to vector<8x8xf32>
    %129 = vector.shape_cast %128 : vector<8x8xf32> to vector<1x8x8xf32>
    %130 = arith.truncf %125 : vector<1x8x8xf32> to vector<1x8x8xbf16>
    %131 = arith.truncf %127 : vector<1x8x8xf32> to vector<1x8x8xbf16>
    "tpu.trace_start"() <{level = 10 : i32, message = "bqd,bkd->bqk"}> : () -> ()
    %cst_52 = arith.constant dense<0.000000e+00> : vector<1x8x8xf32>
    %132 = tpu.matmul %130, %131, %cst_52 {dimension_numbers = #tpu.dot_dimension_numbers<[2], [2], [1], [1], [0, 0, 0, 1, 1, 1], [0], [0]>} : vector<1x8x8xbf16>, vector<1x8x8xbf16>, vector<1x8x8xf32> -> vector<1x8x8xf32>
    "tpu.trace_stop"() : () -> ()
    %cst_53 = arith.constant dense<0xFF800000> : vector<1x8xf32>
    %133 = vector.multi_reduction <maximumf>, %132, %cst_53 [2] : vector<1x8x8xf32> to vector<1x8xf32>
    %134 = vector.shape_cast %133 : vector<1x8xf32> to vector<1x8x1xf32>
    %135 = vector.broadcast %134 : vector<1x8x1xf32> to vector<1x8x8xf32>
    %136 = arith.subf %132, %135 : vector<1x8x8xf32>
    %137 = math.exp %136 : vector<1x8x8xf32>
    %cst_54 = arith.constant dense<0.000000e+00> : vector<1x8xf32>
    %138 = vector.multi_reduction <add>, %137, %cst_54 [2] : vector<1x8x8xf32> to vector<1x8xf32>
    %139 = vector.shape_cast %138 : vector<1x8xf32> to vector<1x8x1xf32>
    %140 = tpu.reciprocal %139 {approx = true} : vector<1x8x1xf32> -> vector<1x8x1xf32>
    %141 = vector.broadcast %140 : vector<1x8x1xf32> to vector<1x8x8xf32>
    %142 = arith.mulf %137, %141 : vector<1x8x8xf32>
    %143 = arith.truncf %142 : vector<1x8x8xf32> to vector<1x8x8xbf16>
    %144 = arith.truncf %129 : vector<1x8x8xf32> to vector<1x8x8xbf16>
    "tpu.trace_start"() <{level = 10 : i32, message = "bqk,bkd->bqd"}> : () -> ()
    %cst_55 = arith.constant dense<0.000000e+00> : vector<1x8x8xf32>
    %145 = tpu.matmul %143, %144, %cst_55 {dimension_numbers = #tpu.dot_dimension_numbers<[2], [1], [1], [2], [0, 0, 0, 1, 1, 2], [0], [0]>} : vector<1x8x8xbf16>, vector<1x8x8xbf16>, vector<1x8x8xf32> -> vector<1x8x8xf32>
    "tpu.trace_stop"() : () -> ()
    %c0_56 = arith.constant 0 : index
    %c0_57 = arith.constant 0 : index
    %146 = vector.load %arg15[%c0_56, %c0_57] : memref<8x32xf32, #tpu.memory_space<vmem>>, vector<8x32xf32>
    %147 = vector.shape_cast %145 : vector<1x8x8xf32> to vector<8x8xf32>
    %c3 = arith.constant 3 : index
    %c0_58 = arith.constant 0 : index
    %c0_59 = arith.constant 0 : index
    %148 = vector.load %arg6[%c3, %c0_58, %c0_59] : memref<4x8x32xbf16, #tpu.memory_space<vmem>>, vector<1x8x32xbf16>
    %149 = vector.shape_cast %148 : vector<1x8x32xbf16> to vector<8x32xbf16>
    %150 = arith.truncf %147 : vector<8x8xf32> to vector<8x8xbf16>
    %cst_60 = arith.constant dense<0.000000e+00> : vector<8x32xf32>
    %151 = tpu.matmul %150, %149, %cst_60 {dimension_numbers = #tpu.dot_dimension_numbers<[1], [0], [0], [1], [0, 0, 1, 1], [], []>} : vector<8x8xbf16>, vector<8x32xbf16>, vector<8x32xf32> -> vector<8x32xf32>
    %152 = arith.addf %146, %151 : vector<8x32xf32>
    %c0_61 = arith.constant 0 : index
    %c0_62 = arith.constant 0 : index
    %153 = vector.load %arg15[%c0_61, %c0_62] : memref<8x32xf32, #tpu.memory_space<vmem>>, vector<8x32xf32>
    tpu.vector_store %arg15[%c0_61, %c0_62], %152 {strides = array<i32>} : memref<8x32xf32, #tpu.memory_space<vmem>>, vector<8x32xf32>,
    %c0_63 = arith.constant 0 : index
    %c0_64 = arith.constant 0 : index
    %154 = vector.load %arg15[%c0_63, %c0_64] : memref<8x32xf32, #tpu.memory_space<vmem>>, vector<8x32xf32>
    %155 = arith.addf %1, %154 : vector<8x32xf32>
    %c0_65 = arith.constant 0 : index
    %c0_66 = arith.constant 0 : index
    %156 = vector.load %arg7[%c0_65, %c0_66] : memref<1x32xf32, #tpu.memory_space<vmem>>, vector<1x32xf32>
    %157 = vector.broadcast %156 : vector<1x32xf32> to vector<8x32xf32>
    %158 = arith.addf %155, %157 : vector<8x32xf32>
    %c0_67 = arith.constant 0 : index
    %c0_68 = arith.constant 0 : index
    %159 = vector.load %arg8[%c0_67, %c0_68] : memref<1x32xf32, #tpu.memory_space<vmem>>, vector<1x32xf32>
    %c0_69 = arith.constant 0 : index
    %c0_70 = arith.constant 0 : index
    %160 = vector.load %arg9[%c0_69, %c0_70] : memref<1x32xf32, #tpu.memory_space<vmem>>, vector<1x32xf32>
    %cst_71 = arith.constant dense<0.000000e+00> : vector<8xf32>
    %161 = vector.multi_reduction <add>, %158, %cst_71 [1] : vector<8x32xf32> to vector<8xf32>
    %162 = vector.shape_cast %161 : vector<8xf32> to vector<8x1xf32>
    %cst_72 = arith.constant 3.200000e+01 : f32
    %163 = vector.broadcast %cst_72 : f32 to vector<8x1xf32>
    %164 = arith.divf %162, %163 : vector<8x1xf32>
    %165 = vector.broadcast %164 : vector<8x1xf32> to vector<8x32xf32>
    %166 = arith.subf %158, %165 : vector<8x32xf32>
    %167 = arith.mulf %166, %166 : vector<8x32xf32>
    %cst_73 = arith.constant dense<0.000000e+00> : vector<8xf32>
    %168 = vector.multi_reduction <add>, %167, %cst_73 [1] : vector<8x32xf32> to vector<8xf32>
    %169 = vector.shape_cast %168 : vector<8xf32> to vector<8x1xf32>
    %cst_74 = arith.constant 3.200000e+01 : f32
    %170 = vector.broadcast %cst_74 : f32 to vector<8x1xf32>
    %171 = arith.divf %169, %170 : vector<8x1xf32>
    %172 = vector.broadcast %164 : vector<8x1xf32> to vector<8x32xf32>
    %173 = arith.subf %158, %172 : vector<8x32xf32>
    %cst_75 = arith.constant 9.99999974E-6 : f32
    %174 = vector.broadcast %cst_75 : f32 to vector<8x1xf32>
    %175 = arith.addf %171, %174 : vector<8x1xf32>
    %176 = math.rsqrt %175 : vector<8x1xf32>
    %177 = vector.broadcast %176 : vector<8x1xf32> to vector<8x32xf32>
    %178 = arith.mulf %173, %177 : vector<8x32xf32>
    %179 = vector.broadcast %159 : vector<1x32xf32> to vector<8x32xf32>
    %180 = arith.mulf %178, %179 : vector<8x32xf32>
    %181 = vector.broadcast %160 : vector<1x32xf32> to vector<8x32xf32>
    %182 = arith.addf %180, %181 : vector<8x32xf32>
    %c0_76 = arith.constant 0 : index
    %c0_77 = arith.constant 0 : index
    %183 = vector.load %arg10[%c0_76, %c0_77] : memref<32x64xbf16, #tpu.memory_space<vmem>>, vector<32x64xbf16>
    %184 = arith.truncf %182 : vector<8x32xf32> to vector<8x32xbf16>
    %cst_78 = arith.constant dense<0.000000e+00> : vector<8x64xf32>
    %185 = tpu.matmul %184, %183, %cst_78 {dimension_numbers = #tpu.dot_dimension_numbers<[1], [0], [0], [1], [0, 0, 1, 1], [], []>} : vector<8x32xbf16>, vector<32x64xbf16>, vector<8x64xf32> -> vector<8x64xf32>
    %c0_79 = arith.constant 0 : index
    %c0_80 = arith.constant 0 : index
    %186 = vector.load %arg11[%c0_79, %c0_80] : memref<1x64xf32, #tpu.memory_space<vmem>>, vector<1x64xf32>
    %187 = vector.broadcast %186 : vector<1x64xf32> to vector<8x64xf32>
    %188 = arith.addf %185, %187 : vector<8x64xf32>
    %cst_81 = arith.constant 0.000000e+00 : f32
    %189 = vector.broadcast %cst_81 : f32 to vector<8x64xf32>
    %190 = arith.maximumf %188, %189 : vector<8x64xf32>
    %c0_82 = arith.constant 0 : index
    %c0_83 = arith.constant 0 : index
    %191 = vector.load %arg12[%c0_82, %c0_83] : memref<64x32xbf16, #tpu.memory_space<vmem>>, vector<64x32xbf16>
    %192 = arith.truncf %190 : vector<8x64xf32> to vector<8x64xbf16>
    %cst_84 = arith.constant dense<0.000000e+00> : vector<8x32xf32>
    %193 = tpu.matmul %192, %191, %cst_84 {dimension_numbers = #tpu.dot_dimension_numbers<[1], [0], [0], [1], [0, 0, 1, 1], [], []>} : vector<8x64xbf16>, vector<64x32xbf16>, vector<8x32xf32> -> vector<8x32xf32>
    %c0_85 = arith.constant 0 : index
    %c0_86 = arith.constant 0 : index
    %194 = vector.load %arg13[%c0_85, %c0_86] : memref<1x32xf32, #tpu.memory_space<vmem>>, vector<1x32xf32>
    %195 = vector.broadcast %194 : vector<1x32xf32> to vector<8x32xf32>
    %196 = arith.addf %193, %195 : vector<8x32xf32>
    %197 = arith.addf %158, %196 : vector<8x32xf32>
    %198 = vector.shape_cast %197 : vector<8x32xf32> to vector<1x8x32xf32>
    %c0_87 = arith.constant 0 : index
    %c0_88 = arith.constant 0 : index
    %c0_89 = arith.constant 0 : index
    %199 = vector.load %arg14[%c0_87, %c0_88, %c0_89] : memref<1x8x32xf32, #tpu.memory_space<vmem>>, vector<1x8x32xf32>
    tpu.vector_store %arg14[%c0_87, %c0_88, %c0_89], %198 {strides = array<i32>} : memref<1x8x32xf32, #tpu.memory_space<vmem>>, vector<1x8x32xf32>,
    return
  }
  func.func @transform_0(%arg0: i32) -> (i32, i32, i32) {
    %c0_i32 = arith.constant 0 : i32
    %c0_i32_0 = arith.constant 0 : i32
    %c0_i32_1 = arith.constant 0 : i32
    return %arg0, %c0_i32, %c0_i32_0 : i32, i32, i32
  }
  func.func @transform_1(%arg0: i32) -> (i32, i32) {
    %c0_i32 = arith.constant 0 : i32
    %c0_i32_0 = arith.constant 0 : i32
    %c0_i32_1 = arith.constant 0 : i32
    return %c0_i32, %c0_i32_0 : i32, i32
  }
  func.func @transform_2(%arg0: i32) -> (i32, i32) {
    %c0_i32 = arith.constant 0 : i32
    %c0_i32_0 = arith.constant 0 : i32
    %c0_i32_1 = arith.constant 0 : i32
    return %c0_i32, %c0_i32_0 : i32, i32
  }
  func.func @transform_3(%arg0: i32) -> (i32, i32) {
    %c0_i32 = arith.constant 0 : i32
    %c0_i32_0 = arith.constant 0 : i32
    %c0_i32_1 = arith.constant 0 : i32
    return %c0_i32, %c0_i32_0 : i32, i32
  }
  func.func @transform_4(%arg0: i32) -> (i32, i32) {
    %c0_i32 = arith.constant 0 : i32
    %c0_i32_0 = arith.constant 0 : i32
    %c0_i32_1 = arith.constant 0 : i32
    return %c0_i32, %c0_i32_0 : i32, i32
  }
  func.func @transform_5(%arg0: i32) -> (i32, i32, i32) {
    %c0_i32 = arith.constant 0 : i32
    %c0_i32_0 = arith.constant 0 : i32
    %c0_i32_1 = arith.constant 0 : i32
    %c0_i32_2 = arith.constant 0 : i32
    return %c0_i32, %c0_i32_0, %c0_i32_1 : i32, i32, i32
  }
  func.func @transform_6(%arg0: i32) -> (i32, i32) {
    %c0_i32 = arith.constant 0 : i32
    %c0_i32_0 = arith.constant 0 : i32
    %c0_i32_1 = arith.constant 0 : i32
    return %c0_i32, %c0_i32_0 : i32, i32
  }
  func.func @transform_7(%arg0: i32) -> (i32, i32) {
    %c0_i32 = arith.constant 0 : i32
    %c0_i32_0 = arith.constant 0 : i32
    %c0_i32_1 = arith.constant 0 : i32
    return %c0_i32, %c0_i32_0 : i32, i32
  }
  func.func @transform_8(%arg0: i32) -> (i32, i32) {
    %c0_i32 = arith.constant 0 : i32
    %c0_i32_0 = arith.constant 0 : i32
    %c0_i32_1 = arith.constant 0 : i32
    return %c0_i32, %c0_i32_0 : i32, i32
  }
  func.func @transform_9(%arg0: i32) -> (i32, i32) {
    %c0_i32 = arith.constant 0 : i32
    %c0_i32_0 = arith.constant 0 : i32
    %c0_i32_1 = arith.constant 0 : i32
    return %c0_i32, %c0_i32_0 : i32, i32
  }
  func.func @transform_10(%arg0: i32) -> (i32, i32) {
    %c0_i32 = arith.constant 0 : i32
    %c0_i32_0 = arith.constant 0 : i32
    %c0_i32_1 = arith.constant 0 : i32
    return %c0_i32, %c0_i32_0 : i32, i32
  }
  func.func @transform_11(%arg0: i32) -> (i32, i32) {
    %c0_i32 = arith.constant 0 : i32
    %c0_i32_0 = arith.constant 0 : i32
    %c0_i32_1 = arith.constant 0 : i32
    return %c0_i32, %c0_i32_0 : i32, i32
  }
  func.func @transform_12(%arg0: i32) -> (i32, i32) {
    %c0_i32 = arith.constant 0 : i32
    %c0_i32_0 = arith.constant 0 : i32
    %c0_i32_1 = arith.constant 0 : i32
    return %c0_i32, %c0_i32_0 : i32, i32
  }
  func.func @transform_13(%arg0: i32) -> (i32, i32, i32) {
    %c0_i32 = arith.constant 0 : i32
    %c0_i32_0 = arith.constant 0 : i32
    %c0_i32_1 = arith.constant 0 : i32
    return %arg0, %c0_i32, %c0_i32_0 : i32, i32, i32
  }
}

</mosaic_0001>

<llo_original>
// kernel: tpu_custom_call.1
$region0: #{tpu_custom_call.1}
  #allocation0 [shape = 'u32[]', space=smem, size = 0x4, offset = 0x4, fixed_abs, tag = 'smem constant byte address 0x4 - core index']
  #allocation1 [shape = 'u32[144,128]{1,0:T(1,128)}', space=vmem, size = 0x12000, scoped, tag = 'internal scratch']
  #allocation2 [shape = 'f32[8,32]{1,0:T(8,128)}', space=vmem, size = 0x1000, scoped, tag = 'scratch operand']
  %s0 = inlined_call_operand.vmem [shape: f32[2,8,32], index: 0, kind: input, shape index: {}]
  %s1 = inlined_call_operand.vmem [shape: f32[1,32], index: 1, kind: input, shape index: {}]
  %s2 = inlined_call_operand.vmem [shape: f32[1,32], index: 2, kind: input, shape index: {}]
  %s3 = inlined_call_operand.vmem [shape: bf16[32,96], index: 3, kind: input, shape index: {}]
  %s4 = inlined_call_operand.hbm [shape: f32[1,96], index: 4, kind: input, shape index: {}]
  %s5 = inlined_call_operand.vmem [shape: bf16[4,8,32], index: 5, kind: input, shape index: {}]
  %s6 = inlined_call_operand.hbm [shape: f32[1,32], index: 6, kind: input, shape index: {}]
  %s7 = inlined_call_operand.hbm [shape: f32[1,32], index: 7, kind: input, shape index: {}]
  %s8 = inlined_call_operand.hbm [shape: f32[1,32], index: 8, kind: input, shape index: {}]
  %s9 = inlined_call_operand.vmem [shape: bf16[32,64], index: 9, kind: input, shape index: {}]
  %s10 = inlined_call_operand.vmem [shape: f32[1,64], index: 10, kind: input, shape index: {}]
  %s11 = inlined_call_operand.vmem [shape: bf16[64,32], index: 11, kind: input, shape index: {}]
  %s12 = inlined_call_operand.vmem [shape: f32[1,32], index: 12, kind: input, shape index: {}]
  %s13 = inlined_call_operand.hbm [shape: f32[2,8,32], index: 13, kind: output, shape index: {}]
  %s14 = sld [smem:[#allocation0]]
  $region101: #{tpu_custom_call.1} parent=0
    _
  %s16 = ssub.s32 1, %s14
  %s17 = scalar_select 0, %s16, %s14
  $region1: #{tpu_custom_call.1} parent=0
    #allocation3 [shape = 'u8[512]{0}', space=vmem, size = 0x400, scoped, tag = 'input window, operand 4, single buffered']
    #allocation4 [shape = 's32[2]{0}', space=sflag, size = 0x8, scoped, tag = 'scoped memory for tpu_custom_call.1']
    #allocation5 [shape = 's32[2]{0}', space=sflag, size = 0x8, scoped, tag = 'scoped memory for tpu_custom_call.1']
    #allocation6 [shape = 'u8[512]{0}', space=vmem, size = 0x400, scoped, tag = 'input window, operand 6, single buffered']
    #allocation7 [shape = 's32[1]{0}', space=sflag, size = 0x4, scoped, tag = 'scoped memory for tpu_custom_call.1']
    #allocation8 [shape = 'u8[512]{0}', space=vmem, size = 0x400, scoped, tag = 'input window, operand 7, single buffered']
    #allocation9 [shape = 'u8[512]{0}', space=vmem, size = 0x400, scoped, tag = 'input window, operand 8, single buffered']
    #allocation10 [shape = 's32[1]{0}', space=sflag, size = 0x4, scoped, tag = 'scoped memory for tpu_custom_call.1']
    #allocation11 [shape = 'u8[8192]{0}', space=vmem, size = 0x2000, scoped, tag = 'output window, operand 0']
    %18 = vsyncpa [#allocation4], 0
    %19 = vsyncpa [#allocation7], 0
    %20 = vsyncpa [#allocation10], 0
    %21 = vsyncpa [#allocation5], 0
    %s22 = scalar_lea.sflag [#allocation5], 1
    %23 = vsyncpa %s22, 0
    loop: start=0, step=1, limit=4
    $region2: #{tpu_custom_call.1} parent=1 // loop_pre_header
      _
    $region3: #{tpu_custom_call.1} parent=1 // loop_header
      %s25 = sphi 0, %s29
      %p26 = scmp.ge.s32.totalorder %s25, 4
      %s35 = sphi 0, %s37
      %s38 = sphi 0, %s35
      %s39 = sphi 0, %s38
      %s55 = sphi 0, %s39
      %s59 = sphi 0, %s59
      %s61 = sphi 0, %s59
      %s62 = sphi 0, %s61
      %s76 = sphi 0, %s62
      %s80 = sphi 0, %s80
      %s82 = sphi 0, %s80
      %s83 = sphi 0, %s82
      %s97 = sphi 0, %s83
      %s101 = sphi 0, %s101
      %s103 = sphi 0, %s101
      %s104 = sphi 0, %s103
      %s118 = sphi 0, %s104
      %s122 = sphi 0, %s122
      %s124 = sphi 0, %s122
      %s125 = sphi 0, %s124
      %s139 = sphi 0, %s125
      %s143 = sphi 0, %s143
      %s145 = sphi 0, %s143
      %s146 = sphi 0, %s145
      %s160 = sphi 0, %s146
      %s164 = sphi 0, %s164
      %s166 = sphi 0, %s164
      %s167 = sphi 0, %s166
      %s181 = sphi 0, %s167
      %s185 = sphi 0, %s185
      %s187 = sphi 0, %s185
      %s188 = sphi 0, %s187
      %s202 = sphi 0, %s188
      %s206 = sphi 0, %s206
      %s208 = sphi 0, %s206
      %s209 = sphi 0, %s208
      %s223 = sphi 0, %s209
      %s227 = sphi 0, %s227
      %s229 = sphi 0, %s227
      %s230 = sphi 0, %s229
      %s244 = sphi 0, %s230
      %s248 = sphi 0, %s248
      %s250 = sphi 0, %s248
      %s251 = sphi 0, %s250
      %s265 = sphi 0, %s251
      %s269 = sphi 0, %s269
      %s271 = sphi 0, %s269
      %s272 = sphi 0, %s271
      %s286 = sphi 0, %s272
      %s290 = sphi 0, %s290
      %s292 = sphi 0, %s290
      %s293 = sphi 0, %s292
      %s307 = sphi 0, %s293
      %s313 = sphi 0, %s315
      %s316 = sphi 0, %s313
      %s317 = sphi 0, %s316
      %s333 = sphi 0, %s317
    $region4: #{tpu_custom_call.1} parent=1 // loop_header_branch
      %28 = sbr.rel (%p26) target = $region8
    $region5: #{tpu_custom_call.1} parent=1 // loop_body
      %s30 = ssub.s32 %s25, 1
      %s31 = ssub.s32 %s25, 2
      %s32 = sadd.s32 %s25, 1
      %s33 = ssub.s32 %s25, %s32
      %p34 = scmp.eq.s32.totalorder %s33, 0
      %s36 = sadd.s32 %s35, 1
      %s37 = scalar_select %p34, %s35, %s36
      %p40 = pneg %p34
      %p41 = scmp.eq.s32.totalorder %s25, 1
      %p42 = por %p40, %p41
      %p43 = scmp.ne.s32.totalorder %s35, %s38
      %p44 = scmp.eq.s32.totalorder %s25, 0
      %p45 = por %p43, %p44
      %p46 = scmp.ne.s32.totalorder %s35, %s38
      %p47 = scmp.eq.s32.totalorder %s30, 1
      %p48 = por %p46, %p47
      %p49 = scmp.ne.s32.totalorder %s38, %s39
      %p50 = scmp.eq.s32.totalorder %s30, 0
      %p51 = por %p49, %p50
      %p52 = scmp.ne.s32.totalorder %s38, %s39
      %p53 = scmp.eq.s32.totalorder %s31, 1
      %p54 = por %p52, %p53
      %p56 = scmp.ne.s32.totalorder %s39, %s55
      %p57 = scmp.eq.s32.totalorder %s31, 0
      %p58 = por %p56, %p57
      %s60 = sadd.s32 %s59, 1
      %p63 = scmp.eq.s32.totalorder %s25, 1
      %p64 = scmp.ne.s32.totalorder %s59, %s61
      %p65 = scmp.eq.s32.totalorder %s25, 0
      %p66 = por %p64, %p65
      %p67 = scmp.ne.s32.totalorder %s59, %s61
      %p68 = scmp.eq.s32.totalorder %s30, 1
      %p69 = por %p67, %p68
      %p70 = scmp.ne.s32.totalorder %s61, %s62
      %p71 = scmp.eq.s32.totalorder %s30, 0
      %p72 = por %p70, %p71
      %p73 = scmp.ne.s32.totalorder %s61, %s62
      %p74 = scmp.eq.s32.totalorder %s31, 1
      %p75 = por %p73, %p74
      %p77 = scmp.ne.s32.totalorder %s62, %s76
      %p78 = scmp.eq.s32.totalorder %s31, 0
      %p79 = por %p77, %p78
      %s81 = sadd.s32 %s80, 1
      %p84 = scmp.eq.s32.totalorder %s25, 1
      %p85 = scmp.ne.s32.totalorder %s80, %s82
      %p86 = scmp.eq.s32.totalorder %s25, 0
      %p87 = por %p85, %p86
      %p88 = scmp.ne.s32.totalorder %s80, %s82
      %p89 = scmp.eq.s32.totalorder %s30, 1
      %p90 = por %p88, %p89
      %p91 = scmp.ne.s32.totalorder %s82, %s83
      %p92 = scmp.eq.s32.totalorder %s30, 0
      %p93 = por %p91, %p92
      %p94 = scmp.ne.s32.totalorder %s82, %s83
      %p95 = scmp.eq.s32.totalorder %s31, 1
      %p96 = por %p94, %p95
      %p98 = scmp.ne.s32.totalorder %s83, %s97
      %p99 = scmp.eq.s32.totalorder %s31, 0
      %p100 = por %p98, %p99
      %s102 = sadd.s32 %s101, 1
      %p105 = scmp.eq.s32.totalorder %s25, 1
      %p106 = scmp.ne.s32.totalorder %s101, %s103
      %p107 = scmp.eq.s32.totalorder %s25, 0
      %p108 = por %p106, %p107
      %p109 = scmp.ne.s32.totalorder %s101, %s103
      %p110 = scmp.eq.s32.totalorder %s30, 1
      %p111 = por %p109, %p110
      %p112 = scmp.ne.s32.totalorder %s103, %s104
      %p113 = scmp.eq.s32.totalorder %s30, 0
      %p114 = por %p112, %p113
      %p115 = scmp.ne.s32.totalorder %s103, %s104
      %p116 = scmp.eq.s32.totalorder %s31, 1
      %p117 = por %p115, %p116
      %p119 = scmp.ne.s32.totalorder %s104, %s118
      %p120 = scmp.eq.s32.totalorder %s31, 0
      %p121 = por %p119, %p120
      %s123 = sadd.s32 %s122, 1
      %p126 = scmp.eq.s32.totalorder %s25, 1
      %p127 = scmp.ne.s32.totalorder %s122, %s124
      %p128 = scmp.eq.s32.totalorder %s25, 0
      %p129 = por %p127, %p128
      %p130 = scmp.ne.s32.totalorder %s122, %s124
      %p131 = scmp.eq.s32.totalorder %s30, 1
      %p132 = por %p130, %p131
      %p133 = scmp.ne.s32.totalorder %s124, %s125
      %p134 = scmp.eq.s32.totalorder %s30, 0
      %p135 = por %p133, %p134
      %p136 = scmp.ne.s32.totalorder %s124, %s125
      %p137 = scmp.eq.s32.totalorder %s31, 1
      %p138 = por %p136, %p137
      %p140 = scmp.ne.s32.totalorder %s125, %s139
      %p141 = scmp.eq.s32.totalorder %s31, 0
      %p142 = por %p140, %p141
      %s144 = sadd.s32 %s143, 1
      %p147 = scmp.eq.s32.totalorder %s25, 1
      %p148 = scmp.ne.s32.totalorder %s143, %s145
      %p149 = scmp.eq.s32.totalorder %s25, 0
      %p150 = por %p148, %p149
      %p151 = scmp.ne.s32.totalorder %s143, %s145
      %p152 = scmp.eq.s32.totalorder %s30, 1
      %p153 = por %p151, %p152
      %p154 = scmp.ne.s32.totalorder %s145, %s146
      %p155 = scmp.eq.s32.totalorder %s30, 0
      %p156 = por %p154, %p155
      %p157 = scmp.ne.s32.totalorder %s145, %s146
      %p158 = scmp.eq.s32.totalorder %s31, 1
      %p159 = por %p157, %p158
      %p161 = scmp.ne.s32.totalorder %s146, %s160
      %p162 = scmp.eq.s32.totalorder %s31, 0
      %p163 = por %p161, %p162
      %s165 = sadd.s32 %s164, 1
      %p168 = scmp.eq.s32.totalorder %s25, 1
      %p169 = scmp.ne.s32.totalorder %s164, %s166
      %p170 = scmp.eq.s32.totalorder %s25, 0
      %p171 = por %p169, %p170
      %p172 = scmp.ne.s32.totalorder %s164, %s166
      %p173 = scmp.eq.s32.totalorder %s30, 1
      %p174 = por %p172, %p173
      %p175 = scmp.ne.s32.totalorder %s166, %s167
      %p176 = scmp.eq.s32.totalorder %s30, 0
      %p177 = por %p175, %p176
      %p178 = scmp.ne.s32.totalorder %s166, %s167
      %p179 = scmp.eq.s32.totalorder %s31, 1
      %p180 = por %p178, %p179
      %p182 = scmp.ne.s32.totalorder %s167, %s181
      %p183 = scmp.eq.s32.totalorder %s31, 0
      %p184 = por %p182, %p183
      %s186 = sadd.s32 %s185, 1
      %p189 = scmp.eq.s32.totalorder %s25, 1
      %p190 = scmp.ne.s32.totalorder %s185, %s187
      %p191 = scmp.eq.s32.totalorder %s25, 0
      %p192 = por %p190, %p191
      %p193 = scmp.ne.s32.totalorder %s185, %s187
      %p194 = scmp.eq.s32.totalorder %s30, 1
      %p195 = por %p193, %p194
      %p196 = scmp.ne.s32.totalorder %s187, %s188
      %p197 = scmp.eq.s32.totalorder %s30, 0
      %p198 = por %p196, %p197
      %p199 = scmp.ne.s32.totalorder %s187, %s188
      %p200 = scmp.eq.s32.totalorder %s31, 1
      %p201 = por %p199, %p200
      %p203 = scmp.ne.s32.totalorder %s188, %s202
      %p204 = scmp.eq.s32.totalorder %s31, 0
      %p205 = por %p203, %p204
      %s207 = sadd.s32 %s206, 1
      %p210 = scmp.eq.s32.totalorder %s25, 1
      %p211 = scmp.ne.s32.totalorder %s206, %s208
      %p212 = scmp.eq.s32.totalorder %s25, 0
      %p213 = por %p211, %p212
      %p214 = scmp.ne.s32.totalorder %s206, %s208
      %p215 = scmp.eq.s32.totalorder %s30, 1
      %p216 = por %p214, %p215
      %p217 = scmp.ne.s32.totalorder %s208, %s209
      %p218 = scmp.eq.s32.totalorder %s30, 0
      %p219 = por %p217, %p218
      %p220 = scmp.ne.s32.totalorder %s208, %s209
      %p221 = scmp.eq.s32.totalorder %s31, 1
      %p222 = por %p220, %p221
      %p224 = scmp.ne.s32.totalorder %s209, %s223
      %p225 = scmp.eq.s32.totalorder %s31, 0
      %p226 = por %p224, %p225
      %s228 = sadd.s32 %s227, 1
      %p231 = scmp.eq.s32.totalorder %s25, 1
      %p232 = scmp.ne.s32.totalorder %s227, %s229
      %p233 = scmp.eq.s32.totalorder %s25, 0
      %p234 = por %p232, %p233
      %p235 = scmp.ne.s32.totalorder %s227, %s229
      %p236 = scmp.eq.s32.totalorder %s30, 1
      %p237 = por %p235, %p236
      %p238 = scmp.ne.s32.totalorder %s229, %s230
      %p239 = scmp.eq.s32.totalorder %s30, 0
      %p240 = por %p238, %p239
      %p241 = scmp.ne.s32.totalorder %s229, %s230
      %p242 = scmp.eq.s32.totalorder %s31, 1
      %p243 = por %p241, %p242
      %p245 = scmp.ne.s32.totalorder %s230, %s244
      %p246 = scmp.eq.s32.totalorder %s31, 0
      %p247 = por %p245, %p246
      %s249 = sadd.s32 %s248, 1
      %p252 = scmp.eq.s32.totalorder %s25, 1
      %p253 = scmp.ne.s32.totalorder %s248, %s250
      %p254 = scmp.eq.s32.totalorder %s25, 0
      %p255 = por %p253, %p254
      %p256 = scmp.ne.s32.totalorder %s248, %s250
      %p257 = scmp.eq.s32.totalorder %s30, 1
      %p258 = por %p256, %p257
      %p259 = scmp.ne.s32.totalorder %s250, %s251
      %p260 = scmp.eq.s32.totalorder %s30, 0
      %p261 = por %p259, %p260
      %p262 = scmp.ne.s32.totalorder %s250, %s251
      %p263 = scmp.eq.s32.totalorder %s31, 1
      %p264 = por %p262, %p263
      %p266 = scmp.ne.s32.totalorder %s251, %s265
      %p267 = scmp.eq.s32.totalorder %s31, 0
      %p268 = por %p266, %p267
      %s270 = sadd.s32 %s269, 1
      %p273 = scmp.eq.s32.totalorder %s25, 1
      %p274 = scmp.ne.s32.totalorder %s269, %s271
      %p275 = scmp.eq.s32.totalorder %s25, 0
      %p276 = por %p274, %p275
      %p277 = scmp.ne.s32.totalorder %s269, %s271
      %p278 = scmp.eq.s32.totalorder %s30, 1
      %p279 = por %p277, %p278
      %p280 = scmp.ne.s32.totalorder %s271, %s272
      %p281 = scmp.eq.s32.totalorder %s30, 0
      %p282 = por %p280, %p281
      %p283 = scmp.ne.s32.totalorder %s271, %s272
      %p284 = scmp.eq.s32.totalorder %s31, 1
      %p285 = por %p283, %p284
      %p287 = scmp.ne.s32.totalorder %s272, %s286
      %p288 = scmp.eq.s32.totalorder %s31, 0
      %p289 = por %p287, %p288
      %s291 = sadd.s32 %s290, 1
      %p294 = scmp.eq.s32.totalorder %s25, 1
      %p295 = scmp.ne.s32.totalorder %s290, %s292
      %p296 = scmp.eq.s32.totalorder %s25, 0
      %p297 = por %p295, %p296
      %p298 = scmp.ne.s32.totalorder %s290, %s292
      %p299 = scmp.eq.s32.totalorder %s30, 1
      %p300 = por %p298, %p299
      %p301 = scmp.ne.s32.totalorder %s292, %s293
      %p302 = scmp.eq.s32.totalorder %s30, 0
      %p303 = por %p301, %p302
      %p304 = scmp.ne.s32.totalorder %s292, %s293
      %p305 = scmp.eq.s32.totalorder %s31, 1
      %p306 = por %p304, %p305
      %p308 = scmp.ne.s32.totalorder %s293, %s307
      %p309 = scmp.eq.s32.totalorder %s31, 0
      %p310 = por %p308, %p309
      %s311 = ssub.s32 %s25, %s32
      %p312 = scmp.eq.s32.totalorder %s311, 0
      %s314 = sadd.s32 %s313, 1
      %s315 = scalar_select %p312, %s313, %s314
      %p318 = pneg %p312
      %p319 = scmp.eq.s32.totalorder %s25, 1
      %p320 = por %p318, %p319
      %p321 = scmp.ne.s32.totalorder %s313, %s316
      %p322 = scmp.eq.s32.totalorder %s25, 0
      %p323 = por %p321, %p322
      %p324 = scmp.ne.s32.totalorder %s313, %s316
      %p325 = scmp.eq.s32.totalorder %s30, 1
      %p326 = por %p324, %p325
      %p327 = scmp.ne.s32.totalorder %s316, %s317
      %p328 = scmp.eq.s32.totalorder %s30, 0
      %p329 = por %p327, %p328
      %p330 = scmp.ne.s32.totalorder %s316, %s317
      %p331 = scmp.eq.s32.totalorder %s31, 1
      %p332 = por %p330, %p331
      %p334 = scmp.ne.s32.totalorder %s317, %s333
      %p335 = scmp.eq.s32.totalorder %s31, 0
      %p336 = por %p334, %p335
      %p337 = scmp.le.s32.totalorder 1, %s25
      %p338 = scmp.lt.s32.totalorder %s25, 3
      %p339 = pnand %p337, %p338
      %p340 = pneg %p339
      // Predicated region
      $region9: #{tpu_custom_call.1} parent=5 // pred_check
        _
      $region10: #{tpu_custom_call.1} parent=5 // pred_check_branch
        %342 = sbr.rel (%p339) target = $region12
      $region11: #{tpu_custom_call.1} parent=5 // pred_region
        %s343 = ssub.s32 %s25, 1
        // Predicated region
        $region13: #{tpu_custom_call.1} parent=11 // pred_check
          %p344 = pneg %p72
        $region14: #{tpu_custom_call.1} parent=11 // pred_check_branch
          %346 = sbr.rel (%p344) target = $region16
        $region15: #{tpu_custom_call.1} parent=11 // pred_region
          _
        $region16: #{tpu_custom_call.1} parent=11 // pred_fallthru
          _
        // Predicated region
        $region17: #{tpu_custom_call.1} parent=11 // pred_check
          %p347 = pneg %p93
        $region18: #{tpu_custom_call.1} parent=11 // pred_check_branch
          %349 = sbr.rel (%p347) target = $region20
        $region19: #{tpu_custom_call.1} parent=11 // pred_region
          _
        $region20: #{tpu_custom_call.1} parent=11 // pred_fallthru
          _
        // Predicated region
        $region21: #{tpu_custom_call.1} parent=11 // pred_check
          %p350 = pneg %p114
        $region22: #{tpu_custom_call.1} parent=11 // pred_check_branch
          %352 = sbr.rel (%p350) target = $region24
        $region23: #{tpu_custom_call.1} parent=11 // pred_region
          _
        $region24: #{tpu_custom_call.1} parent=11 // pred_fallthru
          _
        // Predicated region
        $region25: #{tpu_custom_call.1} parent=11 // pred_check
          %p353 = pneg %p135
        $region26: #{tpu_custom_call.1} parent=11 // pred_check_branch
          %355 = sbr.rel (%p353) target = $region28
        $region27: #{tpu_custom_call.1} parent=11 // pred_region
          %s357 = ssub.s32 16, 16
          %358 = vsyncadd [#allocation4], %s357
          %s360 = sshll.u32 [#allocation3], 4
          %s361 = int_to_ptr.vmem [resolvable:$true] %s360
          %363 = dma.hbm_to_vmem [thread:$0]  %s4, 16, %s361, [#allocation4]
        $region28: #{tpu_custom_call.1} parent=11 // pred_fallthru
          _
        // Predicated region
        $region29: #{tpu_custom_call.1} parent=11 // pred_check
          %p364 = pneg %p156
        $region30: #{tpu_custom_call.1} parent=11 // pred_check_branch
          %366 = sbr.rel (%p364) target = $region32
        $region31: #{tpu_custom_call.1} parent=11 // pred_region
          _
        $region32: #{tpu_custom_call.1} parent=11 // pred_fallthru
          _
        // Predicated region
        $region33: #{tpu_custom_call.1} parent=11 // pred_check
          %p367 = pneg %p177
        $region34: #{tpu_custom_call.1} parent=11 // pred_check_branch
          %369 = sbr.rel (%p367) target = $region36
        $region35: #{tpu_custom_call.1} parent=11 // pred_region
          %s371 = ssub.s32 16, 16
          %372 = vsyncadd [#allocation7], %s371
          %s374 = sshll.u32 [#allocation6], 4
          %s375 = int_to_ptr.vmem [resolvable:$true] %s374
          %377 = dma.hbm_to_vmem [thread:$0]  %s6, 16, %s375, [#allocation7]
        $region36: #{tpu_custom_call.1} parent=11 // pred_fallthru
          _
        // Predicated region
        $region37: #{tpu_custom_call.1} parent=11 // pred_check
          %p378 = pneg %p198
        $region38: #{tpu_custom_call.1} parent=11 // pred_check_branch
          %380 = sbr.rel (%p378) target = $region40
        $region39: #{tpu_custom_call.1} parent=11 // pred_region
          %s382 = ssub.s32 16, 16
          %383 = vsyncadd [#allocation7], %s382
          %s385 = sshll.u32 [#allocation8], 4
          %s386 = int_to_ptr.vmem [resolvable:$true] %s385
          %388 = dma.hbm_to_vmem [thread:$0]  %s7, 16, %s386, [#allocation7]
        $region40: #{tpu_custom_call.1} parent=11 // pred_fallthru
          _
        // Predicated region
        $region41: #{tpu_custom_call.1} parent=11 // pred_check
          %p389 = pneg %p219
        $region42: #{tpu_custom_call.1} parent=11 // pred_check_branch
          %391 = sbr.rel (%p389) target = $region44
        $region43: #{tpu_custom_call.1} parent=11 // pred_region
          %s393 = ssub.s32 16, 16
          %394 = vsyncadd [#allocation10], %s393
          %s396 = sshll.u32 [#allocation9], 4
          %s397 = int_to_ptr.vmem [resolvable:$true] %s396
          %399 = dma.hbm_to_vmem [thread:$0]  %s8, 16, %s397, [#allocation10]
        $region44: #{tpu_custom_call.1} parent=11 // pred_fallthru
          _
        // Predicated region
        $region45: #{tpu_custom_call.1} parent=11 // pred_check
          %p400 = pneg %p240
        $region46: #{tpu_custom_call.1} parent=11 // pred_check_branch
          %402 = sbr.rel (%p400) target = $region48
        $region47: #{tpu_custom_call.1} parent=11 // pred_region
          _
        $region48: #{tpu_custom_call.1} parent=11 // pred_fallthru
          _
        // Predicated region
        $region49: #{tpu_custom_call.1} parent=11 // pred_check
          %p403 = pneg %p261
        $region50: #{tpu_custom_call.1} parent=11 // pred_check_branch
          %405 = sbr.rel (%p403) target = $region52
        $region51: #{tpu_custom_call.1} parent=11 // pred_region
          _
        $region52: #{tpu_custom_call.1} parent=11 // pred_fallthru
          _
        // Predicated region
        $region53: #{tpu_custom_call.1} parent=11 // pred_check
          %p406 = pneg %p282
        $region54: #{tpu_custom_call.1} parent=11 // pred_check_branch
          %408 = sbr.rel (%p406) target = $region56
        $region55: #{tpu_custom_call.1} parent=11 // pred_region
          _
        $region56: #{tpu_custom_call.1} parent=11 // pred_fallthru
          _
        // Predicated region
        $region57: #{tpu_custom_call.1} parent=11 // pred_check
          %p409 = pneg %p303
        $region58: #{tpu_custom_call.1} parent=11 // pred_check_branch
          %411 = sbr.rel (%p409) target = $region60
        $region59: #{tpu_custom_call.1} parent=11 // pred_region
          _
        $region60: #{tpu_custom_call.1} parent=11 // pred_fallthru
          _
      $region12: #{tpu_custom_call.1} parent=5 // pred_fallthru
        _
      %p412 = scmp.lt.s32.totalorder %s25, 2
      // Predicated region
      $region61: #{tpu_custom_call.1} parent=5 // pred_check
        %p413 = pneg %p412
      $region62: #{tpu_custom_call.1} parent=5 // pred_check_branch
        %415 = sbr.rel (%p413) target = $region64
      $region63: #{tpu_custom_call.1} parent=5 // pred_region
        // Predicated region
        $region65: #{tpu_custom_call.1} parent=63 // pred_check
          %p416 = pneg %p45
        $region66: #{tpu_custom_call.1} parent=63 // pred_check_branch
          %418 = sbr.rel (%p416) target = $region68
        $region67: #{tpu_custom_call.1} parent=63 // pred_region
          %p419 = scmp.lt.s32.totalorder %s25, 1
          %s420 = scalar_select %p419, %s25, 1
          %s421 = smul.addr %s420, 8
          %s422 = scalar_lea.vmem %s0, %s421
        $region68: #{tpu_custom_call.1} parent=63 // pred_fallthru
          _
      $region64: #{tpu_custom_call.1} parent=5 // pred_fallthru
        _
      %p423 = scmp.le.s32.totalorder 1, %s25
      %p424 = scmp.lt.s32.totalorder %s25, 3
      %p425 = pnand %p423, %p424
      %p426 = pneg %p425
      // Predicated region
      $region69: #{tpu_custom_call.1} parent=5 // pred_check
        _
      $region70: #{tpu_custom_call.1} parent=5 // pred_check_branch
        %428 = sbr.rel (%p425) target = $region72
      $region71: #{tpu_custom_call.1} parent=5 // pred_region
        %s429 = ssub.s32 %s25, 1
        // Predicated region
        $region73: #{tpu_custom_call.1} parent=71 // pred_check
          %p430 = pneg %p135
        $region74: #{tpu_custom_call.1} parent=71 // pred_check_branch
          %432 = sbr.rel (%p430) target = $region76
        $region75: #{tpu_custom_call.1} parent=71 // pred_region
          %433 = dma.done [#allocation4], 16
        $region76: #{tpu_custom_call.1} parent=71 // pred_fallthru
          _
        // Predicated region
        $region77: #{tpu_custom_call.1} parent=71 // pred_check
          %p434 = pneg %p177
        $region78: #{tpu_custom_call.1} parent=71 // pred_check_branch
          %436 = sbr.rel (%p434) target = $region80
        $region79: #{tpu_custom_call.1} parent=71 // pred_region
          %437 = dma.done [#allocation7], 16
        $region80: #{tpu_custom_call.1} parent=71 // pred_fallthru
          _
        // Predicated region
        $region81: #{tpu_custom_call.1} parent=71 // pred_check
          %p438 = pneg %p198
        $region82: #{tpu_custom_call.1} parent=71 // pred_check_branch
          %440 = sbr.rel (%p438) target = $region84
        $region83: #{tpu_custom_call.1} parent=71 // pred_region
          %441 = dma.done [#allocation7], 16
        $region84: #{tpu_custom_call.1} parent=71 // pred_fallthru
          _
        // Predicated region
        $region85: #{tpu_custom_call.1} parent=71 // pred_check
          %p442 = pneg %p219
        $region86: #{tpu_custom_call.1} parent=71 // pred_check_branch
          %444 = sbr.rel (%p442) target = $region88
        $region87: #{tpu_custom_call.1} parent=71 // pred_region
          %445 = dma.done [#allocation10], 16
        $region88: #{tpu_custom_call.1} parent=71 // pred_fallthru
          _
        %p446 = scmp.lt.s32.totalorder %s30, 1
        %s447 = scalar_select %p446, %s30, 1
        %s448 = smul.addr %s447, 8
        %s449 = scalar_lea.vmem %s0, %s448
        %p450 = pneg %p51
        %p451 = pneg %p48
        %p452 = pneg %p72
        %p453 = pneg %p69
        %p454 = pneg %p93
        %p455 = pneg %p90
        %p456 = pneg %p114
        %p457 = pneg %p111
        %p458 = pneg %p135
        %p459 = pneg %p132
        %p460 = pneg %p156
        %p461 = pneg %p153
        %p462 = pneg %p177
        %p463 = pneg %p174
        %p464 = pneg %p198
        %p465 = pneg %p195
        %p466 = pneg %p219
        %p467 = pneg %p216
        %p468 = pneg %p240
        %p469 = pneg %p237
        %p470 = pneg %p261
        %p471 = pneg %p258
        %p472 = pneg %p282
        %p473 = pneg %p279
        %p474 = pneg %p303
        %p475 = pneg %p300
        %p476 = pneg %p329
        %p477 = pneg %p326
        %s478 = sand.u32 %s316, 1
        %s479 = scalar_lea.sflag [#allocation5], %s478
        %s480 = sand.u32 %s316, 1
        %s481 = smul.addr %s480, 8
        %s482 = scalar_lea.vmem [#allocation11], %s481
        %p483 = scmp.lt.s32.totalorder %s30, 1
        %s484 = scalar_select %p483, %s30, 1
        %s485 = smul.addr %s484, 8
        %s486 = scalar_lea.vmem %s0, %s485
        %v488 = vld [vmem:[%s486] sm:$0xff]
        %v489 = vld [vmem:[%s1] sm:$0x1]
        %v490 = vld [vmem:[%s2] sm:$0x1]
        %vm491 = vcmask 261120
        %v492 = vsel %vm491, %v488, 0.0
        %493 = vadd.xlane.f32.xlu0 %v492
        %v494 = vpop.xlane.xlu0 %493
        %v495 = vrcp.pop 32.0
        %v496 = vmul.f32 %v494, %v495
        %v497 = vsub.f32 %v488, %v496
        %v498 = vmul.f32 %v497, %v497
        %v499 = vsel %vm491, %v498, 0.0
        %500 = vadd.xlane.f32.xlu0 %v499
        %v501 = vpop.xlane.xlu0 %500
        %v502 = vmul.f32 %v501, %v495
        %v503 = vadd.f32 %v502, 1e-05
        %v504 = vrsqrt.pop %v503
        %v505 = vmul.f32 %v497, %v504
        %v507 = vlaneseq
        %v508 = vshrl.u32 %v507, 7
        %v509 = vsub.s32 0, %v508
        %v510 = vrot.slane %v489, %v509
        %v512 = vmul.f32 %v505, %v510
        %v514 = vlaneseq
        %v515 = vshrl.u32 %v514, 7
        %v516 = vsub.s32 0, %v515
        %v517 = vrot.slane %v490, %v516
        %v519 = vadd.f32 %v512, %v517
        %v520 = vld [vmem:[%s3] sm:$0xf]
        %v521 = vld [vmem:[%s3 + $0x4] sm:$0xf]
        %v522 = vld [vmem:[%s3 + $0x8] sm:$0xf]
        %v523 = vld [vmem:[%s3 + $0xc] sm:$0xf]
        %v524 = vpack.c.bf16 %v519, %v519
        %v525 = vld [vmem:[#allocation3] sm:$0x1]
        %v527 = vlaneseq
        %v528 = vshrl.u32 %v527, 7
        %v529 = vsub.s32 0, %v528
        %v530 = vrot.slane %v525, %v529
        %v536 = vunpack.c.l.b16 %v520
        %v537 = vunpack.c.l.b16 %v521
        %v538 = vunpack.c.l.b16 %v522
        %v539 = vunpack.c.l.b16 %v523
        %v540 = vpack.c.b16 %v537, %v536
        %v541 = vpack.c.b16 %v539, %v538
        %v545 = vsel %vm491, %v524, 0
        %547 = vmatprep.subr.bf16.mxu0 0
        %548 = vmatpush1.bf16.msra.mxu0 %v540
        %549 = vmatprep.subr.bf16.mxu0 0
        %550 = vmatpush1.bf16.msra.mxu0 %v541
        %551 = vmatprep.subr.bf16.mxu0 0
        %552 = vmatpush1.bf16.msra.mxu0 0
        %553 = vmatprep.subr.bf16.mxu0 0
        %554 = vmatpush1.bf16.msra.mxu0 0
        %555 = vmatprep.subr.bf16.mxu0 0
        %556 = vmatpush1.bf16.msra.mxu0 0
        %557 = vmatprep.subr.bf16.mxu0 0
        %558 = vmatpush1.bf16.msra.mxu0 0
        %559 = vmatprep.subr.bf16.mxu0 0
        %560 = vmatpush1.bf16.msra.mxu0 0
        %561 = vmatprep.subr.bf16.mxu0 0
        %562 = vmatpush1.bf16.msra.mxu0 0
        %563 = vmatprep.subr.bf16.mxu0 0
        %564 = vmatpush1.bf16.msra.mxu0 0
        %565 = vmatprep.subr.bf16.mxu0 0
        %566 = vmatpush1.bf16.msra.mxu0 0
        %567 = vmatprep.subr.bf16.mxu0 0
        %568 = vmatpush1.bf16.msra.mxu0 0
        %569 = vmatprep.subr.bf16.mxu0 0
        %570 = vmatpush1.bf16.msra.mxu0 0
        %571 = vmatprep.subr.bf16.mxu0 0
        %572 = vmatpush1.bf16.msra.mxu0 0
        %573 = vmatprep.subr.bf16.mxu0 0
        %574 = vmatpush1.bf16.msra.mxu0 0
        %575 = vmatprep.subr.bf16.mxu0 0
        %576 = vmatpush1.bf16.msra.mxu0 0
        %577 = vmatprep.subr.bf16.mxu0 0
        %578 = vmatpush1.bf16.msra.mxu0 0
        %579 = vmatprep.mubr.bf16.mxu0 0
        %580 = vmatmul.mubr.bf16.gmra.mrb[0].mxu0 %v545
        %v581 = vpop.f32.mrb[0].mxu0
        %v582 = vadd.f32 %v530, %v581
        %v583 = vpop.f32.mrb[0].mxu0
        %v584 = vpop.f32.mrb[0].mxu0
        %v585 = vpop.f32.mrb[0].mxu0
        %586 = vdwg.mxu0
        %587 = vst.msk [vmem:[#allocation2] sm:$0xff] %vm491, 0.0
        %v588 = vpack.c.bf16 %v582, %v582
        %590 = vrot.lane.b32.xlu0 %v588, 96
        %v591 = vpop.permute.xlu0 %590
        %vm592 = vcmask 64512
        %v594 = vsel %vm592, %v588, 0
        %v597 = vsel %vm592, %v591, 0
        %599 = vmatprep.subr.bf16.mxu0 0
        %600 = vmatpush1.bf16.xpose.msra.mxu0 %v597
        %601 = vmatprep.subr.bf16.mxu0 0
        %602 = vmatpush1.bf16.xpose.msra.mxu0 0
        %603 = vmatprep.subr.bf16.mxu0 0
        %604 = vmatpush1.bf16.xpose.msra.mxu0 0
        %605 = vmatprep.subr.bf16.mxu0 0
        %606 = vmatpush1.bf16.xpose.msra.mxu0 0
        %607 = vmatprep.subr.bf16.mxu0 0
        %608 = vmatpush1.bf16.xpose.msra.mxu0 0
        %609 = vmatprep.subr.bf16.mxu0 0
        %610 = vmatpush1.bf16.xpose.msra.mxu0 0
        %611 = vmatprep.subr.bf16.mxu0 0
        %612 = vmatpush1.bf16.xpose.msra.mxu0 0
        %613 = vmatprep.subr.bf16.mxu0 0
        %614 = vmatpush1.bf16.xpose.msra.mxu0 0
        %615 = vmatprep.subr.bf16.mxu0 0
        %616 = vmatpush1.bf16.xpose.msra.mxu0 0
        %617 = vmatprep.subr.bf16.mxu0 0
        %618 = vmatpush1.bf16.xpose.msra.mxu0 0
        %619 = vmatprep.subr.bf16.mxu0 0
        %620 = vmatpush1.bf16.xpose.msra.mxu0 0
        %621 = vmatprep.subr.bf16.mxu0 0
        %622 = vmatpush1.bf16.xpose.msra.mxu0 0
        %623 = vmatprep.subr.bf16.mxu0 0
        %624 = vmatpush1.bf16.xpose.msra.mxu0 0
        %625 = vmatprep.subr.bf16.mxu0 0
        %626 = vmatpush1.bf16.xpose.msra.mxu0 0
        %627 = vmatprep.subr.bf16.mxu0 0
        %628 = vmatpush1.bf16.xpose.msra.mxu0 0
        %629 = vmatprep.subr.bf16.mxu0 0
        %630 = vmatpush1.bf16.xpose.msra.mxu0 0
        %631 = vmatprep.mubr.bf16.mxu0 0
        %632 = vmatmul.mubr.bf16.gmra.mrb[0].mxu0 %v594
        %v633 = vpop.f32.mrb[0].mxu0
        %v634 = vadd.f32 0.0, %v633
        %v635 = vpop.f32.mrb[0].mxu0
        %v636 = vpop.f32.mrb[0].mxu0
        %v637 = vpop.f32.mrb[0].mxu0
        %638 = vdwg.mxu0
        %v639 = vsel %vm592, %v634, -inf
        %640 = vmax.xlane.f32.xlu0 %v639
        %v641 = vpop.xlane.xlu0 %640
        %v642 = vsub.f32 %v634, %v641
        %v643 = vmul.f32 %v642, 1.442695
        %v644 = vpow.pop %v643
        %v645 = vsel %vm592, %v644, 0.0
        %646 = vadd.xlane.f32.xlu0 %v645
        %v647 = vpop.xlane.xlu0 %646
        %v648 = vrcp.pop %v647
        %v649 = vmul.f32 %v644, %v648
        %v650 = vpack.c.bf16 %v649, %v649
        %651 = vrot.lane.b32.xlu0 %v588, 64
        %v652 = vpop.permute.xlu0 %651
        %v654 = vsel %vm592, %v650, 0
        %vm656 = vcmask 1043456
        %v658 = vsel %vm656, %v652, 0
        %660 = vmatprep.subr.bf16.mxu0 0
        %661 = vmatpush1.bf16.msra.mxu0 %v658
        %662 = vmatprep.subr.bf16.mxu0 0
        %663 = vmatpush1.bf16.msra.mxu0 0
        %664 = vmatprep.subr.bf16.mxu0 0
        %665 = vmatpush1.bf16.msra.mxu0 0
        %666 = vmatprep.subr.bf16.mxu0 0
        %667 = vmatpush1.bf16.msra.mxu0 0
        %668 = vmatprep.subr.bf16.mxu0 0
        %669 = vmatpush1.bf16.msra.mxu0 0
        %670 = vmatprep.subr.bf16.mxu0 0
        %671 = vmatpush1.bf16.msra.mxu0 0
        %672 = vmatprep.subr.bf16.mxu0 0
        %673 = vmatpush1.bf16.msra.mxu0 0
        %674 = vmatprep.subr.bf16.mxu0 0
        %675 = vmatpush1.bf16.msra.mxu0 0
        %676 = vmatprep.subr.bf16.mxu0 0
        %677 = vmatpush1.bf16.msra.mxu0 0
        %678 = vmatprep.subr.bf16.mxu0 0
        %679 = vmatpush1.bf16.msra.mxu0 0
        %680 = vmatprep.subr.bf16.mxu0 0
        %681 = vmatpush1.bf16.msra.mxu0 0
        %682 = vmatprep.subr.bf16.mxu0 0
        %683 = vmatpush1.bf16.msra.mxu0 0
        %684 = vmatprep.subr.bf16.mxu0 0
        %685 = vmatpush1.bf16.msra.mxu0 0
        %686 = vmatprep.subr.bf16.mxu0 0
        %687 = vmatpush1.bf16.msra.mxu0 0
        %688 = vmatprep.subr.bf16.mxu0 0
        %689 = vmatpush1.bf16.msra.mxu0 0
        %690 = vmatprep.subr.bf16.mxu0 0
        %691 = vmatpush1.bf16.msra.mxu0 0
        %692 = vmatprep.mubr.bf16.mxu0 0
        %693 = vmatmul.mubr.bf16.gmra.mrb[0].mxu0 %v654
        %v694 = vpop.f32.mrb[0].mxu0
        %v695 = vadd.f32 0.0, %v694
        %v696 = vpop.f32.mrb[0].mxu0
        %v697 = vpop.f32.mrb[0].mxu0
        %v698 = vpop.f32.mrb[0].mxu0
        %699 = vdwg.mxu0
        %v700 = vld [vmem:[#allocation2] sm:$0xff]
        %v701 = vld [vmem:[%s5] sm:$0xf]
        %v702 = vpack.c.bf16 %v695, %v695
        %v704 = vsel %vm592, %v702, 0
        %v707 = vsel %vm656, %v701, 0
        %709 = vmatprep.subr.bf16.mxu0 0
        %710 = vmatpush1.bf16.msra.mxu0 %v707
        %711 = vmatprep.subr.bf16.mxu0 0
        %712 = vmatpush1.bf16.msra.mxu0 0
        %713 = vmatprep.subr.bf16.mxu0 0
        %714 = vmatpush1.bf16.msra.mxu0 0
        %715 = vmatprep.subr.bf16.mxu0 0
        %716 = vmatpush1.bf16.msra.mxu0 0
        %717 = vmatprep.subr.bf16.mxu0 0
        %718 = vmatpush1.bf16.msra.mxu0 0
        %719 = vmatprep.subr.bf16.mxu0 0
        %720 = vmatpush1.bf16.msra.mxu0 0
        %721 = vmatprep.subr.bf16.mxu0 0
        %722 = vmatpush1.bf16.msra.mxu0 0
        %723 = vmatprep.subr.bf16.mxu0 0
        %724 = vmatpush1.bf16.msra.mxu0 0
        %725 = vmatprep.subr.bf16.mxu0 0
        %726 = vmatpush1.bf16.msra.mxu0 0
        %727 = vmatprep.subr.bf16.mxu0 0
        %728 = vmatpush1.bf16.msra.mxu0 0
        %729 = vmatprep.subr.bf16.mxu0 0
        %730 = vmatpush1.bf16.msra.mxu0 0
        %731 = vmatprep.subr.bf16.mxu0 0
        %732 = vmatpush1.bf16.msra.mxu0 0
        %733 = vmatprep.subr.bf16.mxu0 0
        %734 = vmatpush1.bf16.msra.mxu0 0
        %735 = vmatprep.subr.bf16.mxu0 0
        %736 = vmatpush1.bf16.msra.mxu0 0
        %737 = vmatprep.subr.bf16.mxu0 0
        %738 = vmatpush1.bf16.msra.mxu0 0
        %739 = vmatprep.subr.bf16.mxu0 0
        %740 = vmatpush1.bf16.msra.mxu0 0
        %741 = vmatprep.mubr.bf16.mxu0 0
        %742 = vmatmul.mubr.bf16.gmra.mrb[0].mxu0 %v704
        %v743 = vpop.f32.mrb[0].mxu0
        %v744 = vadd.f32 0.0, %v743
        %v745 = vpop.f32.mrb[0].mxu0
        %v746 = vpop.f32.mrb[0].mxu0
        %v747 = vpop.f32.mrb[0].mxu0
        %748 = vdwg.mxu0
        %v749 = vadd.f32 %v700, %v744
        %750 = vst.msk [vmem:[#allocation2] sm:$0xff] %vm491, %v749
        %751 = vrot.lane.b32.xlu0 %v588, 120
        %v752 = vpop.permute.xlu0 %751
        %753 = vrot.lane.b32.xlu0 %v588, 88
        %v754 = vpop.permute.xlu0 %753
        %v756 = vsel %vm592, %v752, 0
        %v759 = vsel %vm592, %v754, 0
        %761 = vmatprep.subr.bf16.mxu0 0
        %762 = vmatpush1.bf16.xpose.msra.mxu0 %v759
        %763 = vmatprep.subr.bf16.mxu0 0
        %764 = vmatpush1.bf16.xpose.msra.mxu0 0
        %765 = vmatprep.subr.bf16.mxu0 0
        %766 = vmatpush1.bf16.xpose.msra.mxu0 0
        %767 = vmatprep.subr.bf16.mxu0 0
        %768 = vmatpush1.bf16.xpose.msra.mxu0 0
        %769 = vmatprep.subr.bf16.mxu0 0
        %770 = vmatpush1.bf16.xpose.msra.mxu0 0
        %771 = vmatprep.subr.bf16.mxu0 0
        %772 = vmatpush1.bf16.xpose.msra.mxu0 0
        %773 = vmatprep.subr.bf16.mxu0 0
        %774 = vmatpush1.bf16.xpose.msra.mxu0 0
        %775 = vmatprep.subr.bf16.mxu0 0
        %776 = vmatpush1.bf16.xpose.msra.mxu0 0
        %777 = vmatprep.subr.bf16.mxu0 0
        %778 = vmatpush1.bf16.xpose.msra.mxu0 0
        %779 = vmatprep.subr.bf16.mxu0 0
        %780 = vmatpush1.bf16.xpose.msra.mxu0 0
        %781 = vmatprep.subr.bf16.mxu0 0
        %782 = vmatpush1.bf16.xpose.msra.mxu0 0
        %783 = vmatprep.subr.bf16.mxu0 0
        %784 = vmatpush1.bf16.xpose.msra.mxu0 0
        %785 = vmatprep.subr.bf16.mxu0 0
        %786 = vmatpush1.bf16.xpose.msra.mxu0 0
        %787 = vmatprep.subr.bf16.mxu0 0
        %788 = vmatpush1.bf16.xpose.msra.mxu0 0
        %789 = vmatprep.subr.bf16.mxu0 0
        %790 = vmatpush1.bf16.xpose.msra.mxu0 0
        %791 = vmatprep.subr.bf16.mxu0 0
        %792 = vmatpush1.bf16.xpose.msra.mxu0 0
        %793 = vmatprep.mubr.bf16.mxu0 0
        %794 = vmatmul.mubr.bf16.gmra.mrb[0].mxu0 %v756
        %v795 = vpop.f32.mrb[0].mxu0
        %v796 = vadd.f32 0.0, %v795
        %v797 = vpop.f32.mrb[0].mxu0
        %v798 = vpop.f32.mrb[0].mxu0
        %v799 = vpop.f32.mrb[0].mxu0
        %800 = vdwg.mxu0
        %v801 = vsel %vm592, %v796, -inf
        %802 = vmax.xlane.f32.xlu0 %v801
        %v803 = vpop.xlane.xlu0 %802
        %v804 = vsub.f32 %v796, %v803
        %v805 = vmul.f32 %v804, 1.442695
        %v806 = vpow.pop %v805
        %v807 = vsel %vm592, %v806, 0.0
        %808 = vadd.xlane.f32.xlu0 %v807
        %v809 = vpop.xlane.xlu0 %808
        %v810 = vrcp.pop %v809
        %v811 = vmul.f32 %v806, %v810
        %v812 = vpack.c.bf16 %v811, %v811
        %813 = vrot.lane.b32.xlu0 %v588, 56
        %v814 = vpop.permute.xlu0 %813
        %v816 = vsel %vm592, %v812, 0
        %v819 = vsel %vm656, %v814, 0
        %821 = vmatprep.subr.bf16.mxu0 0
        %822 = vmatpush1.bf16.msra.mxu0 %v819
        %823 = vmatprep.subr.bf16.mxu0 0
        %824 = vmatpush1.bf16.msra.mxu0 0
        %825 = vmatprep.subr.bf16.mxu0 0
        %826 = vmatpush1.bf16.msra.mxu0 0
        %827 = vmatprep.subr.bf16.mxu0 0
        %828 = vmatpush1.bf16.msra.mxu0 0
        %829 = vmatprep.subr.bf16.mxu0 0
        %830 = vmatpush1.bf16.msra.mxu0 0
        %831 = vmatprep.subr.bf16.mxu0 0
        %832 = vmatpush1.bf16.msra.mxu0 0
        %833 = vmatprep.subr.bf16.mxu0 0
        %834 = vmatpush1.bf16.msra.mxu0 0
        %835 = vmatprep.subr.bf16.mxu0 0
        %836 = vmatpush1.bf16.msra.mxu0 0
        %837 = vmatprep.subr.bf16.mxu0 0
        %838 = vmatpush1.bf16.msra.mxu0 0
        %839 = vmatprep.subr.bf16.mxu0 0
        %840 = vmatpush1.bf16.msra.mxu0 0
        %841 = vmatprep.subr.bf16.mxu0 0
        %842 = vmatpush1.bf16.msra.mxu0 0
        %843 = vmatprep.subr.bf16.mxu0 0
        %844 = vmatpush1.bf16.msra.mxu0 0
        %845 = vmatprep.subr.bf16.mxu0 0
        %846 = vmatpush1.bf16.msra.mxu0 0
        %847 = vmatprep.subr.bf16.mxu0 0
        %848 = vmatpush1.bf16.msra.mxu0 0
        %849 = vmatprep.subr.bf16.mxu0 0
        %850 = vmatpush1.bf16.msra.mxu0 0
        %851 = vmatprep.subr.bf16.mxu0 0
        %852 = vmatpush1.bf16.msra.mxu0 0
        %853 = vmatprep.mubr.bf16.mxu0 0
        %854 = vmatmul.mubr.bf16.gmra.mrb[0].mxu0 %v816
        %v855 = vpop.f32.mrb[0].mxu0
        %v856 = vadd.f32 0.0, %v855
        %v857 = vpop.f32.mrb[0].mxu0
        %v858 = vpop.f32.mrb[0].mxu0
        %v859 = vpop.f32.mrb[0].mxu0
        %860 = vdwg.mxu0
        %v861 = vld [vmem:[#allocation2] sm:$0xff]
        %s862 = scalar_lea.vmem %s5, 4
        %v863 = vld [vmem:[%s862] sm:$0xf]
        %v864 = vpack.c.bf16 %v856, %v856
        %v866 = vsel %vm592, %v864, 0
        %v869 = vsel %vm656, %v863, 0
        %871 = vmatprep.subr.bf16.mxu0 0
        %872 = vmatpush1.bf16.msra.mxu0 %v869
        %873 = vmatprep.subr.bf16.mxu0 0
        %874 = vmatpush1.bf16.msra.mxu0 0
        %875 = vmatprep.subr.bf16.mxu0 0
        %876 = vmatpush1.bf16.msra.mxu0 0
        %877 = vmatprep.subr.bf16.mxu0 0
        %878 = vmatpush1.bf16.msra.mxu0 0
        %879 = vmatprep.subr.bf16.mxu0 0
        %880 = vmatpush1.bf16.msra.mxu0 0
        %881 = vmatprep.subr.bf16.mxu0 0
        %882 = vmatpush1.bf16.msra.mxu0 0
        %883 = vmatprep.subr.bf16.mxu0 0
        %884 = vmatpush1.bf16.msra.mxu0 0
        %885 = vmatprep.subr.bf16.mxu0 0
        %886 = vmatpush1.bf16.msra.mxu0 0
        %887 = vmatprep.subr.bf16.mxu0 0
        %888 = vmatpush1.bf16.msra.mxu0 0
        %889 = vmatprep.subr.bf16.mxu0 0
        %890 = vmatpush1.bf16.msra.mxu0 0
        %891 = vmatprep.subr.bf16.mxu0 0
        %892 = vmatpush1.bf16.msra.mxu0 0
        %893 = vmatprep.subr.bf16.mxu0 0
        %894 = vmatpush1.bf16.msra.mxu0 0
        %895 = vmatprep.subr.bf16.mxu0 0
        %896 = vmatpush1.bf16.msra.mxu0 0
        %897 = vmatprep.subr.bf16.mxu0 0
        %898 = vmatpush1.bf16.msra.mxu0 0
        %899 = vmatprep.subr.bf16.mxu0 0
        %900 = vmatpush1.bf16.msra.mxu0 0
        %901 = vmatprep.subr.bf16.mxu0 0
        %902 = vmatpush1.bf16.msra.mxu0 0
        %903 = vmatprep.mubr.bf16.mxu0 0
        %904 = vmatmul.mubr.bf16.gmra.mrb[0].mxu0 %v866
        %v905 = vpop.f32.mrb[0].mxu0
        %v906 = vadd.f32 0.0, %v905
        %v907 = vpop.f32.mrb[0].mxu0
        %v908 = vpop.f32.mrb[0].mxu0
        %v909 = vpop.f32.mrb[0].mxu0
        %910 = vdwg.mxu0
        %v911 = vadd.f32 %v861, %v906
        %912 = vst.msk [vmem:[#allocation2] sm:$0xff] %vm491, %v911
        %913 = vrot.lane.b32.xlu0 %v588, 112
        %v914 = vpop.permute.xlu0 %913
        %915 = vrot.lane.b32.xlu0 %v588, 80
        %v916 = vpop.permute.xlu0 %915
        %v918 = vsel %vm592, %v914, 0
        %v921 = vsel %vm592, %v916, 0
        %923 = vmatprep.subr.bf16.mxu0 0
        %924 = vmatpush1.bf16.xpose.msra.mxu0 %v921
        %925 = vmatprep.subr.bf16.mxu0 0
        %926 = vmatpush1.bf16.xpose.msra.mxu0 0
        %927 = vmatprep.subr.bf16.mxu0 0
        %928 = vmatpush1.bf16.xpose.msra.mxu0 0
        %929 = vmatprep.subr.bf16.mxu0 0
        %930 = vmatpush1.bf16.xpose.msra.mxu0 0
        %931 = vmatprep.subr.bf16.mxu0 0
        %932 = vmatpush1.bf16.xpose.msra.mxu0 0
        %933 = vmatprep.subr.bf16.mxu0 0
        %934 = vmatpush1.bf16.xpose.msra.mxu0 0
        %935 = vmatprep.subr.bf16.mxu0 0
        %936 = vmatpush1.bf16.xpose.msra.mxu0 0
        %937 = vmatprep.subr.bf16.mxu0 0
        %938 = vmatpush1.bf16.xpose.msra.mxu0 0
        %939 = vmatprep.subr.bf16.mxu0 0
        %940 = vmatpush1.bf16.xpose.msra.mxu0 0
        %941 = vmatprep.subr.bf16.mxu0 0
        %942 = vmatpush1.bf16.xpose.msra.mxu0 0
        %943 = vmatprep.subr.bf16.mxu0 0
        %944 = vmatpush1.bf16.xpose.msra.mxu0 0
        %945 = vmatprep.subr.bf16.mxu0 0
        %946 = vmatpush1.bf16.xpose.msra.mxu0 0
        %947 = vmatprep.subr.bf16.mxu0 0
        %948 = vmatpush1.bf16.xpose.msra.mxu0 0
        %949 = vmatprep.subr.bf16.mxu0 0
        %950 = vmatpush1.bf16.xpose.msra.mxu0 0
        %951 = vmatprep.subr.bf16.mxu0 0
        %952 = vmatpush1.bf16.xpose.msra.mxu0 0
        %953 = vmatprep.subr.bf16.mxu0 0
        %954 = vmatpush1.bf16.xpose.msra.mxu0 0
        %955 = vmatprep.mubr.bf16.mxu0 0
        %956 = vmatmul.mubr.bf16.gmra.mrb[0].mxu0 %v918
        %v957 = vpop.f32.mrb[0].mxu0
        %v958 = vadd.f32 0.0, %v957
        %v959 = vpop.f32.mrb[0].mxu0
        %v960 = vpop.f32.mrb[0].mxu0
        %v961 = vpop.f32.mrb[0].mxu0
        %962 = vdwg.mxu0
        %v963 = vsel %vm592, %v958, -inf
        %964 = vmax.xlane.f32.xlu0 %v963
        %v965 = vpop.xlane.xlu0 %964
        %v966 = vsub.f32 %v958, %v965
        %v967 = vmul.f32 %v966, 1.442695
        %v968 = vpow.pop %v967
        %v969 = vsel %vm592, %v968, 0.0
        %970 = vadd.xlane.f32.xlu0 %v969
        %v971 = vpop.xlane.xlu0 %970
        %v972 = vrcp.pop %v971
        %v973 = vmul.f32 %v968, %v972
        %v974 = vpack.c.bf16 %v973, %v973
        %975 = vrot.lane.b32.xlu0 %v588, 48
        %v976 = vpop.permute.xlu0 %975
        %v978 = vsel %vm592, %v974, 0
        %v981 = vsel %vm656, %v976, 0
        %983 = vmatprep.subr.bf16.mxu0 0
        %984 = vmatpush1.bf16.msra.mxu0 %v981
        %985 = vmatprep.subr.bf16.mxu0 0
        %986 = vmatpush1.bf16.msra.mxu0 0
        %987 = vmatprep.subr.bf16.mxu0 0
        %988 = vmatpush1.bf16.msra.mxu0 0
        %989 = vmatprep.subr.bf16.mxu0 0
        %990 = vmatpush1.bf16.msra.mxu0 0
        %991 = vmatprep.subr.bf16.mxu0 0
        %992 = vmatpush1.bf16.msra.mxu0 0
        %993 = vmatprep.subr.bf16.mxu0 0
        %994 = vmatpush1.bf16.msra.mxu0 0
        %995 = vmatprep.subr.bf16.mxu0 0
        %996 = vmatpush1.bf16.msra.mxu0 0
        %997 = vmatprep.subr.bf16.mxu0 0
        %998 = vmatpush1.bf16.msra.mxu0 0
        %999 = vmatprep.subr.bf16.mxu0 0
        %1000 = vmatpush1.bf16.msra.mxu0 0
        %1001 = vmatprep.subr.bf16.mxu0 0
        %1002 = vmatpush1.bf16.msra.mxu0 0
        %1003 = vmatprep.subr.bf16.mxu0 0
        %1004 = vmatpush1.bf16.msra.mxu0 0
        %1005 = vmatprep.subr.bf16.mxu0 0
        %1006 = vmatpush1.bf16.msra.mxu0 0
        %1007 = vmatprep.subr.bf16.mxu0 0
        %1008 = vmatpush1.bf16.msra.mxu0 0
        %1009 = vmatprep.subr.bf16.mxu0 0
        %1010 = vmatpush1.bf16.msra.mxu0 0
        %1011 = vmatprep.subr.bf16.mxu0 0
        %1012 = vmatpush1.bf16.msra.mxu0 0
        %1013 = vmatprep.subr.bf16.mxu0 0
        %1014 = vmatpush1.bf16.msra.mxu0 0
        %1015 = vmatprep.mubr.bf16.mxu0 0
        %1016 = vmatmul.mubr.bf16.gmra.mrb[0].mxu0 %v978
        %v1017 = vpop.f32.mrb[0].mxu0
        %v1018 = vadd.f32 0.0, %v1017
        %v1019 = vpop.f32.mrb[0].mxu0
        %v1020 = vpop.f32.mrb[0].mxu0
        %v1021 = vpop.f32.mrb[0].mxu0
        %1022 = vdwg.mxu0
        %v1023 = vld [vmem:[#allocation2] sm:$0xff]
        %s1024 = scalar_lea.vmem %s5, 8
        %v1025 = vld [vmem:[%s1024] sm:$0xf]
        %v1026 = vpack.c.bf16 %v1018, %v1018
        %v1028 = vsel %vm592, %v1026, 0
        %v1031 = vsel %vm656, %v1025, 0
        %1033 = vmatprep.subr.bf16.mxu0 0
        %1034 = vmatpush1.bf16.msra.mxu0 %v1031
        %1035 = vmatprep.subr.bf16.mxu0 0
        %1036 = vmatpush1.bf16.msra.mxu0 0
        %1037 = vmatprep.subr.bf16.mxu0 0
        %1038 = vmatpush1.bf16.msra.mxu0 0
        %1039 = vmatprep.subr.bf16.mxu0 0
        %1040 = vmatpush1.bf16.msra.mxu0 0
        %1041 = vmatprep.subr.bf16.mxu0 0
        %1042 = vmatpush1.bf16.msra.mxu0 0
        %1043 = vmatprep.subr.bf16.mxu0 0
        %1044 = vmatpush1.bf16.msra.mxu0 0
        %1045 = vmatprep.subr.bf16.mxu0 0
        %1046 = vmatpush1.bf16.msra.mxu0 0
        %1047 = vmatprep.subr.bf16.mxu0 0
        %1048 = vmatpush1.bf16.msra.mxu0 0
        %1049 = vmatprep.subr.bf16.mxu0 0
        %1050 = vmatpush1.bf16.msra.mxu0 0
        %1051 = vmatprep.subr.bf16.mxu0 0
        %1052 = vmatpush1.bf16.msra.mxu0 0
        %1053 = vmatprep.subr.bf16.mxu0 0
        %1054 = vmatpush1.bf16.msra.mxu0 0
        %1055 = vmatprep.subr.bf16.mxu0 0
        %1056 = vmatpush1.bf16.msra.mxu0 0
        %1057 = vmatprep.subr.bf16.mxu0 0
        %1058 = vmatpush1.bf16.msra.mxu0 0
        %1059 = vmatprep.subr.bf16.mxu0 0
        %1060 = vmatpush1.bf16.msra.mxu0 0
        %1061 = vmatprep.subr.bf16.mxu0 0
        %1062 = vmatpush1.bf16.msra.mxu0 0
        %1063 = vmatprep.subr.bf16.mxu0 0
        %1064 = vmatpush1.bf16.msra.mxu0 0
        %1065 = vmatprep.mubr.bf16.mxu0 0
        %1066 = vmatmul.mubr.bf16.gmra.mrb[0].mxu0 %v1028
        %v1067 = vpop.f32.mrb[0].mxu0
        %v1068 = vadd.f32 0.0, %v1067
        %v1069 = vpop.f32.mrb[0].mxu0
        %v1070 = vpop.f32.mrb[0].mxu0
        %v1071 = vpop.f32.mrb[0].mxu0
        %1072 = vdwg.mxu0
        %v1073 = vadd.f32 %v1023, %v1068
        %1074 = vst.msk [vmem:[#allocation2] sm:$0xff] %vm491, %v1073
        %1075 = vrot.lane.b32.xlu0 %v588, 104
        %v1076 = vpop.permute.xlu0 %1075
        %1077 = vrot.lane.b32.xlu0 %v588, 72
        %v1078 = vpop.permute.xlu0 %1077
        %v1080 = vsel %vm592, %v1076, 0
        %v1083 = vsel %vm592, %v1078, 0
        %1085 = vmatprep.subr.bf16.mxu0 0
        %1086 = vmatpush1.bf16.xpose.msra.mxu0 %v1083
        %1087 = vmatprep.subr.bf16.mxu0 0
        %1088 = vmatpush1.bf16.xpose.msra.mxu0 0
        %1089 = vmatprep.subr.bf16.mxu0 0
        %1090 = vmatpush1.bf16.xpose.msra.mxu0 0
        %1091 = vmatprep.subr.bf16.mxu0 0
        %1092 = vmatpush1.bf16.xpose.msra.mxu0 0
        %1093 = vmatprep.subr.bf16.mxu0 0
        %1094 = vmatpush1.bf16.xpose.msra.mxu0 0
        %1095 = vmatprep.subr.bf16.mxu0 0
        %1096 = vmatpush1.bf16.xpose.msra.mxu0 0
        %1097 = vmatprep.subr.bf16.mxu0 0
        %1098 = vmatpush1.bf16.xpose.msra.mxu0 0
        %1099 = vmatprep.subr.bf16.mxu0 0
        %1100 = vmatpush1.bf16.xpose.msra.mxu0 0
        %1101 = vmatprep.subr.bf16.mxu0 0
        %1102 = vmatpush1.bf16.xpose.msra.mxu0 0
        %1103 = vmatprep.subr.bf16.mxu0 0
        %1104 = vmatpush1.bf16.xpose.msra.mxu0 0
        %1105 = vmatprep.subr.bf16.mxu0 0
        %1106 = vmatpush1.bf16.xpose.msra.mxu0 0
        %1107 = vmatprep.subr.bf16.mxu0 0
        %1108 = vmatpush1.bf16.xpose.msra.mxu0 0
        %1109 = vmatprep.subr.bf16.mxu0 0
        %1110 = vmatpush1.bf16.xpose.msra.mxu0 0
        %1111 = vmatprep.subr.bf16.mxu0 0
        %1112 = vmatpush1.bf16.xpose.msra.mxu0 0
        %1113 = vmatprep.subr.bf16.mxu0 0
        %1114 = vmatpush1.bf16.xpose.msra.mxu0 0
        %1115 = vmatprep.subr.bf16.mxu0 0
        %1116 = vmatpush1.bf16.xpose.msra.mxu0 0
        %1117 = vmatprep.mubr.bf16.mxu0 0
        %1118 = vmatmul.mubr.bf16.gmra.mrb[0].mxu0 %v1080
        %v1119 = vpop.f32.mrb[0].mxu0
        %v1120 = vadd.f32 0.0, %v1119
        %v1121 = vpop.f32.mrb[0].mxu0
        %v1122 = vpop.f32.mrb[0].mxu0
        %v1123 = vpop.f32.mrb[0].mxu0
        %1124 = vdwg.mxu0
        %v1125 = vsel %vm592, %v1120, -inf
        %1126 = vmax.xlane.f32.xlu0 %v1125
        %v1127 = vpop.xlane.xlu0 %1126
        %v1128 = vsub.f32 %v1120, %v1127
        %v1129 = vmul.f32 %v1128, 1.442695
        %v1130 = vpow.pop %v1129
        %v1131 = vsel %vm592, %v1130, 0.0
        %1132 = vadd.xlane.f32.xlu0 %v1131
        %v1133 = vpop.xlane.xlu0 %1132
        %v1134 = vrcp.pop %v1133
        %v1135 = vmul.f32 %v1130, %v1134
        %v1136 = vpack.c.bf16 %v1135, %v1135
        %1137 = vrot.lane.b32.xlu0 %v588, 40
        %v1138 = vpop.permute.xlu0 %1137
        %v1140 = vsel %vm592, %v1136, 0
        %v1143 = vsel %vm656, %v1138, 0
        %1145 = vmatprep.subr.bf16.mxu0 0
        %1146 = vmatpush1.bf16.msra.mxu0 %v1143
        %1147 = vmatprep.subr.bf16.mxu0 0
        %1148 = vmatpush1.bf16.msra.mxu0 0
        %1149 = vmatprep.subr.bf16.mxu0 0
        %1150 = vmatpush1.bf16.msra.mxu0 0
        %1151 = vmatprep.subr.bf16.mxu0 0
        %1152 = vmatpush1.bf16.msra.mxu0 0
        %1153 = vmatprep.subr.bf16.mxu0 0
        %1154 = vmatpush1.bf16.msra.mxu0 0
        %1155 = vmatprep.subr.bf16.mxu0 0
        %1156 = vmatpush1.bf16.msra.mxu0 0
        %1157 = vmatprep.subr.bf16.mxu0 0
        %1158 = vmatpush1.bf16.msra.mxu0 0
        %1159 = vmatprep.subr.bf16.mxu0 0
        %1160 = vmatpush1.bf16.msra.mxu0 0
        %1161 = vmatprep.subr.bf16.mxu0 0
        %1162 = vmatpush1.bf16.msra.mxu0 0
        %1163 = vmatprep.subr.bf16.mxu0 0
        %1164 = vmatpush1.bf16.msra.mxu0 0
        %1165 = vmatprep.subr.bf16.mxu0 0
        %1166 = vmatpush1.bf16.msra.mxu0 0
        %1167 = vmatprep.subr.bf16.mxu0 0
        %1168 = vmatpush1.bf16.msra.mxu0 0
        %1169 = vmatprep.subr.bf16.mxu0 0
        %1170 = vmatpush1.bf16.msra.mxu0 0
        %1171 = vmatprep.subr.bf16.mxu0 0
        %1172 = vmatpush1.bf16.msra.mxu0 0
        %1173 = vmatprep.subr.bf16.mxu0 0
        %1174 = vmatpush1.bf16.msra.mxu0 0
        %1175 = vmatprep.subr.bf16.mxu0 0
        %1176 = vmatpush1.bf16.msra.mxu0 0
        %1177 = vmatprep.mubr.bf16.mxu0 0
        %1178 = vmatmul.mubr.bf16.gmra.mrb[0].mxu0 %v1140
        %v1179 = vpop.f32.mrb[0].mxu0
        %v1180 = vadd.f32 0.0, %v1179
        %v1181 = vpop.f32.mrb[0].mxu0
        %v1182 = vpop.f32.mrb[0].mxu0
        %v1183 = vpop.f32.mrb[0].mxu0
        %1184 = vdwg.mxu0
        %v1185 = vld [vmem:[#allocation2] sm:$0xff]
        %s1186 = scalar_lea.vmem %s5, 12
        %v1187 = vld [vmem:[%s1186] sm:$0xf]
        %v1188 = vpack.c.bf16 %v1180, %v1180
        %v1190 = vsel %vm592, %v1188, 0
        %v1193 = vsel %vm656, %v1187, 0
        %1195 = vmatprep.subr.bf16.mxu0 0
        %1196 = vmatpush1.bf16.msra.mxu0 %v1193
        %1197 = vmatprep.subr.bf16.mxu0 0
        %1198 = vmatpush1.bf16.msra.mxu0 0
        %1199 = vmatprep.subr.bf16.mxu0 0
        %1200 = vmatpush1.bf16.msra.mxu0 0
        %1201 = vmatprep.subr.bf16.mxu0 0
        %1202 = vmatpush1.bf16.msra.mxu0 0
        %1203 = vmatprep.subr.bf16.mxu0 0
        %1204 = vmatpush1.bf16.msra.mxu0 0
        %1205 = vmatprep.subr.bf16.mxu0 0
        %1206 = vmatpush1.bf16.msra.mxu0 0
        %1207 = vmatprep.subr.bf16.mxu0 0
        %1208 = vmatpush1.bf16.msra.mxu0 0
        %1209 = vmatprep.subr.bf16.mxu0 0
        %1210 = vmatpush1.bf16.msra.mxu0 0
        %1211 = vmatprep.subr.bf16.mxu0 0
        %1212 = vmatpush1.bf16.msra.mxu0 0
        %1213 = vmatprep.subr.bf16.mxu0 0
        %1214 = vmatpush1.bf16.msra.mxu0 0
        %1215 = vmatprep.subr.bf16.mxu0 0
        %1216 = vmatpush1.bf16.msra.mxu0 0
        %1217 = vmatprep.subr.bf16.mxu0 0
        %1218 = vmatpush1.bf16.msra.mxu0 0
        %1219 = vmatprep.subr.bf16.mxu0 0
        %1220 = vmatpush1.bf16.msra.mxu0 0
        %1221 = vmatprep.subr.bf16.mxu0 0
        %1222 = vmatpush1.bf16.msra.mxu0 0
        %1223 = vmatprep.subr.bf16.mxu0 0
        %1224 = vmatpush1.bf16.msra.mxu0 0
        %1225 = vmatprep.subr.bf16.mxu0 0
        %1226 = vmatpush1.bf16.msra.mxu0 0
        %1227 = vmatprep.mubr.bf16.mxu0 0
        %1228 = vmatmul.mubr.bf16.gmra.mrb[0].mxu0 %v1190
        %v1229 = vpop.f32.mrb[0].mxu0
        %v1230 = vadd.f32 0.0, %v1229
        %v1231 = vpop.f32.mrb[0].mxu0
        %v1232 = vpop.f32.mrb[0].mxu0
        %v1233 = vpop.f32.mrb[0].mxu0
        %1234 = vdwg.mxu0
        %v1235 = vadd.f32 %v1185, %v1230
        %1236 = vst.msk [vmem:[#allocation2] sm:$0xff] %vm491, %v1235
        %v1237 = vld [vmem:[#allocation2] sm:$0xff]
        %v1238 = vadd.f32 %v488, %v1237
        %v1239 = vld [vmem:[#allocation6] sm:$0x1]
        %v1241 = vlaneseq
        %v1242 = vshrl.u32 %v1241, 7
        %v1243 = vsub.s32 0, %v1242
        %v1244 = vrot.slane %v1239, %v1243
        %v1246 = vadd.f32 %v1238, %v1244
        %v1247 = vld [vmem:[#allocation8] sm:$0x1]
        %v1248 = vld [vmem:[#allocation9] sm:$0x1]
        %v1249 = vsel %vm491, %v1246, 0.0
        %1250 = vadd.xlane.f32.xlu0 %v1249
        %v1251 = vpop.xlane.xlu0 %1250
        %v1252 = vmul.f32 %v1251, %v495
        %v1253 = vsub.f32 %v1246, %v1252
        %v1254 = vmul.f32 %v1253, %v1253
        %v1255 = vsel %vm491, %v1254, 0.0
        %1256 = vadd.xlane.f32.xlu0 %v1255
        %v1257 = vpop.xlane.xlu0 %1256
        %v1258 = vmul.f32 %v1257, %v495
        %v1259 = vadd.f32 %v1258, 1e-05
        %v1260 = vrsqrt.pop %v1259
        %v1261 = vmul.f32 %v1253, %v1260
        %v1263 = vlaneseq
        %v1264 = vshrl.u32 %v1263, 7
        %v1265 = vsub.s32 0, %v1264
        %v1266 = vrot.slane %v1247, %v1265
        %v1268 = vmul.f32 %v1261, %v1266
        %v1270 = vlaneseq
        %v1271 = vshrl.u32 %v1270, 7
        %v1272 = vsub.s32 0, %v1271
        %v1273 = vrot.slane %v1248, %v1272
        %v1275 = vadd.f32 %v1268, %v1273
        %v1276 = vld [vmem:[%s9] sm:$0xf]
        %v1277 = vld [vmem:[%s9 + $0x4] sm:$0xf]
        %v1278 = vld [vmem:[%s9 + $0x8] sm:$0xf]
        %v1279 = vld [vmem:[%s9 + $0xc] sm:$0xf]
        %v1280 = vpack.c.bf16 %v1275, %v1275
        %v1281 = vld [vmem:[%s10] sm:$0x1]
        %v1283 = vlaneseq
        %v1284 = vshrl.u32 %v1283, 7
        %v1285 = vsub.s32 0, %v1284
        %v1286 = vrot.slane %v1281, %v1285
        %v1292 = vunpack.c.l.b16 %v1276
        %v1293 = vunpack.c.l.b16 %v1277
        %v1294 = vunpack.c.l.b16 %v1278
        %v1295 = vunpack.c.l.b16 %v1279
        %v1296 = vpack.c.b16 %v1293, %v1292
        %v1297 = vpack.c.b16 %v1295, %v1294
        %v1301 = vsel %vm491, %v1280, 0
        %1303 = vmatprep.subr.bf16.mxu0 0
        %1304 = vmatpush1.bf16.msra.mxu0 %v1296
        %1305 = vmatprep.subr.bf16.mxu0 0
        %1306 = vmatpush1.bf16.msra.mxu0 %v1297
        %1307 = vmatprep.subr.bf16.mxu0 0
        %1308 = vmatpush1.bf16.msra.mxu0 0
        %1309 = vmatprep.subr.bf16.mxu0 0
        %1310 = vmatpush1.bf16.msra.mxu0 0
        %1311 = vmatprep.subr.bf16.mxu0 0
        %1312 = vmatpush1.bf16.msra.mxu0 0
        %1313 = vmatprep.subr.bf16.mxu0 0
        %1314 = vmatpush1.bf16.msra.mxu0 0
        %1315 = vmatprep.subr.bf16.mxu0 0
        %1316 = vmatpush1.bf16.msra.mxu0 0
        %1317 = vmatprep.subr.bf16.mxu0 0
        %1318 = vmatpush1.bf16.msra.mxu0 0
        %1319 = vmatprep.subr.bf16.mxu0 0
        %1320 = vmatpush1.bf16.msra.mxu0 0
        %1321 = vmatprep.subr.bf16.mxu0 0
        %1322 = vmatpush1.bf16.msra.mxu0 0
        %1323 = vmatprep.subr.bf16.mxu0 0
        %1324 = vmatpush1.bf16.msra.mxu0 0
        %1325 = vmatprep.subr.bf16.mxu0 0
        %1326 = vmatpush1.bf16.msra.mxu0 0
        %1327 = vmatprep.subr.bf16.mxu0 0
        %1328 = vmatpush1.bf16.msra.mxu0 0
        %1329 = vmatprep.subr.bf16.mxu0 0
        %1330 = vmatpush1.bf16.msra.mxu0 0
        %1331 = vmatprep.subr.bf16.mxu0 0
        %1332 = vmatpush1.bf16.msra.mxu0 0
        %1333 = vmatprep.subr.bf16.mxu0 0
        %1334 = vmatpush1.bf16.msra.mxu0 0
        %1335 = vmatprep.mubr.bf16.mxu0 0
        %1336 = vmatmul.mubr.bf16.gmra.mrb[0].mxu0 %v1301
        %v1337 = vpop.f32.mrb[0].mxu0
        %v1338 = vadd.f32 %v1286, %v1337
        %v1339 = vpop.f32.mrb[0].mxu0
        %v1340 = vpop.f32.mrb[0].mxu0
        %v1341 = vpop.f32.mrb[0].mxu0
        %1342 = vdwg.mxu0
        %v1343 = vmax.f32 %v1338, 0.0
        %v1344 = vld [vmem:[%s11] sm:$0xf]
        %v1345 = vld [vmem:[%s11 + $0x4] sm:$0xf]
        %v1346 = vld [vmem:[%s11 + $0x8] sm:$0xf]
        %v1347 = vld [vmem:[%s11 + $0xc] sm:$0xf]
        %v1348 = vld [vmem:[%s11 + $0x10] sm:$0xf]
        %v1349 = vld [vmem:[%s11 + $0x14] sm:$0xf]
        %v1350 = vld [vmem:[%s11 + $0x18] sm:$0xf]
        %v1351 = vld [vmem:[%s11 + $0x1c] sm:$0xf]
        %v1352 = vpack.c.bf16 %v1343, %v1343
        %v1353 = vld [vmem:[%s12] sm:$0x1]
        %v1355 = vlaneseq
        %v1356 = vshrl.u32 %v1355, 7
        %v1357 = vsub.s32 0, %v1356
        %v1358 = vrot.slane %v1353, %v1357
        %v1368 = vunpack.c.l.b16 %v1344
        %v1369 = vunpack.c.l.b16 %v1345
        %v1370 = vunpack.c.l.b16 %v1346
        %v1371 = vunpack.c.l.b16 %v1347
        %v1372 = vunpack.c.l.b16 %v1348
        %v1373 = vunpack.c.l.b16 %v1349
        %v1374 = vunpack.c.l.b16 %v1350
        %v1375 = vunpack.c.l.b16 %v1351
        %v1376 = vpack.c.b16 %v1369, %v1368
        %v1377 = vpack.c.b16 %v1371, %v1370
        %v1378 = vpack.c.b16 %v1373, %v1372
        %v1379 = vpack.c.b16 %v1375, %v1374
        %vm1384 = vcmask 523264
        %v1386 = vsel %vm1384, %v1352, 0
        %1388 = vmatprep.subr.bf16.mxu0 0
        %1389 = vmatpush1.bf16.msra.mxu0 %v1376
        %1390 = vmatprep.subr.bf16.mxu0 0
        %1391 = vmatpush1.bf16.msra.mxu0 %v1377
        %1392 = vmatprep.subr.bf16.mxu0 0
        %1393 = vmatpush1.bf16.msra.mxu0 %v1378
        %1394 = vmatprep.subr.bf16.mxu0 0
        %1395 = vmatpush1.bf16.msra.mxu0 %v1379
        %1396 = vmatprep.subr.bf16.mxu0 0
        %1397 = vmatpush1.bf16.msra.mxu0 0
        %1398 = vmatprep.subr.bf16.mxu0 0
        %1399 = vmatpush1.bf16.msra.mxu0 0
        %1400 = vmatprep.subr.bf16.mxu0 0
        %1401 = vmatpush1.bf16.msra.mxu0 0
        %1402 = vmatprep.subr.bf16.mxu0 0
        %1403 = vmatpush1.bf16.msra.mxu0 0
        %1404 = vmatprep.subr.bf16.mxu0 0
        %1405 = vmatpush1.bf16.msra.mxu0 0
        %1406 = vmatprep.subr.bf16.mxu0 0
        %1407 = vmatpush1.bf16.msra.mxu0 0
        %1408 = vmatprep.subr.bf16.mxu0 0
        %1409 = vmatpush1.bf16.msra.mxu0 0
        %1410 = vmatprep.subr.bf16.mxu0 0
        %1411 = vmatpush1.bf16.msra.mxu0 0
        %1412 = vmatprep.subr.bf16.mxu0 0
        %1413 = vmatpush1.bf16.msra.mxu0 0
        %1414 = vmatprep.subr.bf16.mxu0 0
        %1415 = vmatpush1.bf16.msra.mxu0 0
        %1416 = vmatprep.subr.bf16.mxu0 0
        %1417 = vmatpush1.bf16.msra.mxu0 0
        %1418 = vmatprep.subr.bf16.mxu0 0
        %1419 = vmatpush1.bf16.msra.mxu0 0
        %1420 = vmatprep.mubr.bf16.mxu0 0
        %1421 = vmatmul.mubr.bf16.gmra.mrb[0].mxu0 %v1386
        %v1422 = vpop.f32.mrb[0].mxu0
        %v1423 = vadd.f32 %v1358, %v1422
        %v1424 = vpop.f32.mrb[0].mxu0
        %v1425 = vpop.f32.mrb[0].mxu0
        %v1426 = vpop.f32.mrb[0].mxu0
        %1427 = vdwg.mxu0
        %v1428 = vadd.f32 %v1246, %v1423
        %1429 = vst.msk [vmem:[%s482] sm:$0xff] %vm491, %v1428
        %s1430 = sand.u32 %s316, 1
        %s1431 = scalar_lea.sflag [#allocation5], %s1430
        %s1432 = sand.u32 %s316, 1
        %s1433 = smul.addr %s1432, 8
        %s1434 = scalar_lea.vmem [#allocation11], %s1433
        // Predicated region
        $region89: #{tpu_custom_call.1} parent=71 // pred_check
          %p1435 = pneg %p326
        $region90: #{tpu_custom_call.1} parent=71 // pred_check_branch
          %1437 = sbr.rel (%p1435) target = $region92
        $region91: #{tpu_custom_call.1} parent=71 // pred_region
          %s1439 = ssub.s32 128, 128
          %1440 = vsyncadd %s1431, %s1439
          %s1441 = smul.addr %s30, 128
          %s1442 = scalar_lea.hbm %s13, %s1441
          %s1444 = sshll.u32 %s1434, 4
          %s1445 = int_to_ptr.vmem [resolvable:$true] %s1444
          %1447 = dma.vmem_to_hbm [thread:$0]  %s1445, 128, %s1442, %s1431
        $region92: #{tpu_custom_call.1} parent=71 // pred_fallthru
          _
      $region72: #{tpu_custom_call.1} parent=5 // pred_fallthru
        _
      %p1448 = scmp.le.s32.totalorder 2, %s25
      // Predicated region
      $region93: #{tpu_custom_call.1} parent=5 // pred_check
        %p1449 = pneg %p1448
      $region94: #{tpu_custom_call.1} parent=5 // pred_check_branch
        %1451 = sbr.rel (%p1449) target = $region96
      $region95: #{tpu_custom_call.1} parent=5 // pred_region
        %s1452 = ssub.s32 %s25, 2
        // Predicated region
        $region97: #{tpu_custom_call.1} parent=95 // pred_check
          %p1453 = pneg %p332
        $region98: #{tpu_custom_call.1} parent=95 // pred_check_branch
          %1455 = sbr.rel (%p1453) target = $region100
        $region99: #{tpu_custom_call.1} parent=95 // pred_region
          %s1456 = sand.u32 %s317, 1
          %s1457 = scalar_lea.sflag [#allocation5], %s1456
          %s1458 = sand.u32 %s317, 1
          %s1459 = smul.addr %s1458, 8
          %s1460 = scalar_lea.vmem [#allocation11], %s1459
          %1461 = dma.done %s1457, 128
        $region100: #{tpu_custom_call.1} parent=95 // pred_fallthru
          _
      $region96: #{tpu_custom_call.1} parent=5 // pred_fallthru
        _
    $region6: #{tpu_custom_call.1} parent=1 // loop_footer
      %s29 = sadd.s32 1, %s25
    $region7: #{tpu_custom_call.1} parent=1 // loop_footer_branch
      %24 = sbr.rel target = $region3
    $region8: #{tpu_custom_call.1} parent=1 // loop_exit
      _
    %1462 = vsyncpa [#allocation4], 1
    %s1463 = scalar_lea.sflag [#allocation4], 1
    %1464 = vsyncpa %s1463, 1
    %1465 = vsyncpa [#allocation7], 1
    %1466 = vsyncpa [#allocation10], 1
    %1467 = vsyncpa [#allocation5], 1
    %s1468 = scalar_lea.sflag [#allocation5], 1
    %1469 = vsyncpa %s1468, 1

// kernel: tpu_custom_call.1
$region0: #{tpu_custom_call.1}
  #allocation0 [shape = 'u32[]', space=smem, size = 0x4, offset = 0x4, fixed_abs, tag = 'smem constant byte address 0x4 - core index']
  #allocation1 [shape = 'u32[144,128]{1,0:T(1,128)}', space=vmem, size = 0x12000, scoped, tag = 'internal scratch']
  #allocation2 [shape = 'f32[8,32]{1,0:T(8,128)}', space=vmem, size = 0x1000, scoped, tag = 'scratch operand']
  %s0 = inlined_call_operand.vmem [shape: f32[2,8,32], index: 0, kind: input, shape index: {}]
  %s1 = inlined_call_operand.vmem [shape: f32[1,32], index: 1, kind: input, shape index: {}]
  %s2 = inlined_call_operand.vmem [shape: f32[1,32], index: 2, kind: input, shape index: {}]
  %s3 = inlined_call_operand.vmem [shape: bf16[32,96], index: 3, kind: input, shape index: {}]
  %s4 = inlined_call_operand.hbm [shape: f32[1,96], index: 4, kind: input, shape index: {}]
  %s5 = inlined_call_operand.vmem [shape: bf16[4,8,32], index: 5, kind: input, shape index: {}]
  %s6 = inlined_call_operand.hbm [shape: f32[1,32], index: 6, kind: input, shape index: {}]
  %s7 = inlined_call_operand.hbm [shape: f32[1,32], index: 7, kind: input, shape index: {}]
  %s8 = inlined_call_operand.hbm [shape: f32[1,32], index: 8, kind: input, shape index: {}]
  %s9 = inlined_call_operand.vmem [shape: bf16[32,64], index: 9, kind: input, shape index: {}]
  %s10 = inlined_call_operand.vmem [shape: f32[1,64], index: 10, kind: input, shape index: {}]
  %s11 = inlined_call_operand.vmem [shape: bf16[64,32], index: 11, kind: input, shape index: {}]
  %s12 = inlined_call_operand.vmem [shape: f32[1,32], index: 12, kind: input, shape index: {}]
  %s13 = inlined_call_operand.hbm [shape: f32[2,8,32], index: 13, kind: output, shape index: {}]
  %s14 = sld [smem:[#allocation0]]
  $region101: #{tpu_custom_call.1} parent=0
    _
  %s16 = ssub.s32 1, %s14
  %s17 = scalar_select 0, %s16, %s14
  $region1: #{tpu_custom_call.1} parent=0
    #allocation3 [shape = 'u8[512]{0}', space=vmem, size = 0x400, scoped, tag = 'input window, operand 4, single buffered']
    #allocation4 [shape = 's32[2]{0}', space=sflag, size = 0x8, scoped, tag = 'scoped memory for tpu_custom_call.1']
    #allocation5 [shape = 's32[2]{0}', space=sflag, size = 0x8, scoped, tag = 'scoped memory for tpu_custom_call.1']
    #allocation6 [shape = 'u8[512]{0}', space=vmem, size = 0x400, scoped, tag = 'input window, operand 6, single buffered']
    #allocation7 [shape = 's32[1]{0}', space=sflag, size = 0x4, scoped, tag = 'scoped memory for tpu_custom_call.1']
    #allocation8 [shape = 'u8[512]{0}', space=vmem, size = 0x400, scoped, tag = 'input window, operand 7, single buffered']
    #allocation9 [shape = 'u8[512]{0}', space=vmem, size = 0x400, scoped, tag = 'input window, operand 8, single buffered']
    #allocation10 [shape = 's32[1]{0}', space=sflag, size = 0x4, scoped, tag = 'scoped memory for tpu_custom_call.1']
    #allocation11 [shape = 'u8[8192]{0}', space=vmem, size = 0x2000, scoped, tag = 'output window, operand 0']
    %18 = vsyncpa [#allocation4], 0
    %19 = vsyncpa [#allocation7], 0
    %20 = vsyncpa [#allocation10], 0
    %21 = vsyncpa [#allocation5], 0
    %s22 = scalar_lea.sflag [#allocation5], 1
    %23 = vsyncpa %s22, 0
    loop: start=0, step=1, limit=4
    $region2: #{tpu_custom_call.1} parent=1 // loop_pre_header
      _
    $region3: #{tpu_custom_call.1} parent=1 // loop_header
      %s25 = sphi 0, %s29
      %p26 = scmp.ge.s32.totalorder %s25, 4
      %s35 = sphi 0, %s37
      %s38 = sphi 0, %s35
      %s39 = sphi 0, %s38
      %s55 = sphi 0, %s39
      %s59 = sphi 0, %s59
      %s61 = sphi 0, %s59
      %s62 = sphi 0, %s61
      %s76 = sphi 0, %s62
      %s80 = sphi 0, %s80
      %s82 = sphi 0, %s80
      %s83 = sphi 0, %s82
      %s97 = sphi 0, %s83
      %s101 = sphi 0, %s101
      %s103 = sphi 0, %s101
      %s104 = sphi 0, %s103
      %s118 = sphi 0, %s104
      %s122 = sphi 0, %s122
      %s124 = sphi 0, %s122
      %s125 = sphi 0, %s124
      %s139 = sphi 0, %s125
      %s143 = sphi 0, %s143
      %s145 = sphi 0, %s143
      %s146 = sphi 0, %s145
      %s160 = sphi 0, %s146
      %s164 = sphi 0, %s164
      %s166 = sphi 0, %s164
      %s167 = sphi 0, %s166
      %s181 = sphi 0, %s167
      %s185 = sphi 0, %s185
      %s187 = sphi 0, %s185
      %s188 = sphi 0, %s187
      %s202 = sphi 0, %s188
      %s206 = sphi 0, %s206
      %s208 = sphi 0, %s206
      %s209 = sphi 0, %s208
      %s223 = sphi 0, %s209
      %s227 = sphi 0, %s227
      %s229 = sphi 0, %s227
      %s230 = sphi 0, %s229
      %s244 = sphi 0, %s230
      %s248 = sphi 0, %s248
      %s250 = sphi 0, %s248
      %s251 = sphi 0, %s250
      %s265 = sphi 0, %s251
      %s269 = sphi 0, %s269
      %s271 = sphi 0, %s269
      %s272 = sphi 0, %s271
      %s286 = sphi 0, %s272
      %s290 = sphi 0, %s290
      %s292 = sphi 0, %s290
      %s293 = sphi 0, %s292
      %s307 = sphi 0, %s293
      %s313 = sphi 0, %s315
      %s316 = sphi 0, %s313
      %s317 = sphi 0, %s316
      %s333 = sphi 0, %s317
    $region4: #{tpu_custom_call.1} parent=1 // loop_header_branch
      %28 = sbr.rel (%p26) target = $region8
    $region5: #{tpu_custom_call.1} parent=1 // loop_body
      %s30 = ssub.s32 %s25, 1
      %s31 = ssub.s32 %s25, 2
      %s32 = sadd.s32 %s25, 1
      %s33 = ssub.s32 %s25, %s32
      %p34 = scmp.eq.s32.totalorder %s33, 0
      %s36 = sadd.s32 %s35, 1
      %s37 = scalar_select %p34, %s35, %s36
      %p40 = pneg %p34
      %p41 = scmp.eq.s32.totalorder %s25, 1
      %p42 = por %p40, %p41
      %p43 = scmp.ne.s32.totalorder %s35, %s38
      %p44 = scmp.eq.s32.totalorder %s25, 0
      %p45 = por %p43, %p44
      %p46 = scmp.ne.s32.totalorder %s35, %s38
      %p47 = scmp.eq.s32.totalorder %s30, 1
      %p48 = por %p46, %p47
      %p49 = scmp.ne.s32.totalorder %s38, %s39
      %p50 = scmp.eq.s32.totalorder %s30, 0
      %p51 = por %p49, %p50
      %p52 = scmp.ne.s32.totalorder %s38, %s39
      %p53 = scmp.eq.s32.totalorder %s31, 1
      %p54 = por %p52, %p53
      %p56 = scmp.ne.s32.totalorder %s39, %s55
      %p57 = scmp.eq.s32.totalorder %s31, 0
      %p58 = por %p56, %p57
      %s60 = sadd.s32 %s59, 1
      %p63 = scmp.eq.s32.totalorder %s25, 1
      %p64 = scmp.ne.s32.totalorder %s59, %s61
      %p65 = scmp.eq.s32.totalorder %s25, 0
      %p66 = por %p64, %p65
      %p67 = scmp.ne.s32.totalorder %s59, %s61
      %p68 = scmp.eq.s32.totalorder %s30, 1
      %p69 = por %p67, %p68
      %p70 = scmp.ne.s32.totalorder %s61, %s62
      %p71 = scmp.eq.s32.totalorder %s30, 0
      %p72 = por %p70, %p71
      %p73 = scmp.ne.s32.totalorder %s61, %s62
      %p74 = scmp.eq.s32.totalorder %s31, 1
      %p75 = por %p73, %p74
      %p77 = scmp.ne.s32.totalorder %s62, %s76
      %p78 = scmp.eq.s32.totalorder %s31, 0
      %p79 = por %p77, %p78
      %s81 = sadd.s32 %s80, 1
      %p84 = scmp.eq.s32.totalorder %s25, 1
      %p85 = scmp.ne.s32.totalorder %s80, %s82
      %p86 = scmp.eq.s32.totalorder %s25, 0
      %p87 = por %p85, %p86
      %p88 = scmp.ne.s32.totalorder %s80, %s82
      %p89 = scmp.eq.s32.totalorder %s30, 1
      %p90 = por %p88, %p89
      %p91 = scmp.ne.s32.totalorder %s82, %s83
      %p92 = scmp.eq.s32.totalorder %s30, 0
      %p93 = por %p91, %p92
      %p94 = scmp.ne.s32.totalorder %s82, %s83
      %p95 = scmp.eq.s32.totalorder %s31, 1
      %p96 = por %p94, %p95
      %p98 = scmp.ne.s32.totalorder %s83, %s97
      %p99 = scmp.eq.s32.totalorder %s31, 0
      %p100 = por %p98, %p99
      %s102 = sadd.s32 %s101, 1
      %p105 = scmp.eq.s32.totalorder %s25, 1
      %p106 = scmp.ne.s32.totalorder %s101, %s103
      %p107 = scmp.eq.s32.totalorder %s25, 0
      %p108 = por %p106, %p107
      %p109 = scmp.ne.s32.totalorder %s101, %s103
      %p110 = scmp.eq.s32.totalorder %s30, 1
      %p111 = por %p109, %p110
      %p112 = scmp.ne.s32.totalorder %s103, %s104
      %p113 = scmp.eq.s32.totalorder %s30, 0
      %p114 = por %p112, %p113
      %p115 = scmp.ne.s32.totalorder %s103, %s104
      %p116 = scmp.eq.s32.totalorder %s31, 1
      %p117 = por %p115, %p116
      %p119 = scmp.ne.s32.totalorder %s104, %s118
      %p120 = scmp.eq.s32.totalorder %s31, 0
      %p121 = por %p119, %p120
      %s123 = sadd.s32 %s122, 1
      %p126 = scmp.eq.s32.totalorder %s25, 1
      %p127 = scmp.ne.s32.totalorder %s122, %s124
      %p128 = scmp.eq.s32.totalorder %s25, 0
      %p129 = por %p127, %p128
      %p130 = scmp.ne.s32.totalorder %s122, %s124
      %p131 = scmp.eq.s32.totalorder %s30, 1
      %p132 = por %p130, %p131
      %p133 = scmp.ne.s32.totalorder %s124, %s125
      %p134 = scmp.eq.s32.totalorder %s30, 0
      %p135 = por %p133, %p134
      %p136 = scmp.ne.s32.totalorder %s124, %s125
      %p137 = scmp.eq.s32.totalorder %s31, 1
      %p138 = por %p136, %p137
      %p140 = scmp.ne.s32.totalorder %s125, %s139
      %p141 = scmp.eq.s32.totalorder %s31, 0
      %p142 = por %p140, %p141
      %s144 = sadd.s32 %s143, 1
      %p147 = scmp.eq.s32.totalorder %s25, 1
      %p148 = scmp.ne.s32.totalorder %s143, %s145
      %p149 = scmp.eq.s32.totalorder %s25, 0
      %p150 = por %p148, %p149
      %p151 = scmp.ne.s32.totalorder %s143, %s145
      %p152 = scmp.eq.s32.totalorder %s30, 1
      %p153 = por %p151, %p152
      %p154 = scmp.ne.s32.totalorder %s145, %s146
      %p155 = scmp.eq.s32.totalorder %s30, 0
      %p156 = por %p154, %p155
      %p157 = scmp.ne.s32.totalorder %s145, %s146
      %p158 = scmp.eq.s32.totalorder %s31, 1
      %p159 = por %p157, %p158
      %p161 = scmp.ne.s32.totalorder %s146, %s160
      %p162 = scmp.eq.s32.totalorder %s31, 0
      %p163 = por %p161, %p162
      %s165 = sadd.s32 %s164, 1
      %p168 = scmp.eq.s32.totalorder %s25, 1
      %p169 = scmp.ne.s32.totalorder %s164, %s166
      %p170 = scmp.eq.s32.totalorder %s25, 0
      %p171 = por %p169, %p170
      %p172 = scmp.ne.s32.totalorder %s164, %s166
      %p173 = scmp.eq.s32.totalorder %s30, 1
      %p174 = por %p172, %p173
      %p175 = scmp.ne.s32.totalorder %s166, %s167
      %p176 = scmp.eq.s32.totalorder %s30, 0
      %p177 = por %p175, %p176
      %p178 = scmp.ne.s32.totalorder %s166, %s167
      %p179 = scmp.eq.s32.totalorder %s31, 1
      %p180 = por %p178, %p179
      %p182 = scmp.ne.s32.totalorder %s167, %s181
      %p183 = scmp.eq.s32.totalorder %s31, 0
      %p184 = por %p182, %p183
      %s186 = sadd.s32 %s185, 1
      %p189 = scmp.eq.s32.totalorder %s25, 1
      %p190 = scmp.ne.s32.totalorder %s185, %s187
      %p191 = scmp.eq.s32.totalorder %s25, 0
      %p192 = por %p190, %p191
      %p193 = scmp.ne.s32.totalorder %s185, %s187
      %p194 = scmp.eq.s32.totalorder %s30, 1
      %p195 = por %p193, %p194
      %p196 = scmp.ne.s32.totalorder %s187, %s188
      %p197 = scmp.eq.s32.totalorder %s30, 0
      %p198 = por %p196, %p197
      %p199 = scmp.ne.s32.totalorder %s187, %s188
      %p200 = scmp.eq.s32.totalorder %s31, 1
      %p201 = por %p199, %p200
      %p203 = scmp.ne.s32.totalorder %s188, %s202
      %p204 = scmp.eq.s32.totalorder %s31, 0
      %p205 = por %p203, %p204
      %s207 = sadd.s32 %s206, 1
      %p210 = scmp.eq.s32.totalorder %s25, 1
      %p211 = scmp.ne.s32.totalorder %s206, %s208
      %p212 = scmp.eq.s32.totalorder %s25, 0
      %p213 = por %p211, %p212
      %p214 = scmp.ne.s32.totalorder %s206, %s208
      %p215 = scmp.eq.s32.totalorder %s30, 1
      %p216 = por %p214, %p215
      %p217 = scmp.ne.s32.totalorder %s208, %s209
      %p218 = scmp.eq.s32.totalorder %s30, 0
      %p219 = por %p217, %p218
      %p220 = scmp.ne.s32.totalorder %s208, %s209
      %p221 = scmp.eq.s32.totalorder %s31, 1
      %p222 = por %p220, %p221
      %p224 = scmp.ne.s32.totalorder %s209, %s223
      %p225 = scmp.eq.s32.totalorder %s31, 0
      %p226 = por %p224, %p225
      %s228 = sadd.s32 %s227, 1
      %p231 = scmp.eq.s32.totalorder %s25, 1
      %p232 = scmp.ne.s32.totalorder %s227, %s229
      %p233 = scmp.eq.s32.totalorder %s25, 0
      %p234 = por %p232, %p233
      %p235 = scmp.ne.s32.totalorder %s227, %s229
      %p236 = scmp.eq.s32.totalorder %s30, 1
      %p237 = por %p235, %p236
      %p238 = scmp.ne.s32.totalorder %s229, %s230
      %p239 = scmp.eq.s32.totalorder %s30, 0
      %p240 = por %p238, %p239
      %p241 = scmp.ne.s32.totalorder %s229, %s230
      %p242 = scmp.eq.s32.totalorder %s31, 1
      %p243 = por %p241, %p242
      %p245 = scmp.ne.s32.totalorder %s230, %s244
      %p246 = scmp.eq.s32.totalorder %s31, 0
      %p247 = por %p245, %p246
      %s249 = sadd.s32 %s248, 1
      %p252 = scmp.eq.s32.totalorder %s25, 1
      %p253 = scmp.ne.s32.totalorder %s248, %s250
      %p254 = scmp.eq.s32.totalorder %s25, 0
      %p255 = por %p253, %p254
      %p256 = scmp.ne.s32.totalorder %s248, %s250
      %p257 = scmp.eq.s32.totalorder %s30, 1
      %p258 = por %p256, %p257
      %p259 = scmp.ne.s32.totalorder %s250, %s251
      %p260 = scmp.eq.s32.totalorder %s30, 0
      %p261 = por %p259, %p260
      %p262 = scmp.ne.s32.totalorder %s250, %s251
      %p263 = scmp.eq.s32.totalorder %s31, 1
      %p264 = por %p262, %p263
      %p266 = scmp.ne.s32.totalorder %s251, %s265
      %p267 = scmp.eq.s32.totalorder %s31, 0
      %p268 = por %p266, %p267
      %s270 = sadd.s32 %s269, 1
      %p273 = scmp.eq.s32.totalorder %s25, 1
      %p274 = scmp.ne.s32.totalorder %s269, %s271
      %p275 = scmp.eq.s32.totalorder %s25, 0
      %p276 = por %p274, %p275
      %p277 = scmp.ne.s32.totalorder %s269, %s271
      %p278 = scmp.eq.s32.totalorder %s30, 1
      %p279 = por %p277, %p278
      %p280 = scmp.ne.s32.totalorder %s271, %s272
      %p281 = scmp.eq.s32.totalorder %s30, 0
      %p282 = por %p280, %p281
      %p283 = scmp.ne.s32.totalorder %s271, %s272
      %p284 = scmp.eq.s32.totalorder %s31, 1
      %p285 = por %p283, %p284
      %p287 = scmp.ne.s32.totalorder %s272, %s286
      %p288 = scmp.eq.s32.totalorder %s31, 0
      %p289 = por %p287, %p288
      %s291 = sadd.s32 %s290, 1
      %p294 = scmp.eq.s32.totalorder %s25, 1
      %p295 = scmp.ne.s32.totalorder %s290, %s292
      %p296 = scmp.eq.s32.totalorder %s25, 0
      %p297 = por %p295, %p296
      %p298 = scmp.ne.s32.totalorder %s290, %s292
      %p299 = scmp.eq.s32.totalorder %s30, 1
      %p300 = por %p298, %p299
      %p301 = scmp.ne.s32.totalorder %s292, %s293
      %p302 = scmp.eq.s32.totalorder %s30, 0
      %p303 = por %p301, %p302
      %p304 = scmp.ne.s32.totalorder %s292, %s293
      %p305 = scmp.eq.s32.totalorder %s31, 1
      %p306 = por %p304, %p305
      %p308 = scmp.ne.s32.totalorder %s293, %s307
      %p309 = scmp.eq.s32.totalorder %s31, 0
      %p310 = por %p308, %p309
      %s311 = ssub.s32 %s25, %s32
      %p312 = scmp.eq.s32.totalorder %s311, 0
      %s314 = sadd.s32 %s313, 1
      %s315 = scalar_select %p312, %s313, %s314
      %p318 = pneg %p312
      %p319 = scmp.eq.s32.totalorder %s25, 1
      %p320 = por %p318, %p319
      %p321 = scmp.ne.s32.totalorder %s313, %s316
      %p322 = scmp.eq.s32.totalorder %s25, 0
      %p323 = por %p321, %p322
      %p324 = scmp.ne.s32.totalorder %s313, %s316
      %p325 = scmp.eq.s32.totalorder %s30, 1
      %p326 = por %p324, %p325
      %p327 = scmp.ne.s32.totalorder %s316, %s317
      %p328 = scmp.eq.s32.totalorder %s30, 0
      %p329 = por %p327, %p328
      %p330 = scmp.ne.s32.totalorder %s316, %s317
      %p331 = scmp.eq.s32.totalorder %s31, 1
      %p332 = por %p330, %p331
      %p334 = scmp.ne.s32.totalorder %s317, %s333
      %p335 = scmp.eq.s32.totalorder %s31, 0
      %p336 = por %p334, %p335
      %p337 = scmp.le.s32.totalorder 1, %s25
      %p338 = scmp.lt.s32.totalorder %s25, 3
      %p339 = pnand %p337, %p338
      %p340 = pneg %p339
      // Predicated region
      $region9: #{tpu_custom_call.1} parent=5 // pred_check
        _
      $region10: #{tpu_custom_call.1} parent=5 // pred_check_branch
        %342 = sbr.rel (%p339) target = $region12
      $region11: #{tpu_custom_call.1} parent=5 // pred_region
        %s343 = ssub.s32 %s25, 1
        // Predicated region
        $region13: #{tpu_custom_call.1} parent=11 // pred_check
          %p344 = pneg %p72
        $region14: #{tpu_custom_call.1} parent=11 // pred_check_branch
          %346 = sbr.rel (%p344) target = $region16
        $region15: #{tpu_custom_call.1} parent=11 // pred_region
          _
        $region16: #{tpu_custom_call.1} parent=11 // pred_fallthru
          _
        // Predicated region
        $region17: #{tpu_custom_call.1} parent=11 // pred_check
          %p347 = pneg %p93
        $region18: #{tpu_custom_call.1} parent=11 // pred_check_branch
          %349 = sbr.rel (%p347) target = $region20
        $region19: #{tpu_custom_call.1} parent=11 // pred_region
          _
        $region20: #{tpu_custom_call.1} parent=11 // pred_fallthru
          _
        // Predicated region
        $region21: #{tpu_custom_call.1} parent=11 // pred_check
          %p350 = pneg %p114
        $region22: #{tpu_custom_call.1} parent=11 // pred_check_branch
          %352 = sbr.rel (%p350) target = $region24
        $region23: #{tpu_custom_call.1} parent=11 // pred_region
          _
        $region24: #{tpu_custom_call.1} parent=11 // pred_fallthru
          _
        // Predicated region
        $region25: #{tpu_custom_call.1} parent=11 // pred_check
          %p353 = pneg %p135
        $region26: #{tpu_custom_call.1} parent=11 // pred_check_branch
          %355 = sbr.rel (%p353) target = $region28
        $region27: #{tpu_custom_call.1} parent=11 // pred_region
          %s357 = ssub.s32 16, 16
          %358 = vsyncadd [#allocation4], %s357
          %s360 = sshll.u32 [#allocation3], 4
          %s361 = int_to_ptr.vmem [resolvable:$true] %s360
          %363 = dma.hbm_to_vmem [thread:$0]  %s4, 16, %s361, [#allocation4]
        $region28: #{tpu_custom_call.1} parent=11 // pred_fallthru
          _
        // Predicated region
        $region29: #{tpu_custom_call.1} parent=11 // pred_check
          %p364 = pneg %p156
        $region30: #{tpu_custom_call.1} parent=11 // pred_check_branch
          %366 = sbr.rel (%p364) target = $region32
        $region31: #{tpu_custom_call.1} parent=11 // pred_region
          _
        $region32: #{tpu_custom_call.1} parent=11 // pred_fallthru
          _
        // Predicated region
        $region33: #{tpu_custom_call.1} parent=11 // pred_check
          %p367 = pneg %p177
        $region34: #{tpu_custom_call.1} parent=11 // pred_check_branch
          %369 = sbr.rel (%p367) target = $region36
        $region35: #{tpu_custom_call.1} parent=11 // pred_region
          %s371 = ssub.s32 16, 16
          %372 = vsyncadd [#allocation7], %s371
          %s374 = sshll.u32 [#allocation6], 4
          %s375 = int_to_ptr.vmem [resolvable:$true] %s374
          %377 = dma.hbm_to_vmem [thread:$0]  %s6, 16, %s375, [#allocation7]
        $region36: #{tpu_custom_call.1} parent=11 // pred_fallthru
          _
        // Predicated region
        $region37: #{tpu_custom_call.1} parent=11 // pred_check
          %p378 = pneg %p198
        $region38: #{tpu_custom_call.1} parent=11 // pred_check_branch
          %380 = sbr.rel (%p378) target = $region40
        $region39: #{tpu_custom_call.1} parent=11 // pred_region
          %s382 = ssub.s32 16, 16
          %383 = vsyncadd [#allocation7], %s382
          %s385 = sshll.u32 [#allocation8], 4
          %s386 = int_to_ptr.vmem [resolvable:$true] %s385
          %388 = dma.hbm_to_vmem [thread:$0]  %s7, 16, %s386, [#allocation7]
        $region40: #{tpu_custom_call.1} parent=11 // pred_fallthru
          _
        // Predicated region
        $region41: #{tpu_custom_call.1} parent=11 // pred_check
          %p389 = pneg %p219
        $region42: #{tpu_custom_call.1} parent=11 // pred_check_branch
          %391 = sbr.rel (%p389) target = $region44
        $region43: #{tpu_custom_call.1} parent=11 // pred_region
          %s393 = ssub.s32 16, 16
          %394 = vsyncadd [#allocation10], %s393
          %s396 = sshll.u32 [#allocation9], 4
          %s397 = int_to_ptr.vmem [resolvable:$true] %s396
          %399 = dma.hbm_to_vmem [thread:$0]  %s8, 16, %s397, [#allocation10]
        $region44: #{tpu_custom_call.1} parent=11 // pred_fallthru
          _
        // Predicated region
        $region45: #{tpu_custom_call.1} parent=11 // pred_check
          %p400 = pneg %p240
        $region46: #{tpu_custom_call.1} parent=11 // pred_check_branch
          %402 = sbr.rel (%p400) target = $region48
        $region47: #{tpu_custom_call.1} parent=11 // pred_region
          _
        $region48: #{tpu_custom_call.1} parent=11 // pred_fallthru
          _
        // Predicated region
        $region49: #{tpu_custom_call.1} parent=11 // pred_check
          %p403 = pneg %p261
        $region50: #{tpu_custom_call.1} parent=11 // pred_check_branch
          %405 = sbr.rel (%p403) target = $region52
        $region51: #{tpu_custom_call.1} parent=11 // pred_region
          _
        $region52: #{tpu_custom_call.1} parent=11 // pred_fallthru
          _
        // Predicated region
        $region53: #{tpu_custom_call.1} parent=11 // pred_check
          %p406 = pneg %p282
        $region54: #{tpu_custom_call.1} parent=11 // pred_check_branch
          %408 = sbr.rel (%p406) target = $region56
        $region55: #{tpu_custom_call.1} parent=11 // pred_region
          _
        $region56: #{tpu_custom_call.1} parent=11 // pred_fallthru
          _
        // Predicated region
        $region57: #{tpu_custom_call.1} parent=11 // pred_check
          %p409 = pneg %p303
        $region58: #{tpu_custom_call.1} parent=11 // pred_check_branch
          %411 = sbr.rel (%p409) target = $region60
        $region59: #{tpu_custom_call.1} parent=11 // pred_region
          _
        $region60: #{tpu_custom_call.1} parent=11 // pred_fallthru
          _
      $region12: #{tpu_custom_call.1} parent=5 // pred_fallthru
        _
      %p412 = scmp.lt.s32.totalorder %s25, 2
      // Predicated region
      $region61: #{tpu_custom_call.1} parent=5 // pred_check
        %p413 = pneg %p412
      $region62: #{tpu_custom_call.1} parent=5 // pred_check_branch
        %415 = sbr.rel (%p413) target = $region64
      $region63: #{tpu_custom_call.1} parent=5 // pred_region
        // Predicated region
        $region65: #{tpu_custom_call.1} parent=63 // pred_check
          %p416 = pneg %p45
        $region66: #{tpu_custom_call.1} parent=63 // pred_check_branch
          %418 = sbr.rel (%p416) target = $region68
        $region67: #{tpu_custom_call.1} parent=63 // pred_region
          %p419 = scmp.lt.s32.totalorder %s25, 1
          %s420 = scalar_select %p419, %s25, 1
          %s421 = smul.addr %s420, 8
          %s422 = scalar_lea.vmem %s0, %s421
        $region68: #{tpu_custom_call.1} parent=63 // pred_fallthru
          _
      $region64: #{tpu_custom_call.1} parent=5 // pred_fallthru
        _
      %p423 = scmp.le.s32.totalorder 1, %s25
      %p424 = scmp.lt.s32.totalorder %s25, 3
      %p425 = pnand %p423, %p424
      %p426 = pneg %p425
      // Predicated region
      $region69: #{tpu_custom_call.1} parent=5 // pred_check
        _
      $region70: #{tpu_custom_call.1} parent=5 // pred_check_branch
        %428 = sbr.rel (%p425) target = $region72
      $region71: #{tpu_custom_call.1} parent=5 // pred_region
        %s429 = ssub.s32 %s25, 1
        // Predicated region
        $region73: #{tpu_custom_call.1} parent=71 // pred_check
          %p430 = pneg %p135
        $region74: #{tpu_custom_call.1} parent=71 // pred_check_branch
          %432 = sbr.rel (%p430) target = $region76
        $region75: #{tpu_custom_call.1} parent=71 // pred_region
          %433 = dma.done [#allocation4], 16
        $region76: #{tpu_custom_call.1} parent=71 // pred_fallthru
          _
        // Predicated region
        $region77: #{tpu_custom_call.1} parent=71 // pred_check
          %p434 = pneg %p177
        $region78: #{tpu_custom_call.1} parent=71 // pred_check_branch
          %436 = sbr.rel (%p434) target = $region80
        $region79: #{tpu_custom_call.1} parent=71 // pred_region
          %437 = dma.done [#allocation7], 16
        $region80: #{tpu_custom_call.1} parent=71 // pred_fallthru
          _
        // Predicated region
        $region81: #{tpu_custom_call.1} parent=71 // pred_check
          %p438 = pneg %p198
        $region82: #{tpu_custom_call.1} parent=71 // pred_check_branch
          %440 = sbr.rel (%p438) target = $region84
        $region83: #{tpu_custom_call.1} parent=71 // pred_region
          %441 = dma.done [#allocation7], 16
        $region84: #{tpu_custom_call.1} parent=71 // pred_fallthru
          _
        // Predicated region
        $region85: #{tpu_custom_call.1} parent=71 // pred_check
          %p442 = pneg %p219
        $region86: #{tpu_custom_call.1} parent=71 // pred_check_branch
          %444 = sbr.rel (%p442) target = $region88
        $region87: #{tpu_custom_call.1} parent=71 // pred_region
          %445 = dma.done [#allocation10], 16
        $region88: #{tpu_custom_call.1} parent=71 // pred_fallthru
          _
        %p446 = scmp.lt.s32.totalorder %s30, 1
        %s447 = scalar_select %p446, %s30, 1
        %s448 = smul.addr %s447, 8
        %s449 = scalar_lea.vmem %s0, %s448
        %p450 = pneg %p51
        %p451 = pneg %p48
        %p452 = pneg %p72
        %p453 = pneg %p69
        %p454 = pneg %p93
        %p455 = pneg %p90
        %p456 = pneg %p114
        %p457 = pneg %p111
        %p458 = pneg %p135
        %p459 = pneg %p132
        %p460 = pneg %p156
        %p461 = pneg %p153
        %p462 = pneg %p177
        %p463 = pneg %p174
        %p464 = pneg %p198
        %p465 = pneg %p195
        %p466 = pneg %p219
        %p467 = pneg %p216
        %p468 = pneg %p240
        %p469 = pneg %p237
        %p470 = pneg %p261
        %p471 = pneg %p258
        %p472 = pneg %p282
        %p473 = pneg %p279
        %p474 = pneg %p303
        %p475 = pneg %p300
        %p476 = pneg %p329
        %p477 = pneg %p326
        %s478 = sand.u32 %s316, 1
        %s479 = scalar_lea.sflag [#allocation5], %s478
        %s480 = sand.u32 %s316, 1
        %s481 = smul.addr %s480, 8
        %s482 = scalar_lea.vmem [#allocation11], %s481
        %p483 = scmp.lt.s32.totalorder %s30, 1
        %s484 = scalar_select %p483, %s30, 1
        %s485 = smul.addr %s484, 8
        %s486 = scalar_lea.vmem %s0, %s485
        %v488 = vld [vmem:[%s486] sm:$0xff]
        %v489 = vld [vmem:[%s1] sm:$0x1]
        %v490 = vld [vmem:[%s2] sm:$0x1]
        %vm491 = vcmask 261120
        %v492 = vsel %vm491, %v488, 0.0
        %493 = vadd.xlane.f32.xlu0 %v492
        %v494 = vpop.xlane.xlu0 %493
        %v495 = vrcp.pop 32.0
        %v496 = vmul.f32 %v494, %v495
        %v497 = vsub.f32 %v488, %v496
        %v498 = vmul.f32 %v497, %v497
        %v499 = vsel %vm491, %v498, 0.0
        %500 = vadd.xlane.f32.xlu0 %v499
        %v501 = vpop.xlane.xlu0 %500
        %v502 = vmul.f32 %v501, %v495
        %v503 = vadd.f32 %v502, 1e-05
        %v504 = vrsqrt.pop %v503
        %v505 = vmul.f32 %v497, %v504
        %v507 = vlaneseq
        %v508 = vshrl.u32 %v507, 7
        %v509 = vsub.s32 0, %v508
        %v510 = vrot.slane %v489, %v509
        %v512 = vmul.f32 %v505, %v510
        %v514 = vlaneseq
        %v515 = vshrl.u32 %v514, 7
        %v516 = vsub.s32 0, %v515
        %v517 = vrot.slane %v490, %v516
        %v519 = vadd.f32 %v512, %v517
        %v520 = vld [vmem:[%s3] sm:$0xf]
        %v521 = vld [vmem:[%s3 + $0x4] sm:$0xf]
        %v522 = vld [vmem:[%s3 + $0x8] sm:$0xf]
        %v523 = vld [vmem:[%s3 + $0xc] sm:$0xf]
        %v524 = vpack.c.bf16 %v519, %v519
        %v525 = vld [vmem:[#allocation3] sm:$0x1]
        %v527 = vlaneseq
        %v528 = vshrl.u32 %v527, 7
        %v529 = vsub.s32 0, %v528
        %v530 = vrot.slane %v525, %v529
        %v536 = vunpack.c.l.b16 %v520
        %v537 = vunpack.c.l.b16 %v521
        %v538 = vunpack.c.l.b16 %v522
        %v539 = vunpack.c.l.b16 %v523
        %v540 = vpack.c.b16 %v537, %v536
        %v541 = vpack.c.b16 %v539, %v538
        %v545 = vsel %vm491, %v524, 0
        %547 = vmatprep.subr.bf16.mxu0 0
        %548 = vmatpush1.bf16.msra.mxu0 %v540
        %549 = vmatprep.subr.bf16.mxu0 0
        %550 = vmatpush1.bf16.msra.mxu0 %v541
        %551 = vmatprep.subr.bf16.mxu0 0
        %552 = vmatpush1.bf16.msra.mxu0 0
        %553 = vmatprep.subr.bf16.mxu0 0
        %554 = vmatpush1.bf16.msra.mxu0 0
        %555 = vmatprep.subr.bf16.mxu0 0
        %556 = vmatpush1.bf16.msra.mxu0 0
        %557 = vmatprep.subr.bf16.mxu0 0
        %558 = vmatpush1.bf16.msra.mxu0 0
        %559 = vmatprep.subr.bf16.mxu0 0
        %560 = vmatpush1.bf16.msra.mxu0 0
        %561 = vmatprep.subr.bf16.mxu0 0
        %562 = vmatpush1.bf16.msra.mxu0 0
        %563 = vmatprep.subr.bf16.mxu0 0
        %564 = vmatpush1.bf16.msra.mxu0 0
        %565 = vmatprep.subr.bf16.mxu0 0
        %566 = vmatpush1.bf16.msra.mxu0 0
        %567 = vmatprep.subr.bf16.mxu0 0
        %568 = vmatpush1.bf16.msra.mxu0 0
        %569 = vmatprep.subr.bf16.mxu0 0
        %570 = vmatpush1.bf16.msra.mxu0 0
        %571 = vmatprep.subr.bf16.mxu0 0
        %572 = vmatpush1.bf16.msra.mxu0 0
        %573 = vmatprep.subr.bf16.mxu0 0
        %574 = vmatpush1.bf16.msra.mxu0 0
        %575 = vmatprep.subr.bf16.mxu0 0
        %576 = vmatpush1.bf16.msra.mxu0 0
        %577 = vmatprep.subr.bf16.mxu0 0
        %578 = vmatpush1.bf16.msra.mxu0 0
        %579 = vmatprep.mubr.bf16.mxu0 0
        %580 = vmatmul.mubr.bf16.gmra.mrb[0].mxu0 %v545
        %v581 = vpop.f32.mrb[0].mxu0
        %v582 = vadd.f32 %v530, %v581
        %v583 = vpop.f32.mrb[0].mxu0
        %v584 = vpop.f32.mrb[0].mxu0
        %v585 = vpop.f32.mrb[0].mxu0
        %586 = vdwg.mxu0
        %587 = vst.msk [vmem:[#allocation2] sm:$0xff] %vm491, 0.0
        %v588 = vpack.c.bf16 %v582, %v582
        %590 = vrot.lane.b32.xlu0 %v588, 96
        %v591 = vpop.permute.xlu0 %590
        %vm592 = vcmask 64512
        %v594 = vsel %vm592, %v588, 0
        %v597 = vsel %vm592, %v591, 0
        %599 = vmatprep.subr.bf16.mxu0 0
        %600 = vmatpush1.bf16.xpose.msra.mxu0 %v597
        %601 = vmatprep.subr.bf16.mxu0 0
        %602 = vmatpush1.bf16.xpose.msra.mxu0 0
        %603 = vmatprep.subr.bf16.mxu0 0
        %604 = vmatpush1.bf16.xpose.msra.mxu0 0
        %605 = vmatprep.subr.bf16.mxu0 0
        %606 = vmatpush1.bf16.xpose.msra.mxu0 0
        %607 = vmatprep.subr.bf16.mxu0 0
        %608 = vmatpush1.bf16.xpose.msra.mxu0 0
        %609 = vmatprep.subr.bf16.mxu0 0
        %610 = vmatpush1.bf16.xpose.msra.mxu0 0
        %611 = vmatprep.subr.bf16.mxu0 0
        %612 = vmatpush1.bf16.xpose.msra.mxu0 0
        %613 = vmatprep.subr.bf16.mxu0 0
        %614 = vmatpush1.bf16.xpose.msra.mxu0 0
        %615 = vmatprep.subr.bf16.mxu0 0
        %616 = vmatpush1.bf16.xpose.msra.mxu0 0
        %617 = vmatprep.subr.bf16.mxu0 0
        %618 = vmatpush1.bf16.xpose.msra.mxu0 0
        %619 = vmatprep.subr.bf16.mxu0 0
        %620 = vmatpush1.bf16.xpose.msra.mxu0 0
        %621 = vmatprep.subr.bf16.mxu0 0
        %622 = vmatpush1.bf16.xpose.msra.mxu0 0
        %623 = vmatprep.subr.bf16.mxu0 0
        %624 = vmatpush1.bf16.xpose.msra.mxu0 0
        %625 = vmatprep.subr.bf16.mxu0 0
        %626 = vmatpush1.bf16.xpose.msra.mxu0 0
        %627 = vmatprep.subr.bf16.mxu0 0
        %628 = vmatpush1.bf16.xpose.msra.mxu0 0
        %629 = vmatprep.subr.bf16.mxu0 0
        %630 = vmatpush1.bf16.xpose.msra.mxu0 0
        %631 = vmatprep.mubr.bf16.mxu0 0
        %632 = vmatmul.mubr.bf16.gmra.mrb[0].mxu0 %v594
        %v633 = vpop.f32.mrb[0].mxu0
        %v634 = vadd.f32 0.0, %v633
        %v635 = vpop.f32.mrb[0].mxu0
        %v636 = vpop.f32.mrb[0].mxu0
        %v637 = vpop.f32.mrb[0].mxu0
        %638 = vdwg.mxu0
        %v639 = vsel %vm592, %v634, -inf
        %640 = vmax.xlane.f32.xlu0 %v639
        %v641 = vpop.xlane.xlu0 %640
        %v642 = vsub.f32 %v634, %v641
        %v643 = vmul.f32 %v642, 1.442695
        %v644 = vpow.pop %v643
        %v645 = vsel %vm592, %v644, 0.0
        %646 = vadd.xlane.f32.xlu0 %v645
        %v647 = vpop.xlane.xlu0 %646
        %v648 = vrcp.pop %v647
        %v649 = vmul.f32 %v644, %v648
        %v650 = vpack.c.bf16 %v649, %v649
        %651 = vrot.lane.b32.xlu0 %v588, 64
        %v652 = vpop.permute.xlu0 %651
        %v654 = vsel %vm592, %v650, 0
        %vm656 = vcmask 1043456
        %v658 = vsel %vm656, %v652, 0
        %660 = vmatprep.subr.bf16.mxu0 0
        %661 = vmatpush1.bf16.msra.mxu0 %v658
        %662 = vmatprep.subr.bf16.mxu0 0
        %663 = vmatpush1.bf16.msra.mxu0 0
        %664 = vmatprep.subr.bf16.mxu0 0
        %665 = vmatpush1.bf16.msra.mxu0 0
        %666 = vmatprep.subr.bf16.mxu0 0
        %667 = vmatpush1.bf16.msra.mxu0 0
        %668 = vmatprep.subr.bf16.mxu0 0
        %669 = vmatpush1.bf16.msra.mxu0 0
        %670 = vmatprep.subr.bf16.mxu0 0
        %671 = vmatpush1.bf16.msra.mxu0 0
        %672 = vmatprep.subr.bf16.mxu0 0
        %673 = vmatpush1.bf16.msra.mxu0 0
        %674 = vmatprep.subr.bf16.mxu0 0
        %675 = vmatpush1.bf16.msra.mxu0 0
        %676 = vmatprep.subr.bf16.mxu0 0
        %677 = vmatpush1.bf16.msra.mxu0 0
        %678 = vmatprep.subr.bf16.mxu0 0
        %679 = vmatpush1.bf16.msra.mxu0 0
        %680 = vmatprep.subr.bf16.mxu0 0
        %681 = vmatpush1.bf16.msra.mxu0 0
        %682 = vmatprep.subr.bf16.mxu0 0
        %683 = vmatpush1.bf16.msra.mxu0 0
        %684 = vmatprep.subr.bf16.mxu0 0
        %685 = vmatpush1.bf16.msra.mxu0 0
        %686 = vmatprep.subr.bf16.mxu0 0
        %687 = vmatpush1.bf16.msra.mxu0 0
        %688 = vmatprep.subr.bf16.mxu0 0
        %689 = vmatpush1.bf16.msra.mxu0 0
        %690 = vmatprep.subr.bf16.mxu0 0
        %691 = vmatpush1.bf16.msra.mxu0 0
        %692 = vmatprep.mubr.bf16.mxu0 0
        %693 = vmatmul.mubr.bf16.gmra.mrb[0].mxu0 %v654
        %v694 = vpop.f32.mrb[0].mxu0
        %v695 = vadd.f32 0.0, %v694
        %v696 = vpop.f32.mrb[0].mxu0
        %v697 = vpop.f32.mrb[0].mxu0
        %v698 = vpop.f32.mrb[0].mxu0
        %699 = vdwg.mxu0
        %v700 = vld [vmem:[#allocation2] sm:$0xff]
        %v701 = vld [vmem:[%s5] sm:$0xf]
        %v702 = vpack.c.bf16 %v695, %v695
        %v704 = vsel %vm592, %v702, 0
        %v707 = vsel %vm656, %v701, 0
        %709 = vmatprep.subr.bf16.mxu0 0
        %710 = vmatpush1.bf16.msra.mxu0 %v707
        %711 = vmatprep.subr.bf16.mxu0 0
        %712 = vmatpush1.bf16.msra.mxu0 0
        %713 = vmatprep.subr.bf16.mxu0 0
        %714 = vmatpush1.bf16.msra.mxu0 0
        %715 = vmatprep.subr.bf16.mxu0 0
        %716 = vmatpush1.bf16.msra.mxu0 0
        %717 = vmatprep.subr.bf16.mxu0 0
        %718 = vmatpush1.bf16.msra.mxu0 0
        %719 = vmatprep.subr.bf16.mxu0 0
        %720 = vmatpush1.bf16.msra.mxu0 0
        %721 = vmatprep.subr.bf16.mxu0 0
        %722 = vmatpush1.bf16.msra.mxu0 0
        %723 = vmatprep.subr.bf16.mxu0 0
        %724 = vmatpush1.bf16.msra.mxu0 0
        %725 = vmatprep.subr.bf16.mxu0 0
        %726 = vmatpush1.bf16.msra.mxu0 0
        %727 = vmatprep.subr.bf16.mxu0 0
        %728 = vmatpush1.bf16.msra.mxu0 0
        %729 = vmatprep.subr.bf16.mxu0 0
        %730 = vmatpush1.bf16.msra.mxu0 0
        %731 = vmatprep.subr.bf16.mxu0 0
        %732 = vmatpush1.bf16.msra.mxu0 0
        %733 = vmatprep.subr.bf16.mxu0 0
        %734 = vmatpush1.bf16.msra.mxu0 0
        %735 = vmatprep.subr.bf16.mxu0 0
        %736 = vmatpush1.bf16.msra.mxu0 0
        %737 = vmatprep.subr.bf16.mxu0 0
        %738 = vmatpush1.bf16.msra.mxu0 0
        %739 = vmatprep.subr.bf16.mxu0 0
        %740 = vmatpush1.bf16.msra.mxu0 0
        %741 = vmatprep.mubr.bf16.mxu0 0
        %742 = vmatmul.mubr.bf16.gmra.mrb[0].mxu0 %v704
        %v743 = vpop.f32.mrb[0].mxu0
        %v744 = vadd.f32 0.0, %v743
        %v745 = vpop.f32.mrb[0].mxu0
        %v746 = vpop.f32.mrb[0].mxu0
        %v747 = vpop.f32.mrb[0].mxu0
        %748 = vdwg.mxu0
        %v749 = vadd.f32 %v700, %v744
        %750 = vst.msk [vmem:[#allocation2] sm:$0xff] %vm491, %v749
        %751 = vrot.lane.b32.xlu0 %v588, 120
        %v752 = vpop.permute.xlu0 %751
        %753 = vrot.lane.b32.xlu0 %v588, 88
        %v754 = vpop.permute.xlu0 %753
        %v756 = vsel %vm592, %v752, 0
        %v759 = vsel %vm592, %v754, 0
        %761 = vmatprep.subr.bf16.mxu0 0
        %762 = vmatpush1.bf16.xpose.msra.mxu0 %v759
        %763 = vmatprep.subr.bf16.mxu0 0
        %764 = vmatpush1.bf16.xpose.msra.mxu0 0
        %765 = vmatprep.subr.bf16.mxu0 0
        %766 = vmatpush1.bf16.xpose.msra.mxu0 0
        %767 = vmatprep.subr.bf16.mxu0 0
        %768 = vmatpush1.bf16.xpose.msra.mxu0 0
        %769 = vmatprep.subr.bf16.mxu0 0
        %770 = vmatpush1.bf16.xpose.msra.mxu0 0
        %771 = vmatprep.subr.bf16.mxu0 0
        %772 = vmatpush1.bf16.xpose.msra.mxu0 0
        %773 = vmatprep.subr.bf16.mxu0 0
        %774 = vmatpush1.bf16.xpose.msra.mxu0 0
        %775 = vmatprep.subr.bf16.mxu0 0
        %776 = vmatpush1.bf16.xpose.msra.mxu0 0
        %777 = vmatprep.subr.bf16.mxu0 0
        %778 = vmatpush1.bf16.xpose.msra.mxu0 0
        %779 = vmatprep.subr.bf16.mxu0 0
        %780 = vmatpush1.bf16.xpose.msra.mxu0 0
        %781 = vmatprep.subr.bf16.mxu0 0
        %782 = vmatpush1.bf16.xpose.msra.mxu0 0
        %783 = vmatprep.subr.bf16.mxu0 0
        %784 = vmatpush1.bf16.xpose.msra.mxu0 0
        %785 = vmatprep.subr.bf16.mxu0 0
        %786 = vmatpush1.bf16.xpose.msra.mxu0 0
        %787 = vmatprep.subr.bf16.mxu0 0
        %788 = vmatpush1.bf16.xpose.msra.mxu0 0
        %789 = vmatprep.subr.bf16.mxu0 0
        %790 = vmatpush1.bf16.xpose.msra.mxu0 0
        %791 = vmatprep.subr.bf16.mxu0 0
        %792 = vmatpush1.bf16.xpose.msra.mxu0 0
        %793 = vmatprep.mubr.bf16.mxu0 0
        %794 = vmatmul.mubr.bf16.gmra.mrb[0].mxu0 %v756
        %v795 = vpop.f32.mrb[0].mxu0
        %v796 = vadd.f32 0.0, %v795
        %v797 = vpop.f32.mrb[0].mxu0
        %v798 = vpop.f32.mrb[0].mxu0
        %v799 = vpop.f32.mrb[0].mxu0
        %800 = vdwg.mxu0
        %v801 = vsel %vm592, %v796, -inf
        %802 = vmax.xlane.f32.xlu0 %v801
        %v803 = vpop.xlane.xlu0 %802
        %v804 = vsub.f32 %v796, %v803
        %v805 = vmul.f32 %v804, 1.442695
        %v806 = vpow.pop %v805
        %v807 = vsel %vm592, %v806, 0.0
        %808 = vadd.xlane.f32.xlu0 %v807
        %v809 = vpop.xlane.xlu0 %808
        %v810 = vrcp.pop %v809
        %v811 = vmul.f32 %v806, %v810
        %v812 = vpack.c.bf16 %v811, %v811
        %813 = vrot.lane.b32.xlu0 %v588, 56
        %v814 = vpop.permute.xlu0 %813
        %v816 = vsel %vm592, %v812, 0
        %v819 = vsel %vm656, %v814, 0
        %821 = vmatprep.subr.bf16.mxu0 0
        %822 = vmatpush1.bf16.msra.mxu0 %v819
        %823 = vmatprep.subr.bf16.mxu0 0
        %824 = vmatpush1.bf16.msra.mxu0 0
        %825 = vmatprep.subr.bf16.mxu0 0
        %826 = vmatpush1.bf16.msra.mxu0 0
        %827 = vmatprep.subr.bf16.mxu0 0
        %828 = vmatpush1.bf16.msra.mxu0 0
        %829 = vmatprep.subr.bf16.mxu0 0
        %830 = vmatpush1.bf16.msra.mxu0 0
        %831 = vmatprep.subr.bf16.mxu0 0
        %832 = vmatpush1.bf16.msra.mxu0 0
        %833 = vmatprep.subr.bf16.mxu0 0
        %834 = vmatpush1.bf16.msra.mxu0 0
        %835 = vmatprep.subr.bf16.mxu0 0
        %836 = vmatpush1.bf16.msra.mxu0 0
        %837 = vmatprep.subr.bf16.mxu0 0
        %838 = vmatpush1.bf16.msra.mxu0 0
        %839 = vmatprep.subr.bf16.mxu0 0
        %840 = vmatpush1.bf16.msra.mxu0 0
        %841 = vmatprep.subr.bf16.mxu0 0
        %842 = vmatpush1.bf16.msra.mxu0 0
        %843 = vmatprep.subr.bf16.mxu0 0
        %844 = vmatpush1.bf16.msra.mxu0 0
        %845 = vmatprep.subr.bf16.mxu0 0
        %846 = vmatpush1.bf16.msra.mxu0 0
        %847 = vmatprep.subr.bf16.mxu0 0
        %848 = vmatpush1.bf16.msra.mxu0 0
        %849 = vmatprep.subr.bf16.mxu0 0
        %850 = vmatpush1.bf16.msra.mxu0 0
        %851 = vmatprep.subr.bf16.mxu0 0
        %852 = vmatpush1.bf16.msra.mxu0 0
        %853 = vmatprep.mubr.bf16.mxu0 0
        %854 = vmatmul.mubr.bf16.gmra.mrb[0].mxu0 %v816
        %v855 = vpop.f32.mrb[0].mxu0
        %v856 = vadd.f32 0.0, %v855
        %v857 = vpop.f32.mrb[0].mxu0
        %v858 = vpop.f32.mrb[0].mxu0
        %v859 = vpop.f32.mrb[0].mxu0
        %860 = vdwg.mxu0
        %v861 = vld [vmem:[#allocation2] sm:$0xff]
        %s862 = scalar_lea.vmem %s5, 4
        %v863 = vld [vmem:[%s862] sm:$0xf]
        %v864 = vpack.c.bf16 %v856, %v856
        %v866 = vsel %vm592, %v864, 0
        %v869 = vsel %vm656, %v863, 0
        %871 = vmatprep.subr.bf16.mxu0 0
        %872 = vmatpush1.bf16.msra.mxu0 %v869
        %873 = vmatprep.subr.bf16.mxu0 0
        %874 = vmatpush1.bf16.msra.mxu0 0
        %875 = vmatprep.subr.bf16.mxu0 0
        %876 = vmatpush1.bf16.msra.mxu0 0
        %877 = vmatprep.subr.bf16.mxu0 0
        %878 = vmatpush1.bf16.msra.mxu0 0
        %879 = vmatprep.subr.bf16.mxu0 0
        %880 = vmatpush1.bf16.msra.mxu0 0
        %881 = vmatprep.subr.bf16.mxu0 0
        %882 = vmatpush1.bf16.msra.mxu0 0
        %883 = vmatprep.subr.bf16.mxu0 0
        %884 = vmatpush1.bf16.msra.mxu0 0
        %885 = vmatprep.subr.bf16.mxu0 0
        %886 = vmatpush1.bf16.msra.mxu0 0
        %887 = vmatprep.subr.bf16.mxu0 0
        %888 = vmatpush1.bf16.msra.mxu0 0
        %889 = vmatprep.subr.bf16.mxu0 0
        %890 = vmatpush1.bf16.msra.mxu0 0
        %891 = vmatprep.subr.bf16.mxu0 0
        %892 = vmatpush1.bf16.msra.mxu0 0
        %893 = vmatprep.subr.bf16.mxu0 0
        %894 = vmatpush1.bf16.msra.mxu0 0
        %895 = vmatprep.subr.bf16.mxu0 0
        %896 = vmatpush1.bf16.msra.mxu0 0
        %897 = vmatprep.subr.bf16.mxu0 0
        %898 = vmatpush1.bf16.msra.mxu0 0
        %899 = vmatprep.subr.bf16.mxu0 0
        %900 = vmatpush1.bf16.msra.mxu0 0
        %901 = vmatprep.subr.bf16.mxu0 0
        %902 = vmatpush1.bf16.msra.mxu0 0
        %903 = vmatprep.mubr.bf16.mxu0 0
        %904 = vmatmul.mubr.bf16.gmra.mrb[0].mxu0 %v866
        %v905 = vpop.f32.mrb[0].mxu0
        %v906 = vadd.f32 0.0, %v905
        %v907 = vpop.f32.mrb[0].mxu0
        %v908 = vpop.f32.mrb[0].mxu0
        %v909 = vpop.f32.mrb[0].mxu0
        %910 = vdwg.mxu0
        %v911 = vadd.f32 %v861, %v906
        %912 = vst.msk [vmem:[#allocation2] sm:$0xff] %vm491, %v911
        %913 = vrot.lane.b32.xlu0 %v588, 112
        %v914 = vpop.permute.xlu0 %913
        %915 = vrot.lane.b32.xlu0 %v588, 80
        %v916 = vpop.permute.xlu0 %915
        %v918 = vsel %vm592, %v914, 0
        %v921 = vsel %vm592, %v916, 0
        %923 = vmatprep.subr.bf16.mxu0 0
        %924 = vmatpush1.bf16.xpose.msra.mxu0 %v921
        %925 = vmatprep.subr.bf16.mxu0 0
        %926 = vmatpush1.bf16.xpose.msra.mxu0 0
        %927 = vmatprep.subr.bf16.mxu0 0
        %928 = vmatpush1.bf16.xpose.msra.mxu0 0
        %929 = vmatprep.subr.bf16.mxu0 0
        %930 = vmatpush1.bf16.xpose.msra.mxu0 0
        %931 = vmatprep.subr.bf16.mxu0 0
        %932 = vmatpush1.bf16.xpose.msra.mxu0 0
        %933 = vmatprep.subr.bf16.mxu0 0
        %934 = vmatpush1.bf16.xpose.msra.mxu0 0
        %935 = vmatprep.subr.bf16.mxu0 0
        %936 = vmatpush1.bf16.xpose.msra.mxu0 0
        %937 = vmatprep.subr.bf16.mxu0 0
        %938 = vmatpush1.bf16.xpose.msra.mxu0 0
        %939 = vmatprep.subr.bf16.mxu0 0
        %940 = vmatpush1.bf16.xpose.msra.mxu0 0
        %941 = vmatprep.subr.bf16.mxu0 0
        %942 = vmatpush1.bf16.xpose.msra.mxu0 0
        %943 = vmatprep.subr.bf16.mxu0 0
        %944 = vmatpush1.bf16.xpose.msra.mxu0 0
        %945 = vmatprep.subr.bf16.mxu0 0
        %946 = vmatpush1.bf16.xpose.msra.mxu0 0
        %947 = vmatprep.subr.bf16.mxu0 0
        %948 = vmatpush1.bf16.xpose.msra.mxu0 0
        %949 = vmatprep.subr.bf16.mxu0 0
        %950 = vmatpush1.bf16.xpose.msra.mxu0 0
        %951 = vmatprep.subr.bf16.mxu0 0
        %952 = vmatpush1.bf16.xpose.msra.mxu0 0
        %953 = vmatprep.subr.bf16.mxu0 0
        %954 = vmatpush1.bf16.xpose.msra.mxu0 0
        %955 = vmatprep.mubr.bf16.mxu0 0
        %956 = vmatmul.mubr.bf16.gmra.mrb[0].mxu0 %v918
        %v957 = vpop.f32.mrb[0].mxu0
        %v958 = vadd.f32 0.0, %v957
        %v959 = vpop.f32.mrb[0].mxu0
        %v960 = vpop.f32.mrb[0].mxu0
        %v961 = vpop.f32.mrb[0].mxu0
        %962 = vdwg.mxu0
        %v963 = vsel %vm592, %v958, -inf
        %964 = vmax.xlane.f32.xlu0 %v963
        %v965 = vpop.xlane.xlu0 %964
        %v966 = vsub.f32 %v958, %v965
        %v967 = vmul.f32 %v966, 1.442695
        %v968 = vpow.pop %v967
        %v969 = vsel %vm592, %v968, 0.0
        %970 = vadd.xlane.f32.xlu0 %v969
        %v971 = vpop.xlane.xlu0 %970
        %v972 = vrcp.pop %v971
        %v973 = vmul.f32 %v968, %v972
        %v974 = vpack.c.bf16 %v973, %v973
        %975 = vrot.lane.b32.xlu0 %v588, 48
        %v976 = vpop.permute.xlu0 %975
        %v978 = vsel %vm592, %v974, 0
        %v981 = vsel %vm656, %v976, 0
        %983 = vmatprep.subr.bf16.mxu0 0
        %984 = vmatpush1.bf16.msra.mxu0 %v981
        %985 = vmatprep.subr.bf16.mxu0 0
        %986 = vmatpush1.bf16.msra.mxu0 0
        %987 = vmatprep.subr.bf16.mxu0 0
        %988 = vmatpush1.bf16.msra.mxu0 0
        %989 = vmatprep.subr.bf16.mxu0 0
        %990 = vmatpush1.bf16.msra.mxu0 0
        %991 = vmatprep.subr.bf16.mxu0 0
        %992 = vmatpush1.bf16.msra.mxu0 0
        %993 = vmatprep.subr.bf16.mxu0 0
        %994 = vmatpush1.bf16.msra.mxu0 0
        %995 = vmatprep.subr.bf16.mxu0 0
        %996 = vmatpush1.bf16.msra.mxu0 0
        %997 = vmatprep.subr.bf16.mxu0 0
        %998 = vmatpush1.bf16.msra.mxu0 0
        %999 = vmatprep.subr.bf16.mxu0 0
        %1000 = vmatpush1.bf16.msra.mxu0 0
        %1001 = vmatprep.subr.bf16.mxu0 0
        %1002 = vmatpush1.bf16.msra.mxu0 0
        %1003 = vmatprep.subr.bf16.mxu0 0
        %1004 = vmatpush1.bf16.msra.mxu0 0
        %1005 = vmatprep.subr.bf16.mxu0 0
        %1006 = vmatpush1.bf16.msra.mxu0 0
        %1007 = vmatprep.subr.bf16.mxu0 0
        %1008 = vmatpush1.bf16.msra.mxu0 0
        %1009 = vmatprep.subr.bf16.mxu0 0
        %1010 = vmatpush1.bf16.msra.mxu0 0
        %1011 = vmatprep.subr.bf16.mxu0 0
        %1012 = vmatpush1.bf16.msra.mxu0 0
        %1013 = vmatprep.subr.bf16.mxu0 0
        %1014 = vmatpush1.bf16.msra.mxu0 0
        %1015 = vmatprep.mubr.bf16.mxu0 0
        %1016 = vmatmul.mubr.bf16.gmra.mrb[0].mxu0 %v978
        %v1017 = vpop.f32.mrb[0].mxu0
        %v1018 = vadd.f32 0.0, %v1017
        %v1019 = vpop.f32.mrb[0].mxu0
        %v1020 = vpop.f32.mrb[0].mxu0
        %v1021 = vpop.f32.mrb[0].mxu0
        %1022 = vdwg.mxu0
        %v1023 = vld [vmem:[#allocation2] sm:$0xff]
        %s1024 = scalar_lea.vmem %s5, 8
        %v1025 = vld [vmem:[%s1024] sm:$0xf]
        %v1026 = vpack.c.bf16 %v1018, %v1018
        %v1028 = vsel %vm592, %v1026, 0
        %v1031 = vsel %vm656, %v1025, 0
        %1033 = vmatprep.subr.bf16.mxu0 0
        %1034 = vmatpush1.bf16.msra.mxu0 %v1031
        %1035 = vmatprep.subr.bf16.mxu0 0
        %1036 = vmatpush1.bf16.msra.mxu0 0
        %1037 = vmatprep.subr.bf16.mxu0 0
        %1038 = vmatpush1.bf16.msra.mxu0 0
        %1039 = vmatprep.subr.bf16.mxu0 0
        %1040 = vmatpush1.bf16.msra.mxu0 0
        %1041 = vmatprep.subr.bf16.mxu0 0
        %1042 = vmatpush1.bf16.msra.mxu0 0
        %1043 = vmatprep.subr.bf16.mxu0 0
        %1044 = vmatpush1.bf16.msra.mxu0 0
        %1045 = vmatprep.subr.bf16.mxu0 0
        %1046 = vmatpush1.bf16.msra.mxu0 0
        %1047 = vmatprep.subr.bf16.mxu0 0
        %1048 = vmatpush1.bf16.msra.mxu0 0
        %1049 = vmatprep.subr.bf16.mxu0 0
        %1050 = vmatpush1.bf16.msra.mxu0 0
        %1051 = vmatprep.subr.bf16.mxu0 0
        %1052 = vmatpush1.bf16.msra.mxu0 0
        %1053 = vmatprep.subr.bf16.mxu0 0
        %1054 = vmatpush1.bf16.msra.mxu0 0
        %1055 = vmatprep.subr.bf16.mxu0 0
        %1056 = vmatpush1.bf16.msra.mxu0 0
        %1057 = vmatprep.subr.bf16.mxu0 0
        %1058 = vmatpush1.bf16.msra.mxu0 0
        %1059 = vmatprep.subr.bf16.mxu0 0
        %1060 = vmatpush1.bf16.msra.mxu0 0
        %1061 = vmatprep.subr.bf16.mxu0 0
        %1062 = vmatpush1.bf16.msra.mxu0 0
        %1063 = vmatprep.subr.bf16.mxu0 0
        %1064 = vmatpush1.bf16.msra.mxu0 0
        %1065 = vmatprep.mubr.bf16.mxu0 0
        %1066 = vmatmul.mubr.bf16.gmra.mrb[0].mxu0 %v1028
        %v1067 = vpop.f32.mrb[0].mxu0
        %v1068 = vadd.f32 0.0, %v1067
        %v1069 = vpop.f32.mrb[0].mxu0
        %v1070 = vpop.f32.mrb[0].mxu0
        %v1071 = vpop.f32.mrb[0].mxu0
        %1072 = vdwg.mxu0
        %v1073 = vadd.f32 %v1023, %v1068
        %1074 = vst.msk [vmem:[#allocation2] sm:$0xff] %vm491, %v1073
        %1075 = vrot.lane.b32.xlu0 %v588, 104
        %v1076 = vpop.permute.xlu0 %1075
        %1077 = vrot.lane.b32.xlu0 %v588, 72
        %v1078 = vpop.permute.xlu0 %1077
        %v1080 = vsel %vm592, %v1076, 0
        %v1083 = vsel %vm592, %v1078, 0
        %1085 = vmatprep.subr.bf16.mxu0 0
        %1086 = vmatpush1.bf16.xpose.msra.mxu0 %v1083
        %1087 = vmatprep.subr.bf16.mxu0 0
        %1088 = vmatpush1.bf16.xpose.msra.mxu0 0
        %1089 = vmatprep.subr.bf16.mxu0 0
        %1090 = vmatpush1.bf16.xpose.msra.mxu0 0
        %1091 = vmatprep.subr.bf16.mxu0 0
        %1092 = vmatpush1.bf16.xpose.msra.mxu0 0
        %1093 = vmatprep.subr.bf16.mxu0 0
        %1094 = vmatpush1.bf16.xpose.msra.mxu0 0
        %1095 = vmatprep.subr.bf16.mxu0 0
        %1096 = vmatpush1.bf16.xpose.msra.mxu0 0
        %1097 = vmatprep.subr.bf16.mxu0 0
        %1098 = vmatpush1.bf16.xpose.msra.mxu0 0
        %1099 = vmatprep.subr.bf16.mxu0 0
        %1100 = vmatpush1.bf16.xpose.msra.mxu0 0
        %1101 = vmatprep.subr.bf16.mxu0 0
        %1102 = vmatpush1.bf16.xpose.msra.mxu0 0
        %1103 = vmatprep.subr.bf16.mxu0 0
        %1104 = vmatpush1.bf16.xpose.msra.mxu0 0
        %1105 = vmatprep.subr.bf16.mxu0 0
        %1106 = vmatpush1.bf16.xpose.msra.mxu0 0
        %1107 = vmatprep.subr.bf16.mxu0 0
        %1108 = vmatpush1.bf16.xpose.msra.mxu0 0
        %1109 = vmatprep.subr.bf16.mxu0 0
        %1110 = vmatpush1.bf16.xpose.msra.mxu0 0
        %1111 = vmatprep.subr.bf16.mxu0 0
        %1112 = vmatpush1.bf16.xpose.msra.mxu0 0
        %1113 = vmatprep.subr.bf16.mxu0 0
        %1114 = vmatpush1.bf16.xpose.msra.mxu0 0
        %1115 = vmatprep.subr.bf16.mxu0 0
        %1116 = vmatpush1.bf16.xpose.msra.mxu0 0
        %1117 = vmatprep.mubr.bf16.mxu0 0
        %1118 = vmatmul.mubr.bf16.gmra.mrb[0].mxu0 %v1080
        %v1119 = vpop.f32.mrb[0].mxu0
        %v1120 = vadd.f32 0.0, %v1119
        %v1121 = vpop.f32.mrb[0].mxu0
        %v1122 = vpop.f32.mrb[0].mxu0
        %v1123 = vpop.f32.mrb[0].mxu0
        %1124 = vdwg.mxu0
        %v1125 = vsel %vm592, %v1120, -inf
        %1126 = vmax.xlane.f32.xlu0 %v1125
        %v1127 = vpop.xlane.xlu0 %1126
        %v1128 = vsub.f32 %v1120, %v1127
        %v1129 = vmul.f32 %v1128, 1.442695
        %v1130 = vpow.pop %v1129
        %v1131 = vsel %vm592, %v1130, 0.0
        %1132 = vadd.xlane.f32.xlu0 %v1131
        %v1133 = vpop.xlane.xlu0 %1132
        %v1134 = vrcp.pop %v1133
        %v1135 = vmul.f32 %v1130, %v1134
        %v1136 = vpack.c.bf16 %v1135, %v1135
        %1137 = vrot.lane.b32.xlu0 %v588, 40
        %v1138 = vpop.permute.xlu0 %1137
        %v1140 = vsel %vm592, %v1136, 0
        %v1143 = vsel %vm656, %v1138, 0
        %1145 = vmatprep.subr.bf16.mxu0 0
        %1146 = vmatpush1.bf16.msra.mxu0 %v1143
        %1147 = vmatprep.subr.bf16.mxu0 0
        %1148 = vmatpush1.bf16.msra.mxu0 0
        %1149 = vmatprep.subr.bf16.mxu0 0
        %1150 = vmatpush1.bf16.msra.mxu0 0
        %1151 = vmatprep.subr.bf16.mxu0 0
        %1152 = vmatpush1.bf16.msra.mxu0 0
        %1153 = vmatprep.subr.bf16.mxu0 0
        %1154 = vmatpush1.bf16.msra.mxu0 0
        %1155 = vmatprep.subr.bf16.mxu0 0
        %1156 = vmatpush1.bf16.msra.mxu0 0
        %1157 = vmatprep.subr.bf16.mxu0 0
        %1158 = vmatpush1.bf16.msra.mxu0 0
        %1159 = vmatprep.subr.bf16.mxu0 0
        %1160 = vmatpush1.bf16.msra.mxu0 0
        %1161 = vmatprep.subr.bf16.mxu0 0
        %1162 = vmatpush1.bf16.msra.mxu0 0
        %1163 = vmatprep.subr.bf16.mxu0 0
        %1164 = vmatpush1.bf16.msra.mxu0 0
        %1165 = vmatprep.subr.bf16.mxu0 0
        %1166 = vmatpush1.bf16.msra.mxu0 0
        %1167 = vmatprep.subr.bf16.mxu0 0
        %1168 = vmatpush1.bf16.msra.mxu0 0
        %1169 = vmatprep.subr.bf16.mxu0 0
        %1170 = vmatpush1.bf16.msra.mxu0 0
        %1171 = vmatprep.subr.bf16.mxu0 0
        %1172 = vmatpush1.bf16.msra.mxu0 0
        %1173 = vmatprep.subr.bf16.mxu0 0
        %1174 = vmatpush1.bf16.msra.mxu0 0
        %1175 = vmatprep.subr.bf16.mxu0 0
        %1176 = vmatpush1.bf16.msra.mxu0 0
        %1177 = vmatprep.mubr.bf16.mxu0 0
        %1178 = vmatmul.mubr.bf16.gmra.mrb[0].mxu0 %v1140
        %v1179 = vpop.f32.mrb[0].mxu0
        %v1180 = vadd.f32 0.0, %v1179
        %v1181 = vpop.f32.mrb[0].mxu0
        %v1182 = vpop.f32.mrb[0].mxu0
        %v1183 = vpop.f32.mrb[0].mxu0
        %1184 = vdwg.mxu0
        %v1185 = vld [vmem:[#allocation2] sm:$0xff]
        %s1186 = scalar_lea.vmem %s5, 12
        %v1187 = vld [vmem:[%s1186] sm:$0xf]
        %v1188 = vpack.c.bf16 %v1180, %v1180
        %v1190 = vsel %vm592, %v1188, 0
        %v1193 = vsel %vm656, %v1187, 0
        %1195 = vmatprep.subr.bf16.mxu0 0
        %1196 = vmatpush1.bf16.msra.mxu0 %v1193
        %1197 = vmatprep.subr.bf16.mxu0 0
        %1198 = vmatpush1.bf16.msra.mxu0 0
        %1199 = vmatprep.subr.bf16.mxu0 0
        %1200 = vmatpush1.bf16.msra.mxu0 0
        %1201 = vmatprep.subr.bf16.mxu0 0
        %1202 = vmatpush1.bf16.msra.mxu0 0
        %1203 = vmatprep.subr.bf16.mxu0 0
        %1204 = vmatpush1.bf16.msra.mxu0 0
        %1205 = vmatprep.subr.bf16.mxu0 0
        %1206 = vmatpush1.bf16.msra.mxu0 0
        %1207 = vmatprep.subr.bf16.mxu0 0
        %1208 = vmatpush1.bf16.msra.mxu0 0
        %1209 = vmatprep.subr.bf16.mxu0 0
        %1210 = vmatpush1.bf16.msra.mxu0 0
        %1211 = vmatprep.subr.bf16.mxu0 0
        %1212 = vmatpush1.bf16.msra.mxu0 0
        %1213 = vmatprep.subr.bf16.mxu0 0
        %1214 = vmatpush1.bf16.msra.mxu0 0
        %1215 = vmatprep.subr.bf16.mxu0 0
        %1216 = vmatpush1.bf16.msra.mxu0 0
        %1217 = vmatprep.subr.bf16.mxu0 0
        %1218 = vmatpush1.bf16.msra.mxu0 0
        %1219 = vmatprep.subr.bf16.mxu0 0
        %1220 = vmatpush1.bf16.msra.mxu0 0
        %1221 = vmatprep.subr.bf16.mxu0 0
        %1222 = vmatpush1.bf16.msra.mxu0 0
        %1223 = vmatprep.subr.bf16.mxu0 0
        %1224 = vmatpush1.bf16.msra.mxu0 0
        %1225 = vmatprep.subr.bf16.mxu0 0
        %1226 = vmatpush1.bf16.msra.mxu0 0
        %1227 = vmatprep.mubr.bf16.mxu0 0
        %1228 = vmatmul.mubr.bf16.gmra.mrb[0].mxu0 %v1190
        %v1229 = vpop.f32.mrb[0].mxu0
        %v1230 = vadd.f32 0.0, %v1229
        %v1231 = vpop.f32.mrb[0].mxu0
        %v1232 = vpop.f32.mrb[0].mxu0
        %v1233 = vpop.f32.mrb[0].mxu0
        %1234 = vdwg.mxu0
        %v1235 = vadd.f32 %v1185, %v1230
        %1236 = vst.msk [vmem:[#allocation2] sm:$0xff] %vm491, %v1235
        %v1237 = vld [vmem:[#allocation2] sm:$0xff]
        %v1238 = vadd.f32 %v488, %v1237
        %v1239 = vld [vmem:[#allocation6] sm:$0x1]
        %v1241 = vlaneseq
        %v1242 = vshrl.u32 %v1241, 7
        %v1243 = vsub.s32 0, %v1242
        %v1244 = vrot.slane %v1239, %v1243
        %v1246 = vadd.f32 %v1238, %v1244
        %v1247 = vld [vmem:[#allocation8] sm:$0x1]
        %v1248 = vld [vmem:[#allocation9] sm:$0x1]
        %v1249 = vsel %vm491, %v1246, 0.0
        %1250 = vadd.xlane.f32.xlu0 %v1249
        %v1251 = vpop.xlane.xlu0 %1250
        %v1252 = vmul.f32 %v1251, %v495
        %v1253 = vsub.f32 %v1246, %v1252
        %v1254 = vmul.f32 %v1253, %v1253
        %v1255 = vsel %vm491, %v1254, 0.0
        %1256 = vadd.xlane.f32.xlu0 %v1255
        %v1257 = vpop.xlane.xlu0 %1256
        %v1258 = vmul.f32 %v1257, %v495
        %v1259 = vadd.f32 %v1258, 1e-05
        %v1260 = vrsqrt.pop %v1259
        %v1261 = vmul.f32 %v1253, %v1260
        %v1263 = vlaneseq
        %v1264 = vshrl.u32 %v1263, 7
        %v1265 = vsub.s32 0, %v1264
        %v1266 = vrot.slane %v1247, %v1265
        %v1268 = vmul.f32 %v1261, %v1266
        %v1270 = vlaneseq
        %v1271 = vshrl.u32 %v1270, 7
        %v1272 = vsub.s32 0, %v1271
        %v1273 = vrot.slane %v1248, %v1272
        %v1275 = vadd.f32 %v1268, %v1273
        %v1276 = vld [vmem:[%s9] sm:$0xf]
        %v1277 = vld [vmem:[%s9 + $0x4] sm:$0xf]
        %v1278 = vld [vmem:[%s9 + $0x8] sm:$0xf]
        %v1279 = vld [vmem:[%s9 + $0xc] sm:$0xf]
        %v1280 = vpack.c.bf16 %v1275, %v1275
        %v1281 = vld [vmem:[%s10] sm:$0x1]
        %v1283 = vlaneseq
        %v1284 = vshrl.u32 %v1283, 7
        %v1285 = vsub.s32 0, %v1284
        %v1286 = vrot.slane %v1281, %v1285
        %v1292 = vunpack.c.l.b16 %v1276
        %v1293 = vunpack.c.l.b16 %v1277
        %v1294 = vunpack.c.l.b16 %v1278
        %v1295 = vunpack.c.l.b16 %v1279
        %v1296 = vpack.c.b16 %v1293, %v1292
        %v1297 = vpack.c.b16 %v1295, %v1294
        %v1301 = vsel %vm491, %v1280, 0
        %1303 = vmatprep.subr.bf16.mxu0 0
        %1304 = vmatpush1.bf16.msra.mxu0 %v1296
        %1305 = vmatprep.subr.bf16.mxu0 0
        %1306 = vmatpush1.bf16.msra.mxu0 %v1297
        %1307 = vmatprep.subr.bf16.mxu0 0
        %1308 = vmatpush1.bf16.msra.mxu0 0
        %1309 = vmatprep.subr.bf16.mxu0 0
        %1310 = vmatpush1.bf16.msra.mxu0 0
        %1311 = vmatprep.subr.bf16.mxu0 0
        %1312 = vmatpush1.bf16.msra.mxu0 0
        %1313 = vmatprep.subr.bf16.mxu0 0
        %1314 = vmatpush1.bf16.msra.mxu0 0
        %1315 = vmatprep.subr.bf16.mxu0 0
        %1316 = vmatpush1.bf16.msra.mxu0 0
        %1317 = vmatprep.subr.bf16.mxu0 0
        %1318 = vmatpush1.bf16.msra.mxu0 0
        %1319 = vmatprep.subr.bf16.mxu0 0
        %1320 = vmatpush1.bf16.msra.mxu0 0
        %1321 = vmatprep.subr.bf16.mxu0 0
        %1322 = vmatpush1.bf16.msra.mxu0 0
        %1323 = vmatprep.subr.bf16.mxu0 0
        %1324 = vmatpush1.bf16.msra.mxu0 0
        %1325 = vmatprep.subr.bf16.mxu0 0
        %1326 = vmatpush1.bf16.msra.mxu0 0
        %1327 = vmatprep.subr.bf16.mxu0 0
        %1328 = vmatpush1.bf16.msra.mxu0 0
        %1329 = vmatprep.subr.bf16.mxu0 0
        %1330 = vmatpush1.bf16.msra.mxu0 0
        %1331 = vmatprep.subr.bf16.mxu0 0
        %1332 = vmatpush1.bf16.msra.mxu0 0
        %1333 = vmatprep.subr.bf16.mxu0 0
        %1334 = vmatpush1.bf16.msra.mxu0 0
        %1335 = vmatprep.mubr.bf16.mxu0 0
        %1336 = vmatmul.mubr.bf16.gmra.mrb[0].mxu0 %v1301
        %v1337 = vpop.f32.mrb[0].mxu0
        %v1338 = vadd.f32 %v1286, %v1337
        %v1339 = vpop.f32.mrb[0].mxu0
        %v1340 = vpop.f32.mrb[0].mxu0
        %v1341 = vpop.f32.mrb[0].mxu0
        %1342 = vdwg.mxu0
        %v1343 = vmax.f32 %v1338, 0.0
        %v1344 = vld [vmem:[%s11] sm:$0xf]
        %v1345 = vld [vmem:[%s11 + $0x4] sm:$0xf]
        %v1346 = vld [vmem:[%s11 + $0x8] sm:$0xf]
        %v1347 = vld [vmem:[%s11 + $0xc] sm:$0xf]
        %v1348 = vld [vmem:[%s11 + $0x10] sm:$0xf]
        %v1349 = vld [vmem:[%s11 + $0x14] sm:$0xf]
        %v1350 = vld [vmem:[%s11 + $0x18] sm:$0xf]
        %v1351 = vld [vmem:[%s11 + $0x1c] sm:$0xf]
        %v1352 = vpack.c.bf16 %v1343, %v1343
        %v1353 = vld [vmem:[%s12] sm:$0x1]
        %v1355 = vlaneseq
        %v1356 = vshrl.u32 %v1355, 7
        %v1357 = vsub.s32 0, %v1356
        %v1358 = vrot.slane %v1353, %v1357
        %v1368 = vunpack.c.l.b16 %v1344
        %v1369 = vunpack.c.l.b16 %v1345
        %v1370 = vunpack.c.l.b16 %v1346
        %v1371 = vunpack.c.l.b16 %v1347
        %v1372 = vunpack.c.l.b16 %v1348
        %v1373 = vunpack.c.l.b16 %v1349
        %v1374 = vunpack.c.l.b16 %v1350
        %v1375 = vunpack.c.l.b16 %v1351
        %v1376 = vpack.c.b16 %v1369, %v1368
        %v1377 = vpack.c.b16 %v1371, %v1370
        %v1378 = vpack.c.b16 %v1373, %v1372
        %v1379 = vpack.c.b16 %v1375, %v1374
        %vm1384 = vcmask 523264
        %v1386 = vsel %vm1384, %v1352, 0
        %1388 = vmatprep.subr.bf16.mxu0 0
        %1389 = vmatpush1.bf16.msra.mxu0 %v1376
        %1390 = vmatprep.subr.bf16.mxu0 0
        %1391 = vmatpush1.bf16.msra.mxu0 %v1377
        %1392 = vmatprep.subr.bf16.mxu0 0
        %1393 = vmatpush1.bf16.msra.mxu0 %v1378
        %1394 = vmatprep.subr.bf16.mxu0 0
        %1395 = vmatpush1.bf16.msra.mxu0 %v1379
        %1396 = vmatprep.subr.bf16.mxu0 0
        %1397 = vmatpush1.bf16.msra.mxu0 0
        %1398 = vmatprep.subr.bf16.mxu0 0
        %1399 = vmatpush1.bf16.msra.mxu0 0
        %1400 = vmatprep.subr.bf16.mxu0 0
        %1401 = vmatpush1.bf16.msra.mxu0 0
        %1402 = vmatprep.subr.bf16.mxu0 0
        %1403 = vmatpush1.bf16.msra.mxu0 0
        %1404 = vmatprep.subr.bf16.mxu0 0
        %1405 = vmatpush1.bf16.msra.mxu0 0
        %1406 = vmatprep.subr.bf16.mxu0 0
        %1407 = vmatpush1.bf16.msra.mxu0 0
        %1408 = vmatprep.subr.bf16.mxu0 0
        %1409 = vmatpush1.bf16.msra.mxu0 0
        %1410 = vmatprep.subr.bf16.mxu0 0
        %1411 = vmatpush1.bf16.msra.mxu0 0
        %1412 = vmatprep.subr.bf16.mxu0 0
        %1413 = vmatpush1.bf16.msra.mxu0 0
        %1414 = vmatprep.subr.bf16.mxu0 0
        %1415 = vmatpush1.bf16.msra.mxu0 0
        %1416 = vmatprep.subr.bf16.mxu0 0
        %1417 = vmatpush1.bf16.msra.mxu0 0
        %1418 = vmatprep.subr.bf16.mxu0 0
        %1419 = vmatpush1.bf16.msra.mxu0 0
        %1420 = vmatprep.mubr.bf16.mxu0 0
        %1421 = vmatmul.mubr.bf16.gmra.mrb[0].mxu0 %v1386
        %v1422 = vpop.f32.mrb[0].mxu0
        %v1423 = vadd.f32 %v1358, %v1422
        %v1424 = vpop.f32.mrb[0].mxu0
        %v1425 = vpop.f32.mrb[0].mxu0
        %v1426 = vpop.f32.mrb[0].mxu0
        %1427 = vdwg.mxu0
        %v1428 = vadd.f32 %v1246, %v1423
        %1429 = vst.msk [vmem:[%s482] sm:$0xff] %vm491, %v1428
        %s1430 = sand.u32 %s316, 1
        %s1431 = scalar_lea.sflag [#allocation5], %s1430
        %s1432 = sand.u32 %s316, 1
        %s1433 = smul.addr %s1432, 8
        %s1434 = scalar_lea.vmem [#allocation11], %s1433
        // Predicated region
        $region89: #{tpu_custom_call.1} parent=71 // pred_check
          %p1435 = pneg %p326
        $region90: #{tpu_custom_call.1} parent=71 // pred_check_branch
          %1437 = sbr.rel (%p1435) target = $region92
        $region91: #{tpu_custom_call.1} parent=71 // pred_region
          %s1439 = ssub.s32 128, 128
          %1440 = vsyncadd %s1431, %s1439
          %s1441 = smul.addr %s30, 128
          %s1442 = scalar_lea.hbm %s13, %s1441
          %s1444 = sshll.u32 %s1434, 4
          %s1445 = int_to_ptr.vmem [resolvable:$true] %s1444
          %1447 = dma.vmem_to_hbm [thread:$0]  %s1445, 128, %s1442, %s1431
        $region92: #{tpu_custom_call.1} parent=71 // pred_fallthru
          _
      $region72: #{tpu_custom_call.1} parent=5 // pred_fallthru
        _
      %p1448 = scmp.le.s32.totalorder 2, %s25
      // Predicated region
      $region93: #{tpu_custom_call.1} parent=5 // pred_check
        %p1449 = pneg %p1448
      $region94: #{tpu_custom_call.1} parent=5 // pred_check_branch
        %1451 = sbr.rel (%p1449) target = $region96
      $region95: #{tpu_custom_call.1} parent=5 // pred_region
        %s1452 = ssub.s32 %s25, 2
        // Predicated region
        $region97: #{tpu_custom_call.1} parent=95 // pred_check
          %p1453 = pneg %p332
        $region98: #{tpu_custom_call.1} parent=95 // pred_check_branch
          %1455 = sbr.rel (%p1453) target = $region100
        $region99: #{tpu_custom_call.1} parent=95 // pred_region
          %s1456 = sand.u32 %s317, 1
          %s1457 = scalar_lea.sflag [#allocation5], %s1456
          %s1458 = sand.u32 %s317, 1
          %s1459 = smul.addr %s1458, 8
          %s1460 = scalar_lea.vmem [#allocation11], %s1459
          %1461 = dma.done %s1457, 128
        $region100: #{tpu_custom_call.1} parent=95 // pred_fallthru
          _
      $region96: #{tpu_custom_call.1} parent=5 // pred_fallthru
        _
    $region6: #{tpu_custom_call.1} parent=1 // loop_footer
      %s29 = sadd.s32 1, %s25
    $region7: #{tpu_custom_call.1} parent=1 // loop_footer_branch
      %24 = sbr.rel target = $region3
    $region8: #{tpu_custom_call.1} parent=1 // loop_exit
      _
    %1462 = vsyncpa [#allocation4], 1
    %s1463 = scalar_lea.sflag [#allocation4], 1
    %1464 = vsyncpa %s1463, 1
    %1465 = vsyncpa [#allocation7], 1
    %1466 = vsyncpa [#allocation10], 1
    %1467 = vsyncpa [#allocation5], 1
    %s1468 = scalar_lea.sflag [#allocation5], 1
    %1469 = vsyncpa %s1468, 1

</llo_original>
